<compile_context>
chip_gen: v7x
topology: tpu7x:2x2x1
jax: 0.10.0
libtpu: 0.0.40
codegen_flags: <defaults>
</compile_context>

<pallas_src>
import functools
import math
from functools import partial

import numpy as np

import jax
import jax.numpy as jnp
from jax import lax
from jax.experimental import pallas as pl
from jax.experimental.pallas import tpu as pltpu

S, B, H = 8, 4, 32          # seq, batch, hidden
NUM_HEADS = 4
ALPHA = 0.7


def _transformer_block_kernel(
    x_ref, w_ref, v_ref, out_ref,
    *, num_heads, n_batch, seq_len, hidden, alpha,
):
    c_last = (((1,), (1,)), ((), ()))   # contract last dims (y @ W.T)
    bs = n_batch * seq_len
    d = hidden // num_heads

    x = x_ref[...]                      # (B*S, H) f32, batch-major rows

    # Static, sublane-aligned slices of the packed weight slab.
    lp_op = w_ref[0:bs]                                   # (B*S, B*S) low-pass operator
    w_qkv = w_ref[bs:bs + 3 * hidden]                     # (3H, H), q rows pre-scaled
    w_out = w_ref[bs + 3 * hidden:bs + 4 * hidden]        # (H, H)
    w1 = w_ref[bs + 4 * hidden:bs + 5 * hidden]           # (H, H)
    w2 = w_ref[bs + 5 * hidden:bs + 6 * hidden]           # (H, H)
    v = v_ref[...]                                        # (13, H) bias/gain rows

    def layer_norm(y, g, b, eps):
        mu = jnp.mean(y, axis=-1, keepdims=True)
        var = jnp.mean((y - mu) ** 2, axis=-1, keepdims=True)
        return (y - mu) * lax.rsqrt(var + eps) * g + b

    # ---- FrequencyLayer: rfft -> zero bins[2:] -> irfft as one MXU matmul ----
    lp = lax.dot_general(lp_op, x, (((1,), (0,)), ((), ())),
                         preferred_element_type=jnp.float32)          # (B*S, H)
    seq_fft = lp + v[4:5] * (x - lp)                                  # v[4] = sqrt_beta^2
    gsp = layer_norm(seq_fft + x, v[5:6], v[6:7], 1e-12)

    # ---- nn.MultiheadAttention(x, x, x) ----
    # One fused QKV projection (1/sqrt(d) already folded into the q rows/bias).
    qkv = lax.dot_general(x, w_qkv, c_last,
                          preferred_element_type=jnp.float32)         # (B*S, 3H)
    q = qkv[:, :hidden] + v[0:1]
    k = qkv[:, hidden:2 * hidden] + v[1:2]
    vv = qkv[:, 2 * hidden:] + v[2:3]

    # Merge batch and head into one batched dim: (B*nh, S, d).
    def to_bh(t):
        return jnp.concatenate(
            [t[:, h * d:(h + 1) * d].reshape(n_batch, seq_len, d)
             for h in range(num_heads)], axis=0)

    qb, kb, vb = to_bh(q), to_bh(k), to_bh(vv)

    logits = jnp.einsum("bqd,bkd->bqk", qb, kb,
                        preferred_element_type=jnp.float32)           # (B*nh, S, S)
    logits = logits - jnp.max(logits, axis=-1, keepdims=True)
    e = jnp.exp(logits)
    p = e / jnp.sum(e, axis=-1, keepdims=True)                        # exact divide
    ctx = jnp.einsum("bqk,bkd->bqd", p, vb,
                     preferred_element_type=jnp.float32)              # (B*nh, S, d)

    # Concat heads along lanes, then a single out-proj matmul with K = H.
    ctx2 = jnp.concatenate(
        [ctx[h * n_batch:(h + 1) * n_batch].reshape(bs, d)
         for h in range(num_heads)], axis=-1)                         # (B*S, H)
    attn = lax.dot_general(ctx2, w_out, c_last,
                           preferred_element_type=jnp.float32) + v[3:4]

    # ---- alpha-mix + residual 1 ----
    mixed = alpha * attn + (1.0 - alpha) * gsp
    x1 = layer_norm(x + mixed, v[9:10], v[10:11], 1e-5)

    # ---- FFN (Linear -> ReLU -> Linear) + residual 2 ----
    h1 = lax.dot_general(x1, w1, c_last,
                         preferred_element_type=jnp.float32) + v[7:8]
    h1 = jnp.maximum(h1, 0.0)
    ffn = lax.dot_general(h1, w2, c_last,
                          preferred_element_type=jnp.float32) + v[8:9]
    out_ref[...] = layer_norm(x1 + ffn, v[11:12], v[12:13], 1e-5)


@functools.lru_cache(maxsize=None)
def _lowpass_kron(fft_len, seq_len):
    """kron(P, I_seq) with P = irfft(zero_bins[2:](rfft(., ortho)), ortho) over fft_len.

    Host-side numpy, cached on shape: never runs on the per-step path.
    """
    eye = np.eye(fft_len, dtype=np.float64)
    spec = np.fft.rfft(eye, axis=0, norm="ortho")
    spec[2:] = 0.0
    p = np.fft.irfft(spec, n=fft_len, axis=0, norm="ortho").real
    return np.kron(p, np.eye(seq_len)).astype(np.float32)


def prepare_params(params, *, bsz, seq_len, hidden, num_heads):
    """One-time (model-init) packing: fold q-scale, build lp operator, pack slabs."""
    (w_in, b_in, w_out, b_out, sqrt_beta, lnf_g, lnf_b,
     w1, b1, w2, b2, n1_g, n1_b, n2_g, n2_b) = params
    d = hidden // num_heads
    scale = 1.0 / math.sqrt(d)

    # Block-diagonal (per-seq-position) low-pass over the fft (batch) axis,
    # laid out for batch-major (B*S, H) rows.
    lp_op = jnp.asarray(_lowpass_kron(bsz, seq_len))                  # (B*S, B*S)

    w_qkv = jnp.concatenate([w_in[:hidden] * scale, w_in[hidden:]], axis=0)   # (3H, H)
    w_slab = jnp.concatenate([lp_op, w_qkv, w_out, w1, w2], axis=0)           # (B*S+6H, H)

    b3 = b_in.reshape(3, hidden)
    v_slab = jnp.concatenate([
        b3[0:1] * scale, b3[1:2], b3[2:3],      # rows 0-2: q/k/v bias (q pre-scaled)
        b_out,                                  # row 3: out-proj bias
        sqrt_beta ** 2,                         # row 4: FrequencyLayer sqrt_beta^2
        lnf_g, lnf_b,                           # rows 5-6: FrequencyLayer layer_norm
        b1, b2,                                 # rows 7-8: ffn biases
        n1_g, n1_b, n2_g, n2_b,                 # rows 9-12: norm1 / norm2
    ], axis=0)                                  # (13, H)
    return w_slab, v_slab


@partial(jax.jit, static_argnames=("num_heads", "alpha"))
def transformer_block(x, w_slab, v_slab, *, num_heads, alpha):
    s_len, bsz, hidden = x.shape
    # (S,B,H) -> batch-major (B*S,H) slab; this relayout and its inverse live in
    # the SAME jit as the pallas_call (no standalone eager transpose launches).
    x2 = jnp.transpose(x, (1, 0, 2)).reshape(bsz * s_len, hidden)

    vmem = pl.BlockSpec(memory_space=pltpu.MemorySpace.VMEM)
    kernel = partial(_transformer_block_kernel, num_heads=num_heads,
                     n_batch=bsz, seq_len=s_len, hidden=hidden, alpha=alpha)
    out2 = pl.pallas_call(
        kernel,
        out_shape=jax.ShapeDtypeStruct((bsz * s_len, hidden), jnp.float32),
        in_specs=[vmem, vmem, vmem],
        out_specs=vmem,
    )(x2, w_slab, v_slab)
    return jnp.transpose(out2.reshape(bsz, s_len, hidden), (1, 0, 2))


def reference_forward(x, params, *, num_heads, alpha):
    """Pure-JAX reference matching the PyTorch forward (eval mode)."""
    (w_in, b_in, w_out, b_out, sqrt_beta, lnf_g, lnf_b,
     w1, b1, w2, b2, n1_g, n1_b, n2_g, n2_b) = params
    s_len, bsz, hidden = x.shape
    d = hidden // num_heads

    qkv = jnp.einsum("sbh,eh->sbe", x, w_in) + b_in[0]
    q, k, v = qkv[..., :hidden], qkv[..., hidden:2 * hidden], qkv[..., 2 * hidden:]
    q = q.reshape(s_len, bsz, num_heads, d) / math.sqrt(d)
    k = k.reshape(s_len, bsz, num_heads, d)
    v = v.reshape(s_len, bsz, num_heads, d)
    logits = jnp.einsum("qbnd,kbnd->bnqk", q, k)
    p = jax.nn.softmax(logits, axis=-1)
    ctx = jnp.einsum("bnqk,kbnd->qbnd", p, v).reshape(s_len, bsz, hidden)
    attn = jnp.einsum("sbh,eh->sbe", ctx, w_out) + b_out[0]

    xf = jnp.fft.rfft(x, axis=1, norm="ortho")
    xf = xf.at[:, 2:, :].set(0)
    low = jnp.fft.irfft(xf, n=bsz, axis=1, norm="ortho")
    high = x - low
    seq_fft = low + (sqrt_beta[0] ** 2) * high

    def ln(y, g, bvec, eps):
        mu = y.mean(-1, keepdims=True)
        var = ((y - mu) ** 2).mean(-1, keepdims=True)
        return (y - mu) / jnp.sqrt(var + eps) * g + bvec

    gsp = ln(seq_fft + x, lnf_g[0], lnf_b[0], 1e-12)
    hidden_states = alpha * attn + (1.0 - alpha) * gsp
    x1 = ln(x + hidden_states, n1_g[0], n1_b[0], 1e-5)
    ffn = jnp.maximum(jnp.einsum("sbh,eh->sbe", x1, w1) + b1[0], 0.0)
    ffn = jnp.einsum("sbh,eh->sbe", ffn, w2) + b2[0]
    return ln(x1 + ffn, n2_g[0], n2_b[0], 1e-5)


if __name__ == "__main__":
    f32 = jnp.float32
    key = jax.random.PRNGKey(0)
    ks = jax.random.split(key, 10)

    # Deterministic synthetic parameters (shapes from TransformerBlock.__init__).
    w_in = 0.1 * jax.random.normal(ks[0], (3 * H, H), f32)       # MHA in_proj_weight
    b_in = 0.1 * jax.random.normal(ks[1], (1, 3 * H), f32)       # MHA in_proj_bias
    w_out = 0.1 * jax.random.normal(ks[2], (H, H), f32)          # MHA out_proj.weight
    b_out = 0.1 * jax.random.normal(ks[3], (1, H), f32)          # MHA out_proj.bias
    sqrt_beta = jax.random.normal(ks[4], (1, H), f32)            # FrequencyLayer.sqrt_beta
    lnf_g = jnp.ones((1, H), f32)                                # FrequencyLayer.layer_norm
    lnf_b = jnp.zeros((1, H), f32)
    w1 = 0.1 * jax.random.normal(ks[5], (H, H), f32)             # ffn[0]
    b1 = 0.1 * jax.random.normal(ks[6], (1, H), f32)
    w2 = 0.1 * jax.random.normal(ks[7], (H, H), f32)             # ffn[3]
    b2 = 0.1 * jax.random.normal(ks[8], (1, H), f32)
    n1_g = jnp.ones((1, H), f32)                                 # norm1
    n1_b = jnp.zeros((1, H), f32)
    n2_g = jnp.ones((1, H), f32)                                 # norm2
    n2_b = jnp.zeros((1, H), f32)

    params = (w_in, b_in, w_out, b_out, sqrt_beta, lnf_g, lnf_b,
              w1, b1, w2, b2, n1_g, n1_b, n2_g, n2_b)

    # One-time (model-init) packing — not on the per-step path.
    w_slab, v_slab = prepare_params(params, bsz=B, seq_len=S,
                                    hidden=H, num_heads=NUM_HEADS)

    x = jax.random.normal(ks[9], (S, B, H), f32)

    out = transformer_block(x, w_slab, v_slab, num_heads=NUM_HEADS, alpha=ALPHA)
    out = jax.block_until_ready(out)

    ref = reference_forward(x, params, num_heads=NUM_HEADS, alpha=ALPHA)
    err = float(jnp.max(jnp.abs(out - ref)))
    assert out.shape == (S, B, H)
    # Exact softmax divide now; tolerance covers MXU f32 accumulation and the
    # matmul-form low-pass operator vs. jnp.fft in the reference.
    assert err < 2e-3, f"max abs diff too large: {err}"
    print("KERNEL_OK")
</pallas_src>

<mosaic_0001>
module attributes {stable_mosaic.version = 11 : i64} {
  func.func @_transformer_block_kernel(%arg0: memref<32x32xf32, #tpu.memory_space<vmem>>, %arg1: memref<224x32xf32, #tpu.memory_space<vmem>>, %arg2: memref<13x32xf32, #tpu.memory_space<vmem>>, %arg3: memref<32x32xf32, #tpu.memory_space<vmem>>) attributes {dimension_semantics = [], scalar_prefetch = 0 : i64, scratch_operands = 0 : i64, tpu.core_type = #tpu.core_type<tc>} {
    %c0 = arith.constant 0 : index
    %c0_0 = arith.constant 0 : index
    %0 = vector.load %arg0[%c0, %c0_0] : memref<32x32xf32, #tpu.memory_space<vmem>>, vector<32x32xf32>
    %c0_1 = arith.constant 0 : index
    %c0_2 = arith.constant 0 : index
    %1 = vector.load %arg1[%c0_1, %c0_2] : memref<224x32xf32, #tpu.memory_space<vmem>>, vector<32x32xf32>
    %c32 = arith.constant 32 : index
    %c0_3 = arith.constant 0 : index
    %2 = vector.load %arg1[%c32, %c0_3] : memref<224x32xf32, #tpu.memory_space<vmem>>, vector<96x32xf32>
    %c128 = arith.constant 128 : index
    %c0_4 = arith.constant 0 : index
    %3 = vector.load %arg1[%c128, %c0_4] : memref<224x32xf32, #tpu.memory_space<vmem>>, vector<32x32xf32>
    %c160 = arith.constant 160 : index
    %c0_5 = arith.constant 0 : index
    %4 = vector.load %arg1[%c160, %c0_5] : memref<224x32xf32, #tpu.memory_space<vmem>>, vector<32x32xf32>
    %c192 = arith.constant 192 : index
    %c0_6 = arith.constant 0 : index
    %5 = vector.load %arg1[%c192, %c0_6] : memref<224x32xf32, #tpu.memory_space<vmem>>, vector<32x32xf32>
    %c0_7 = arith.constant 0 : index
    %c0_8 = arith.constant 0 : index
    %6 = vector.load %arg2[%c0_7, %c0_8] : memref<13x32xf32, #tpu.memory_space<vmem>>, vector<13x32xf32>
    %cst = arith.constant dense<0.000000e+00> : vector<32x32xf32>
    %7 = tpu.matmul %1, %0, %cst {dimension_numbers = #tpu.dot_dimension_numbers<[1], [0], [0], [1], [0, 0, 1, 1], [], []>} : vector<32x32xf32>, vector<32x32xf32>, vector<32x32xf32> -> vector<32x32xf32>
    %8 = vector.extract_strided_slice %6 {offsets = [4, 0], sizes = [1, 32], strides = [1, 1]} : vector<13x32xf32> to vector<1x32xf32>
    %9 = arith.subf %0, %7 : vector<32x32xf32>
    %10 = vector.broadcast %8 : vector<1x32xf32> to vector<32x32xf32>
    %11 = arith.mulf %10, %9 : vector<32x32xf32>
    %12 = arith.addf %7, %11 : vector<32x32xf32>
    %13 = arith.addf %12, %0 : vector<32x32xf32>
    %14 = vector.extract_strided_slice %6 {offsets = [5, 0], sizes = [1, 32], strides = [1, 1]} : vector<13x32xf32> to vector<1x32xf32>
    %15 = vector.extract_strided_slice %6 {offsets = [6, 0], sizes = [1, 32], strides = [1, 1]} : vector<13x32xf32> to vector<1x32xf32>
    %cst_9 = arith.constant dense<0.000000e+00> : vector<32xf32>
    %16 = vector.multi_reduction <add>, %13, %cst_9 [1] : vector<32x32xf32> to vector<32xf32>
    %17 = vector.shape_cast %16 : vector<32xf32> to vector<32x1xf32>
    %cst_10 = arith.constant 3.200000e+01 : f32
    %18 = vector.broadcast %cst_10 : f32 to vector<32x1xf32>
    %19 = arith.divf %17, %18 : vector<32x1xf32>
    %20 = vector.broadcast %19 : vector<32x1xf32> to vector<32x32xf32>
    %21 = arith.subf %13, %20 : vector<32x32xf32>
    %22 = arith.mulf %21, %21 : vector<32x32xf32>
    %cst_11 = arith.constant dense<0.000000e+00> : vector<32xf32>
    %23 = vector.multi_reduction <add>, %22, %cst_11 [1] : vector<32x32xf32> to vector<32xf32>
    %24 = vector.shape_cast %23 : vector<32xf32> to vector<32x1xf32>
    %cst_12 = arith.constant 3.200000e+01 : f32
    %25 = vector.broadcast %cst_12 : f32 to vector<32x1xf32>
    %26 = arith.divf %24, %25 : vector<32x1xf32>
    %27 = vector.broadcast %19 : vector<32x1xf32> to vector<32x32xf32>
    %28 = arith.subf %13, %27 : vector<32x32xf32>
    %cst_13 = arith.constant 9.99999996E-13 : f32
    %29 = vector.broadcast %cst_13 : f32 to vector<32x1xf32>
    %30 = arith.addf %26, %29 : vector<32x1xf32>
    %31 = math.rsqrt %30 : vector<32x1xf32>
    %32 = vector.broadcast %31 : vector<32x1xf32> to vector<32x32xf32>
    %33 = arith.mulf %28, %32 : vector<32x32xf32>
    %34 = vector.broadcast %14 : vector<1x32xf32> to vector<32x32xf32>
    %35 = arith.mulf %33, %34 : vector<32x32xf32>
    %36 = vector.broadcast %15 : vector<1x32xf32> to vector<32x32xf32>
    %37 = arith.addf %35, %36 : vector<32x32xf32>
    %cst_14 = arith.constant dense<0.000000e+00> : vector<32x96xf32>
    %38 = tpu.matmul %0, %2, %cst_14 {dimension_numbers = #tpu.dot_dimension_numbers<[1], [1], [0], [0], [0, 0, 1, 0], [], []>} : vector<32x32xf32>, vector<96x32xf32>, vector<32x96xf32> -> vector<32x96xf32>
    %39 = vector.extract_strided_slice %38 {offsets = [0, 0], sizes = [32, 32], strides = [1, 1]} : vector<32x96xf32> to vector<32x32xf32>
    %40 = vector.extract_strided_slice %6 {offsets = [0, 0], sizes = [1, 32], strides = [1, 1]} : vector<13x32xf32> to vector<1x32xf32>
    %41 = vector.broadcast %40 : vector<1x32xf32> to vector<32x32xf32>
    %42 = arith.addf %39, %41 : vector<32x32xf32>
    %43 = vector.extract_strided_slice %38 {offsets = [0, 32], sizes = [32, 32], strides = [1, 1]} : vector<32x96xf32> to vector<32x32xf32>
    %44 = vector.extract_strided_slice %6 {offsets = [1, 0], sizes = [1, 32], strides = [1, 1]} : vector<13x32xf32> to vector<1x32xf32>
    %45 = vector.broadcast %44 : vector<1x32xf32> to vector<32x32xf32>
    %46 = arith.addf %43, %45 : vector<32x32xf32>
    %47 = vector.extract_strided_slice %38 {offsets = [0, 64], sizes = [32, 32], strides = [1, 1]} : vector<32x96xf32> to vector<32x32xf32>
    %48 = vector.extract_strided_slice %6 {offsets = [2, 0], sizes = [1, 32], strides = [1, 1]} : vector<13x32xf32> to vector<1x32xf32>
    %49 = vector.broadcast %48 : vector<1x32xf32> to vector<32x32xf32>
    %50 = arith.addf %47, %49 : vector<32x32xf32>
    %51 = vector.extract_strided_slice %42 {offsets = [0, 0], sizes = [32, 8], strides = [1, 1]} : vector<32x32xf32> to vector<32x8xf32>
    %52 = vector.shape_cast %51 : vector<32x8xf32> to vector<4x8x8xf32>
    %53 = vector.extract_strided_slice %42 {offsets = [0, 8], sizes = [32, 8], strides = [1, 1]} : vector<32x32xf32> to vector<32x8xf32>
    %54 = vector.shape_cast %53 : vector<32x8xf32> to vector<4x8x8xf32>
    %55 = vector.extract_strided_slice %42 {offsets = [0, 16], sizes = [32, 8], strides = [1, 1]} : vector<32x32xf32> to vector<32x8xf32>
    %56 = vector.shape_cast %55 : vector<32x8xf32> to vector<4x8x8xf32>
    %57 = vector.extract_strided_slice %42 {offsets = [0, 24], sizes = [32, 8], strides = [1, 1]} : vector<32x32xf32> to vector<32x8xf32>
    %58 = vector.shape_cast %57 : vector<32x8xf32> to vector<4x8x8xf32>
    %59 = tpu.concatenate %52, %54, %56, %58 in 0 : vector<4x8x8xf32>, vector<4x8x8xf32>, vector<4x8x8xf32>, vector<4x8x8xf32> -> vector<16x8x8xf32>
    %60 = vector.extract_strided_slice %46 {offsets = [0, 0], sizes = [32, 8], strides = [1, 1]} : vector<32x32xf32> to vector<32x8xf32>
    %61 = vector.shape_cast %60 : vector<32x8xf32> to vector<4x8x8xf32>
    %62 = vector.extract_strided_slice %46 {offsets = [0, 8], sizes = [32, 8], strides = [1, 1]} : vector<32x32xf32> to vector<32x8xf32>
    %63 = vector.shape_cast %62 : vector<32x8xf32> to vector<4x8x8xf32>
    %64 = vector.extract_strided_slice %46 {offsets = [0, 16], sizes = [32, 8], strides = [1, 1]} : vector<32x32xf32> to vector<32x8xf32>
    %65 = vector.shape_cast %64 : vector<32x8xf32> to vector<4x8x8xf32>
    %66 = vector.extract_strided_slice %46 {offsets = [0, 24], sizes = [32, 8], strides = [1, 1]} : vector<32x32xf32> to vector<32x8xf32>
    %67 = vector.shape_cast %66 : vector<32x8xf32> to vector<4x8x8xf32>
    %68 = tpu.concatenate %61, %63, %65, %67 in 0 : vector<4x8x8xf32>, vector<4x8x8xf32>, vector<4x8x8xf32>, vector<4x8x8xf32> -> vector<16x8x8xf32>
    %69 = vector.extract_strided_slice %50 {offsets = [0, 0], sizes = [32, 8], strides = [1, 1]} : vector<32x32xf32> to vector<32x8xf32>
    %70 = vector.shape_cast %69 : vector<32x8xf32> to vector<4x8x8xf32>
    %71 = vector.extract_strided_slice %50 {offsets = [0, 8], sizes = [32, 8], strides = [1, 1]} : vector<32x32xf32> to vector<32x8xf32>
    %72 = vector.shape_cast %71 : vector<32x8xf32> to vector<4x8x8xf32>
    %73 = vector.extract_strided_slice %50 {offsets = [0, 16], sizes = [32, 8], strides = [1, 1]} : vector<32x32xf32> to vector<32x8xf32>
    %74 = vector.shape_cast %73 : vector<32x8xf32> to vector<4x8x8xf32>
    %75 = vector.extract_strided_slice %50 {offsets = [0, 24], sizes = [32, 8], strides = [1, 1]} : vector<32x32xf32> to vector<32x8xf32>
    %76 = vector.shape_cast %75 : vector<32x8xf32> to vector<4x8x8xf32>
    %77 = tpu.concatenate %70, %72, %74, %76 in 0 : vector<4x8x8xf32>, vector<4x8x8xf32>, vector<4x8x8xf32>, vector<4x8x8xf32> -> vector<16x8x8xf32>
    "tpu.trace_start"() <{level = 10 : i32, message = "bqd,bkd->bqk"}> : () -> ()
    %cst_15 = arith.constant dense<0.000000e+00> : vector<16x8x8xf32>
    %78 = tpu.matmul %59, %68, %cst_15 {dimension_numbers = #tpu.dot_dimension_numbers<[2], [2], [1], [1], [0, 0, 0, 1, 1, 1], [0], [0]>} : vector<16x8x8xf32>, vector<16x8x8xf32>, vector<16x8x8xf32> -> vector<16x8x8xf32>
    "tpu.trace_stop"() : () -> ()
    %cst_16 = arith.constant dense<0xFF800000> : vector<16x8xf32>
    %79 = vector.multi_reduction <maximumf>, %78, %cst_16 [2] : vector<16x8x8xf32> to vector<16x8xf32>
    %80 = vector.shape_cast %79 : vector<16x8xf32> to vector<16x8x1xf32>
    %81 = vector.broadcast %80 : vector<16x8x1xf32> to vector<16x8x8xf32>
    %82 = arith.subf %78, %81 : vector<16x8x8xf32>
    %83 = math.exp %82 : vector<16x8x8xf32>
    %cst_17 = arith.constant dense<0.000000e+00> : vector<16x8xf32>
    %84 = vector.multi_reduction <add>, %83, %cst_17 [2] : vector<16x8x8xf32> to vector<16x8xf32>
    %85 = vector.shape_cast %84 : vector<16x8xf32> to vector<16x8x1xf32>
    %86 = vector.broadcast %85 : vector<16x8x1xf32> to vector<16x8x8xf32>
    %87 = arith.divf %83, %86 : vector<16x8x8xf32>
    "tpu.trace_start"() <{level = 10 : i32, message = "bqk,bkd->bqd"}> : () -> ()
    %cst_18 = arith.constant dense<0.000000e+00> : vector<16x8x8xf32>
    %88 = tpu.matmul %87, %77, %cst_18 {dimension_numbers = #tpu.dot_dimension_numbers<[2], [1], [1], [2], [0, 0, 0, 1, 1, 2], [0], [0]>} : vector<16x8x8xf32>, vector<16x8x8xf32>, vector<16x8x8xf32> -> vector<16x8x8xf32>
    "tpu.trace_stop"() : () -> ()
    %89 = vector.extract_strided_slice %88 {offsets = [0, 0, 0], sizes = [4, 8, 8], strides = [1, 1, 1]} : vector<16x8x8xf32> to vector<4x8x8xf32>
    %90 = vector.shape_cast %89 : vector<4x8x8xf32> to vector<32x8xf32>
    %91 = vector.extract_strided_slice %88 {offsets = [4, 0, 0], sizes = [4, 8, 8], strides = [1, 1, 1]} : vector<16x8x8xf32> to vector<4x8x8xf32>
    %92 = vector.shape_cast %91 : vector<4x8x8xf32> to vector<32x8xf32>
    %93 = vector.extract_strided_slice %88 {offsets = [8, 0, 0], sizes = [4, 8, 8], strides = [1, 1, 1]} : vector<16x8x8xf32> to vector<4x8x8xf32>
    %94 = vector.shape_cast %93 : vector<4x8x8xf32> to vector<32x8xf32>
    %95 = vector.extract_strided_slice %88 {offsets = [12, 0, 0], sizes = [4, 8, 8], strides = [1, 1, 1]} : vector<16x8x8xf32> to vector<4x8x8xf32>
    %96 = vector.shape_cast %95 : vector<4x8x8xf32> to vector<32x8xf32>
    %97 = tpu.concatenate %90, %92, %94, %96 in 1 : vector<32x8xf32>, vector<32x8xf32>, vector<32x8xf32>, vector<32x8xf32> -> vector<32x32xf32>
    %cst_19 = arith.constant dense<0.000000e+00> : vector<32x32xf32>
    %98 = tpu.matmul %97, %3, %cst_19 {dimension_numbers = #tpu.dot_dimension_numbers<[1], [1], [0], [0], [0, 0, 1, 0], [], []>} : vector<32x32xf32>, vector<32x32xf32>, vector<32x32xf32> -> vector<32x32xf32>
    %99 = vector.extract_strided_slice %6 {offsets = [3, 0], sizes = [1, 32], strides = [1, 1]} : vector<13x32xf32> to vector<1x32xf32>
    %100 = vector.broadcast %99 : vector<1x32xf32> to vector<32x32xf32>
    %101 = arith.addf %98, %100 : vector<32x32xf32>
    %cst_20 = arith.constant 0.699999988 : f32
    %102 = vector.broadcast %cst_20 : f32 to vector<32x32xf32>
    %103 = arith.mulf %102, %101 : vector<32x32xf32>
    %cst_21 = arith.constant 3.000000e-01 : f32
    %104 = vector.broadcast %cst_21 : f32 to vector<32x32xf32>
    %105 = arith.mulf %104, %37 : vector<32x32xf32>
    %106 = arith.addf %103, %105 : vector<32x32xf32>
    %107 = arith.addf %0, %106 : vector<32x32xf32>
    %108 = vector.extract_strided_slice %6 {offsets = [9, 0], sizes = [1, 32], strides = [1, 1]} : vector<13x32xf32> to vector<1x32xf32>
    %109 = vector.extract_strided_slice %6 {offsets = [10, 0], sizes = [1, 32], strides = [1, 1]} : vector<13x32xf32> to vector<1x32xf32>
    %cst_22 = arith.constant dense<0.000000e+00> : vector<32xf32>
    %110 = vector.multi_reduction <add>, %107, %cst_22 [1] : vector<32x32xf32> to vector<32xf32>
    %111 = vector.shape_cast %110 : vector<32xf32> to vector<32x1xf32>
    %cst_23 = arith.constant 3.200000e+01 : f32
    %112 = vector.broadcast %cst_23 : f32 to vector<32x1xf32>
    %113 = arith.divf %111, %112 : vector<32x1xf32>
    %114 = vector.broadcast %113 : vector<32x1xf32> to vector<32x32xf32>
    %115 = arith.subf %107, %114 : vector<32x32xf32>
    %116 = arith.mulf %115, %115 : vector<32x32xf32>
    %cst_24 = arith.constant dense<0.000000e+00> : vector<32xf32>
    %117 = vector.multi_reduction <add>, %116, %cst_24 [1] : vector<32x32xf32> to vector<32xf32>
    %118 = vector.shape_cast %117 : vector<32xf32> to vector<32x1xf32>
    %cst_25 = arith.constant 3.200000e+01 : f32
    %119 = vector.broadcast %cst_25 : f32 to vector<32x1xf32>
    %120 = arith.divf %118, %119 : vector<32x1xf32>
    %121 = vector.broadcast %113 : vector<32x1xf32> to vector<32x32xf32>
    %122 = arith.subf %107, %121 : vector<32x32xf32>
    %cst_26 = arith.constant 9.99999974E-6 : f32
    %123 = vector.broadcast %cst_26 : f32 to vector<32x1xf32>
    %124 = arith.addf %120, %123 : vector<32x1xf32>
    %125 = math.rsqrt %124 : vector<32x1xf32>
    %126 = vector.broadcast %125 : vector<32x1xf32> to vector<32x32xf32>
    %127 = arith.mulf %122, %126 : vector<32x32xf32>
    %128 = vector.broadcast %108 : vector<1x32xf32> to vector<32x32xf32>
    %129 = arith.mulf %127, %128 : vector<32x32xf32>
    %130 = vector.broadcast %109 : vector<1x32xf32> to vector<32x32xf32>
    %131 = arith.addf %129, %130 : vector<32x32xf32>
    %cst_27 = arith.constant dense<0.000000e+00> : vector<32x32xf32>
    %132 = tpu.matmul %131, %4, %cst_27 {dimension_numbers = #tpu.dot_dimension_numbers<[1], [1], [0], [0], [0, 0, 1, 0], [], []>} : vector<32x32xf32>, vector<32x32xf32>, vector<32x32xf32> -> vector<32x32xf32>
    %133 = vector.extract_strided_slice %6 {offsets = [7, 0], sizes = [1, 32], strides = [1, 1]} : vector<13x32xf32> to vector<1x32xf32>
    %134 = vector.broadcast %133 : vector<1x32xf32> to vector<32x32xf32>
    %135 = arith.addf %132, %134 : vector<32x32xf32>
    %cst_28 = arith.constant 0.000000e+00 : f32
    %136 = vector.broadcast %cst_28 : f32 to vector<32x32xf32>
    %137 = arith.maximumf %135, %136 : vector<32x32xf32>
    %cst_29 = arith.constant dense<0.000000e+00> : vector<32x32xf32>
    %138 = tpu.matmul %137, %5, %cst_29 {dimension_numbers = #tpu.dot_dimension_numbers<[1], [1], [0], [0], [0, 0, 1, 0], [], []>} : vector<32x32xf32>, vector<32x32xf32>, vector<32x32xf32> -> vector<32x32xf32>
    %139 = vector.extract_strided_slice %6 {offsets = [8, 0], sizes = [1, 32], strides = [1, 1]} : vector<13x32xf32> to vector<1x32xf32>
    %140 = vector.broadcast %139 : vector<1x32xf32> to vector<32x32xf32>
    %141 = arith.addf %138, %140 : vector<32x32xf32>
    %142 = arith.addf %131, %141 : vector<32x32xf32>
    %143 = vector.extract_strided_slice %6 {offsets = [11, 0], sizes = [1, 32], strides = [1, 1]} : vector<13x32xf32> to vector<1x32xf32>
    %144 = vector.extract_strided_slice %6 {offsets = [12, 0], sizes = [1, 32], strides = [1, 1]} : vector<13x32xf32> to vector<1x32xf32>
    %cst_30 = arith.constant dense<0.000000e+00> : vector<32xf32>
    %145 = vector.multi_reduction <add>, %142, %cst_30 [1] : vector<32x32xf32> to vector<32xf32>
    %146 = vector.shape_cast %145 : vector<32xf32> to vector<32x1xf32>
    %cst_31 = arith.constant 3.200000e+01 : f32
    %147 = vector.broadcast %cst_31 : f32 to vector<32x1xf32>
    %148 = arith.divf %146, %147 : vector<32x1xf32>
    %149 = vector.broadcast %148 : vector<32x1xf32> to vector<32x32xf32>
    %150 = arith.subf %142, %149 : vector<32x32xf32>
    %151 = arith.mulf %150, %150 : vector<32x32xf32>
    %cst_32 = arith.constant dense<0.000000e+00> : vector<32xf32>
    %152 = vector.multi_reduction <add>, %151, %cst_32 [1] : vector<32x32xf32> to vector<32xf32>
    %153 = vector.shape_cast %152 : vector<32xf32> to vector<32x1xf32>
    %cst_33 = arith.constant 3.200000e+01 : f32
    %154 = vector.broadcast %cst_33 : f32 to vector<32x1xf32>
    %155 = arith.divf %153, %154 : vector<32x1xf32>
    %156 = vector.broadcast %148 : vector<32x1xf32> to vector<32x32xf32>
    %157 = arith.subf %142, %156 : vector<32x32xf32>
    %cst_34 = arith.constant 9.99999974E-6 : f32
    %158 = vector.broadcast %cst_34 : f32 to vector<32x1xf32>
    %159 = arith.addf %155, %158 : vector<32x1xf32>
    %160 = math.rsqrt %159 : vector<32x1xf32>
    %161 = vector.broadcast %160 : vector<32x1xf32> to vector<32x32xf32>
    %162 = arith.mulf %157, %161 : vector<32x32xf32>
    %163 = vector.broadcast %143 : vector<1x32xf32> to vector<32x32xf32>
    %164 = arith.mulf %162, %163 : vector<32x32xf32>
    %165 = vector.broadcast %144 : vector<1x32xf32> to vector<32x32xf32>
    %166 = arith.addf %164, %165 : vector<32x32xf32>
    %c0_35 = arith.constant 0 : index
    %c0_36 = arith.constant 0 : index
    %167 = vector.load %arg3[%c0_35, %c0_36] : memref<32x32xf32, #tpu.memory_space<vmem>>, vector<32x32xf32>
    tpu.vector_store %arg3[%c0_35, %c0_36], %166 {strides = array<i32>} : memref<32x32xf32, #tpu.memory_space<vmem>>, vector<32x32xf32>,
    return
  }
}

</mosaic_0001>

<llo_original>
// kernel: transformer_block.1
$region0: #{transformer_block.1}
  #allocation0 [shape = 'u32[]', space=smem, size = 0x4, offset = 0x4, fixed_abs, tag = 'smem constant byte address 0x4 - core index']
  #allocation1 [shape = 'u32[144,128]{1,0:T(1,128)}', space=vmem, size = 0x12000, scoped, tag = 'internal scratch']
  %s0 = inlined_call_operand.vmem [shape: f32[32,32], index: 0, kind: input, shape index: {}]
  %s1 = inlined_call_operand.vmem [shape: f32[224,32], index: 1, kind: input, shape index: {}]
  %s2 = inlined_call_operand.vmem [shape: f32[13,32], index: 2, kind: input, shape index: {}]
  %s3 = inlined_call_operand.vmem [shape: f32[32,32], index: 3, kind: output, shape index: {}]
  %s4 = sld [smem:[#allocation0]]
  $region22: #{transformer_block.1} parent=0
    _
  %s6 = ssub.s32 1, %s4
  %s7 = scalar_select 0, %s6, %s4
  // Predicated region
  $region2: #{transformer_block.1} parent=0 // pred_check
    _
  $region3: #{transformer_block.1} parent=0 // pred_check_branch
    %9 = sbr.rel (0) target = $region5
  $region4: #{transformer_block.1} parent=0 // pred_region
    _
  $region5: #{transformer_block.1} parent=0 // pred_fallthru
    _
  // Predicated region
  $region6: #{transformer_block.1} parent=0 // pred_check
    _
  $region7: #{transformer_block.1} parent=0 // pred_check_branch
    %11 = sbr.rel (0) target = $region9
  $region8: #{transformer_block.1} parent=0 // pred_region
    _
  $region9: #{transformer_block.1} parent=0 // pred_fallthru
    _
  // Predicated region
  $region10: #{transformer_block.1} parent=0 // pred_check
    _
  $region11: #{transformer_block.1} parent=0 // pred_check_branch
    %13 = sbr.rel (0) target = $region13
  $region12: #{transformer_block.1} parent=0 // pred_region
    _
  $region13: #{transformer_block.1} parent=0 // pred_fallthru
    _
  %v14 = vld [vmem:[%s0] sm:$0xff]
  %v15 = vld [vmem:[%s0 + $0x8] sm:$0xff]
  %v16 = vld [vmem:[%s0 + $0x10] sm:$0xff]
  %v17 = vld [vmem:[%s0 + $0x18] sm:$0xff]
  %v18 = vld [vmem:[%s1] sm:$0xff]
  %v19 = vld [vmem:[%s1 + $0x8] sm:$0xff]
  %v20 = vld [vmem:[%s1 + $0x10] sm:$0xff]
  %v21 = vld [vmem:[%s1 + $0x18] sm:$0xff]
  %v22 = vld [vmem:[%s1 + $0x20] sm:$0xff]
  %v23 = vld [vmem:[%s1 + $0x28] sm:$0xff]
  %v24 = vld [vmem:[%s1 + $0x30] sm:$0xff]
  %v25 = vld [vmem:[%s1 + $0x38] sm:$0xff]
  %v26 = vld [vmem:[%s1 + $0x40] sm:$0xff]
  %v27 = vld [vmem:[%s1 + $0x48] sm:$0xff]
  %v28 = vld [vmem:[%s1 + $0x50] sm:$0xff]
  %v29 = vld [vmem:[%s1 + $0x58] sm:$0xff]
  %v30 = vld [vmem:[%s1 + $0x60] sm:$0xff]
  %v31 = vld [vmem:[%s1 + $0x68] sm:$0xff]
  %v32 = vld [vmem:[%s1 + $0x70] sm:$0xff]
  %v33 = vld [vmem:[%s1 + $0x78] sm:$0xff]
  %v34 = vld [vmem:[%s1 + $0x80] sm:$0xff]
  %v35 = vld [vmem:[%s1 + $0x88] sm:$0xff]
  %v36 = vld [vmem:[%s1 + $0x90] sm:$0xff]
  %v37 = vld [vmem:[%s1 + $0x98] sm:$0xff]
  %v38 = vld [vmem:[%s1 + $0xa0] sm:$0xff]
  %v39 = vld [vmem:[%s1 + $0xa8] sm:$0xff]
  %v40 = vld [vmem:[%s1 + $0xb0] sm:$0xff]
  %v41 = vld [vmem:[%s1 + $0xb8] sm:$0xff]
  %v42 = vld [vmem:[%s1 + $0xc0] sm:$0xff]
  %v43 = vld [vmem:[%s1 + $0xc8] sm:$0xff]
  %v44 = vld [vmem:[%s1 + $0xd0] sm:$0xff]
  %v45 = vld [vmem:[%s1 + $0xd8] sm:$0xff]
  %v46 = vld [vmem:[%s2] sm:$0xff]
  %v47 = vld [vmem:[%s2 + $0x8] sm:$0x1f]
  %vm48 = vcmask 261120
  %v50 = vsel %vm48, %v18, 0
  %v53 = vsel %vm48, %v19, 0
  %v56 = vsel %vm48, %v20, 0
  %v59 = vsel %vm48, %v21, 0
  %61 = vmatprep.subr.mxu0 0.0
  %62 = vmatpush1.msra.mxu0 %v14
  %63 = vmatprep.subr.mxu0 0.0
  %64 = vmatpush1.msra.mxu0 %v15
  %65 = vmatprep.subr.mxu0 0.0
  %66 = vmatpush1.msra.mxu0 %v16
  %67 = vmatprep.subr.mxu0 0.0
  %68 = vmatpush1.msra.mxu0 %v17
  %69 = vmatprep.subr.mxu0 0.0
  %70 = vmatpush1.msra.mxu0 0.0
  %71 = vmatprep.subr.mxu0 0.0
  %72 = vmatpush1.msra.mxu0 0.0
  %73 = vmatprep.subr.mxu0 0.0
  %74 = vmatpush1.msra.mxu0 0.0
  %75 = vmatprep.subr.mxu0 0.0
  %76 = vmatpush1.msra.mxu0 0.0
  %77 = vmatprep.subr.mxu0 0.0
  %78 = vmatpush1.msra.mxu0 0.0
  %79 = vmatprep.subr.mxu0 0.0
  %80 = vmatpush1.msra.mxu0 0.0
  %81 = vmatprep.subr.mxu0 0.0
  %82 = vmatpush1.msra.mxu0 0.0
  %83 = vmatprep.subr.mxu0 0.0
  %84 = vmatpush1.msra.mxu0 0.0
  %85 = vmatprep.subr.mxu0 0.0
  %86 = vmatpush1.msra.mxu0 0.0
  %87 = vmatprep.subr.mxu0 0.0
  %88 = vmatpush1.msra.mxu0 0.0
  %89 = vmatprep.subr.mxu0 0.0
  %90 = vmatpush1.msra.mxu0 0.0
  %91 = vmatprep.subr.mxu0 0.0
  %92 = vmatpush1.msra.mxu0 0.0
  %93 = vmatprep.subr.mxu0 0.0
  %94 = vmatpush1.msra.mxu0 0.0
  %95 = vmatprep.subr.mxu0 0.0
  %96 = vmatpush1.msra.mxu0 0.0
  %97 = vmatprep.subr.mxu0 0.0
  %98 = vmatpush1.msra.mxu0 0.0
  %99 = vmatprep.subr.mxu0 0.0
  %100 = vmatpush1.msra.mxu0 0.0
  %101 = vmatprep.subr.mxu0 0.0
  %102 = vmatpush1.msra.mxu0 0.0
  %103 = vmatprep.subr.mxu0 0.0
  %104 = vmatpush1.msra.mxu0 0.0
  %105 = vmatprep.subr.mxu0 0.0
  %106 = vmatpush1.msra.mxu0 0.0
  %107 = vmatprep.subr.mxu0 0.0
  %108 = vmatpush1.msra.mxu0 0.0
  %109 = vmatprep.subr.mxu0 0.0
  %110 = vmatpush1.msra.mxu0 0.0
  %111 = vmatprep.subr.mxu0 0.0
  %112 = vmatpush1.msra.mxu0 0.0
  %113 = vmatprep.subr.mxu0 0.0
  %114 = vmatpush1.msra.mxu0 0.0
  %115 = vmatprep.subr.mxu0 0.0
  %116 = vmatpush1.msra.mxu0 0.0
  %117 = vmatprep.subr.mxu0 0.0
  %118 = vmatpush1.msra.mxu0 0.0
  %119 = vmatprep.subr.mxu0 0.0
  %120 = vmatpush1.msra.mxu0 0.0
  %121 = vmatprep.subr.mxu0 0.0
  %122 = vmatpush1.msra.mxu0 0.0
  %123 = vmatprep.subr.mxu0 0.0
  %124 = vmatpush1.msra.mxu0 0.0
  %125 = vmatprep.mubr.f32.mxu0 0.0
  %126 = vmatmul.mubr.f32.gmra.mrb[0].mxu0 %v50
  %v127 = vpop.f32.mrb[0].mxu0
  %v128 = vadd.f32 0.0, %v127
  %v129 = vpop.f32.mrb[0].mxu0
  %130 = vmatprep.mubr.f32.mxu0 0.0
  %131 = vmatmul.mubr.f32.gmra.mrb[0].mxu0 %v53
  %v132 = vpop.f32.mrb[0].mxu0
  %v133 = vadd.f32 0.0, %v132
  %v134 = vpop.f32.mrb[0].mxu0
  %135 = vmatprep.mubr.f32.mxu0 0.0
  %136 = vmatmul.mubr.f32.gmra.mrb[0].mxu0 %v56
  %v137 = vpop.f32.mrb[0].mxu0
  %v138 = vadd.f32 0.0, %v137
  %v139 = vpop.f32.mrb[0].mxu0
  %140 = vmatprep.mubr.f32.mxu0 0.0
  %141 = vmatmul.mubr.f32.gmra.mrb[0].mxu0 %v59
  %v142 = vpop.f32.mrb[0].mxu0
  %v143 = vadd.f32 0.0, %v142
  %v144 = vpop.f32.mrb[0].mxu0
  %145 = vdwg.mxu0
  %v146 = vsub.f32 %v14, %v128
  %v147 = vsub.f32 %v15, %v133
  %v148 = vsub.f32 %v16, %v138
  %v149 = vsub.f32 %v17, %v143
  %v150 = vlaneseq
  %v151 = vshrl.u32 %v150, 7
  %v152 = vsub.s32 4, %v151
  %v153 = vrot.slane %v46, %v152
  %v154 = vmul.f32 %v153, %v146
  %v155 = vmul.f32 %v153, %v147
  %v156 = vmul.f32 %v153, %v148
  %v157 = vmul.f32 %v153, %v149
  %v158 = vadd.f32 %v128, %v154
  %v159 = vadd.f32 %v133, %v155
  %v160 = vadd.f32 %v138, %v156
  %v161 = vadd.f32 %v143, %v157
  %v162 = vadd.f32 %v158, %v14
  %v163 = vadd.f32 %v159, %v15
  %v164 = vadd.f32 %v160, %v16
  %v165 = vadd.f32 %v161, %v17
  %v166 = vsel %vm48, %v162, 0.0
  %167 = vadd.xlane.f32.xlu0 %v166
  %v168 = vpop.xlane.xlu0 %167
  %v169 = vsel %vm48, %v163, 0.0
  %170 = vadd.xlane.f32.xlu0 %v169
  %v171 = vpop.xlane.xlu0 %170
  %v172 = vsel %vm48, %v164, 0.0
  %173 = vadd.xlane.f32.xlu0 %v172
  %v174 = vpop.xlane.xlu0 %173
  %v175 = vsel %vm48, %v165, 0.0
  %176 = vadd.xlane.f32.xlu0 %v175
  %v177 = vpop.xlane.xlu0 %176
  %v178 = vrcp.pop 32.0
  %v179 = vmul.f32 %v168, %v178
  %v180 = vmul.f32 %v171, %v178
  %v181 = vmul.f32 %v174, %v178
  %v182 = vmul.f32 %v177, %v178
  %v183 = vsub.f32 %v162, %v179
  %v184 = vsub.f32 %v163, %v180
  %v185 = vsub.f32 %v164, %v181
  %v186 = vsub.f32 %v165, %v182
  %v187 = vmul.f32 %v183, %v183
  %v188 = vmul.f32 %v184, %v184
  %v189 = vmul.f32 %v185, %v185
  %v190 = vmul.f32 %v186, %v186
  %v191 = vsel %vm48, %v187, 0.0
  %192 = vadd.xlane.f32.xlu0 %v191
  %v193 = vpop.xlane.xlu0 %192
  %v194 = vsel %vm48, %v188, 0.0
  %195 = vadd.xlane.f32.xlu0 %v194
  %v196 = vpop.xlane.xlu0 %195
  %v197 = vsel %vm48, %v189, 0.0
  %198 = vadd.xlane.f32.xlu0 %v197
  %v199 = vpop.xlane.xlu0 %198
  %v200 = vsel %vm48, %v190, 0.0
  %201 = vadd.xlane.f32.xlu0 %v200
  %v202 = vpop.xlane.xlu0 %201
  %v203 = vmul.f32 %v193, %v178
  %v204 = vmul.f32 %v196, %v178
  %v205 = vmul.f32 %v199, %v178
  %v206 = vmul.f32 %v202, %v178
  %v207 = vadd.f32 %v203, 1e-12
  %v208 = vadd.f32 %v204, 1e-12
  %v209 = vadd.f32 %v205, 1e-12
  %v210 = vadd.f32 %v206, 1e-12
  %v211 = vrsqrt.pop %v207
  %v212 = vrsqrt.pop %v208
  %v213 = vrsqrt.pop %v209
  %v214 = vrsqrt.pop %v210
  %v215 = vmul.f32 %v183, %v211
  %v216 = vmul.f32 %v184, %v212
  %v217 = vmul.f32 %v185, %v213
  %v218 = vmul.f32 %v186, %v214
  %v219 = vlaneseq
  %v220 = vshrl.u32 %v219, 7
  %v221 = vsub.s32 5, %v220
  %v222 = vrot.slane %v46, %v221
  %v223 = vmul.f32 %v215, %v222
  %v224 = vmul.f32 %v216, %v222
  %v225 = vmul.f32 %v217, %v222
  %v226 = vmul.f32 %v218, %v222
  %v227 = vlaneseq
  %v228 = vshrl.u32 %v227, 7
  %v229 = vsub.s32 6, %v228
  %v230 = vrot.slane %v46, %v229
  %v231 = vadd.f32 %v223, %v230
  %v232 = vadd.f32 %v224, %v230
  %v233 = vadd.f32 %v225, %v230
  %v234 = vadd.f32 %v226, %v230
  %v236 = vsel %vm48, %v14, 0
  %v239 = vsel %vm48, %v15, 0
  %v242 = vsel %vm48, %v16, 0
  %v245 = vsel %vm48, %v17, 0
  %v248 = vsel %vm48, %v22, 0
  %v251 = vsel %vm48, %v23, 0
  %v254 = vsel %vm48, %v24, 0
  %v257 = vsel %vm48, %v25, 0
  %v260 = vsel %vm48, %v26, 0
  %v263 = vsel %vm48, %v27, 0
  %v266 = vsel %vm48, %v28, 0
  %v269 = vsel %vm48, %v29, 0
  %v272 = vsel %vm48, %v30, 0
  %v275 = vsel %vm48, %v31, 0
  %v278 = vsel %vm48, %v32, 0
  %v281 = vsel %vm48, %v33, 0
  %283 = vmatprep.subr.mxu0 0.0
  %284 = vmatpush1.xpose.msra.mxu0 %v248
  %285 = vmatprep.subr.mxu0 0.0
  %286 = vmatpush1.xpose.msra.mxu0 %v251
  %287 = vmatprep.subr.mxu0 0.0
  %288 = vmatpush1.xpose.msra.mxu0 %v254
  %289 = vmatprep.subr.mxu0 0.0
  %290 = vmatpush1.xpose.msra.mxu0 %v257
  %291 = vmatprep.subr.mxu0 0.0
  %292 = vmatpush1.xpose.msra.mxu0 %v260
  %293 = vmatprep.subr.mxu0 0.0
  %294 = vmatpush1.xpose.msra.mxu0 %v263
  %295 = vmatprep.subr.mxu0 0.0
  %296 = vmatpush1.xpose.msra.mxu0 %v266
  %297 = vmatprep.subr.mxu0 0.0
  %298 = vmatpush1.xpose.msra.mxu0 %v269
  %299 = vmatprep.subr.mxu0 0.0
  %300 = vmatpush1.xpose.msra.mxu0 %v272
  %301 = vmatprep.subr.mxu0 0.0
  %302 = vmatpush1.xpose.msra.mxu0 %v275
  %303 = vmatprep.subr.mxu0 0.0
  %304 = vmatpush1.xpose.msra.mxu0 %v278
  %305 = vmatprep.subr.mxu0 0.0
  %306 = vmatpush1.xpose.msra.mxu0 %v281
  %307 = vmatprep.subr.mxu0 0.0
  %308 = vmatpush1.xpose.msra.mxu0 0.0
  %309 = vmatprep.subr.mxu0 0.0
  %310 = vmatpush1.xpose.msra.mxu0 0.0
  %311 = vmatprep.subr.mxu0 0.0
  %312 = vmatpush1.xpose.msra.mxu0 0.0
  %313 = vmatprep.subr.mxu0 0.0
  %314 = vmatpush1.xpose.msra.mxu0 0.0
  %315 = vmatprep.subr.mxu0 0.0
  %316 = vmatpush1.xpose.msra.mxu0 0.0
  %317 = vmatprep.subr.mxu0 0.0
  %318 = vmatpush1.xpose.msra.mxu0 0.0
  %319 = vmatprep.subr.mxu0 0.0
  %320 = vmatpush1.xpose.msra.mxu0 0.0
  %321 = vmatprep.subr.mxu0 0.0
  %322 = vmatpush1.xpose.msra.mxu0 0.0
  %323 = vmatprep.subr.mxu0 0.0
  %324 = vmatpush1.xpose.msra.mxu0 0.0
  %325 = vmatprep.subr.mxu0 0.0
  %326 = vmatpush1.xpose.msra.mxu0 0.0
  %327 = vmatprep.subr.mxu0 0.0
  %328 = vmatpush1.xpose.msra.mxu0 0.0
  %329 = vmatprep.subr.mxu0 0.0
  %330 = vmatpush1.xpose.msra.mxu0 0.0
  %331 = vmatprep.subr.mxu0 0.0
  %332 = vmatpush1.xpose.msra.mxu0 0.0
  %333 = vmatprep.subr.mxu0 0.0
  %334 = vmatpush1.xpose.msra.mxu0 0.0
  %335 = vmatprep.subr.mxu0 0.0
  %336 = vmatpush1.xpose.msra.mxu0 0.0
  %337 = vmatprep.subr.mxu0 0.0
  %338 = vmatpush1.xpose.msra.mxu0 0.0
  %339 = vmatprep.subr.mxu0 0.0
  %340 = vmatpush1.xpose.msra.mxu0 0.0
  %341 = vmatprep.subr.mxu0 0.0
  %342 = vmatpush1.xpose.msra.mxu0 0.0
  %343 = vmatprep.subr.mxu0 0.0
  %344 = vmatpush1.xpose.msra.mxu0 0.0
  %345 = vmatprep.subr.mxu0 0.0
  %346 = vmatpush1.xpose.msra.mxu0 0.0
  %347 = vmatprep.mubr.f32.mxu0 0.0
  %348 = vmatmul.mubr.f32.gmra.mrb[0].mxu0 %v236
  %v349 = vpop.f32.mrb[0].mxu0
  %v350 = vadd.f32 0.0, %v349
  %v351 = vpop.f32.mrb[0].mxu0
  %352 = vmatprep.mubr.f32.mxu0 0.0
  %353 = vmatmul.mubr.f32.gmra.mrb[0].mxu0 %v239
  %v354 = vpop.f32.mrb[0].mxu0
  %v355 = vadd.f32 0.0, %v354
  %v356 = vpop.f32.mrb[0].mxu0
  %357 = vmatprep.mubr.f32.mxu0 0.0
  %358 = vmatmul.mubr.f32.gmra.mrb[0].mxu0 %v242
  %v359 = vpop.f32.mrb[0].mxu0
  %v360 = vadd.f32 0.0, %v359
  %v361 = vpop.f32.mrb[0].mxu0
  %362 = vmatprep.mubr.f32.mxu0 0.0
  %363 = vmatmul.mubr.f32.gmra.mrb[0].mxu0 %v245
  %v364 = vpop.f32.mrb[0].mxu0
  %v365 = vadd.f32 0.0, %v364
  %v366 = vpop.f32.mrb[0].mxu0
  %367 = vdwg.mxu0
  %v368 = vlaneseq
  %v369 = vshrl.u32 %v368, 7
  %v370 = vsub.s32 0, %v369
  %v371 = vrot.slane %v46, %v370
  %v372 = vadd.f32 %v350, %v371
  %v373 = vadd.f32 %v355, %v371
  %v374 = vadd.f32 %v360, %v371
  %v375 = vadd.f32 %v365, %v371
  %v376 = vlaneseq
  %v377 = vshrl.u32 %v376, 7
  %v378 = vsub.s32 1, %v377
  %v379 = vrot.slane %v46, %v378
  %381 = vrot.lane.b32.xlu0 %v379, 32
  %v382 = vpop.permute.xlu0 %381
  %v384 = vadd.f32 %v350, %v382
  %v385 = vadd.f32 %v355, %v382
  %v386 = vadd.f32 %v360, %v382
  %v387 = vadd.f32 %v365, %v382
  %v388 = vlaneseq
  %v389 = vshrl.u32 %v388, 7
  %v390 = vsub.s32 2, %v389
  %v391 = vrot.slane %v46, %v390
  %393 = vrot.lane.b32.xlu0 %v391, 64
  %v394 = vpop.permute.xlu0 %393
  %v396 = vadd.f32 %v350, %v394
  %v397 = vadd.f32 %v355, %v394
  %v398 = vadd.f32 %v360, %v394
  %v399 = vadd.f32 %v365, %v394
  %404 = vrot.lane.b32.xlu0 %v372, 120
  %v405 = vpop.permute.xlu0 %404
  %406 = vrot.lane.b32.xlu0 %v373, 120
  %v407 = vpop.permute.xlu0 %406
  %408 = vrot.lane.b32.xlu0 %v374, 120
  %v409 = vpop.permute.xlu0 %408
  %410 = vrot.lane.b32.xlu0 %v375, 120
  %v411 = vpop.permute.xlu0 %410
  %412 = vrot.lane.b32.xlu0 %v372, 112
  %v413 = vpop.permute.xlu0 %412
  %414 = vrot.lane.b32.xlu0 %v373, 112
  %v415 = vpop.permute.xlu0 %414
  %416 = vrot.lane.b32.xlu0 %v374, 112
  %v417 = vpop.permute.xlu0 %416
  %418 = vrot.lane.b32.xlu0 %v375, 112
  %v419 = vpop.permute.xlu0 %418
  %420 = vrot.lane.b32.xlu0 %v372, 104
  %v421 = vpop.permute.xlu0 %420
  %422 = vrot.lane.b32.xlu0 %v373, 104
  %v423 = vpop.permute.xlu0 %422
  %424 = vrot.lane.b32.xlu0 %v374, 104
  %v425 = vpop.permute.xlu0 %424
  %426 = vrot.lane.b32.xlu0 %v375, 104
  %v427 = vpop.permute.xlu0 %426
  %432 = vrot.lane.b32.xlu0 %v384, 120
  %v433 = vpop.permute.xlu0 %432
  %434 = vrot.lane.b32.xlu0 %v385, 120
  %v435 = vpop.permute.xlu0 %434
  %436 = vrot.lane.b32.xlu0 %v386, 120
  %v437 = vpop.permute.xlu0 %436
  %438 = vrot.lane.b32.xlu0 %v387, 120
  %v439 = vpop.permute.xlu0 %438
  %440 = vrot.lane.b32.xlu0 %v384, 112
  %v441 = vpop.permute.xlu0 %440
  %442 = vrot.lane.b32.xlu0 %v385, 112
  %v443 = vpop.permute.xlu0 %442
  %444 = vrot.lane.b32.xlu0 %v386, 112
  %v445 = vpop.permute.xlu0 %444
  %446 = vrot.lane.b32.xlu0 %v387, 112
  %v447 = vpop.permute.xlu0 %446
  %448 = vrot.lane.b32.xlu0 %v384, 104
  %v449 = vpop.permute.xlu0 %448
  %450 = vrot.lane.b32.xlu0 %v385, 104
  %v451 = vpop.permute.xlu0 %450
  %452 = vrot.lane.b32.xlu0 %v386, 104
  %v453 = vpop.permute.xlu0 %452
  %454 = vrot.lane.b32.xlu0 %v387, 104
  %v455 = vpop.permute.xlu0 %454
  %460 = vrot.lane.b32.xlu0 %v396, 120
  %v461 = vpop.permute.xlu0 %460
  %462 = vrot.lane.b32.xlu0 %v397, 120
  %v463 = vpop.permute.xlu0 %462
  %464 = vrot.lane.b32.xlu0 %v398, 120
  %v465 = vpop.permute.xlu0 %464
  %466 = vrot.lane.b32.xlu0 %v399, 120
  %v467 = vpop.permute.xlu0 %466
  %468 = vrot.lane.b32.xlu0 %v396, 112
  %v469 = vpop.permute.xlu0 %468
  %470 = vrot.lane.b32.xlu0 %v397, 112
  %v471 = vpop.permute.xlu0 %470
  %472 = vrot.lane.b32.xlu0 %v398, 112
  %v473 = vpop.permute.xlu0 %472
  %474 = vrot.lane.b32.xlu0 %v399, 112
  %v475 = vpop.permute.xlu0 %474
  %476 = vrot.lane.b32.xlu0 %v396, 104
  %v477 = vpop.permute.xlu0 %476
  %478 = vrot.lane.b32.xlu0 %v397, 104
  %v479 = vpop.permute.xlu0 %478
  %480 = vrot.lane.b32.xlu0 %v398, 104
  %v481 = vpop.permute.xlu0 %480
  %482 = vrot.lane.b32.xlu0 %v399, 104
  %v483 = vpop.permute.xlu0 %482
  %484 = vrot.lane.b32.xlu0 %v384, 96
  %v485 = vpop.permute.xlu0 %484
  %vm486 = vcmask 64512
  %v487 = vsel %vm486, %v372, 0
  %v489 = vsel %vm486, %v485, 0
  %491 = vmatprep.subr.mxu0 0.0
  %492 = vmatpush1.xpose.msra.mxu0 %v489
  %493 = vmatprep.subr.mxu0 0.0
  %494 = vmatpush1.xpose.msra.mxu0 0.0
  %495 = vmatprep.subr.mxu0 0.0
  %496 = vmatpush1.xpose.msra.mxu0 0.0
  %497 = vmatprep.subr.mxu0 0.0
  %498 = vmatpush1.xpose.msra.mxu0 0.0
  %499 = vmatprep.subr.mxu0 0.0
  %500 = vmatpush1.xpose.msra.mxu0 0.0
  %501 = vmatprep.subr.mxu0 0.0
  %502 = vmatpush1.xpose.msra.mxu0 0.0
  %503 = vmatprep.subr.mxu0 0.0
  %504 = vmatpush1.xpose.msra.mxu0 0.0
  %505 = vmatprep.subr.mxu0 0.0
  %506 = vmatpush1.xpose.msra.mxu0 0.0
  %507 = vmatprep.subr.mxu0 0.0
  %508 = vmatpush1.xpose.msra.mxu0 0.0
  %509 = vmatprep.subr.mxu0 0.0
  %510 = vmatpush1.xpose.msra.mxu0 0.0
  %511 = vmatprep.subr.mxu0 0.0
  %512 = vmatpush1.xpose.msra.mxu0 0.0
  %513 = vmatprep.subr.mxu0 0.0
  %514 = vmatpush1.xpose.msra.mxu0 0.0
  %515 = vmatprep.subr.mxu0 0.0
  %516 = vmatpush1.xpose.msra.mxu0 0.0
  %517 = vmatprep.subr.mxu0 0.0
  %518 = vmatpush1.xpose.msra.mxu0 0.0
  %519 = vmatprep.subr.mxu0 0.0
  %520 = vmatpush1.xpose.msra.mxu0 0.0
  %521 = vmatprep.subr.mxu0 0.0
  %522 = vmatpush1.xpose.msra.mxu0 0.0
  %523 = vmatprep.subr.mxu0 0.0
  %524 = vmatpush1.xpose.msra.mxu0 0.0
  %525 = vmatprep.subr.mxu0 0.0
  %526 = vmatpush1.xpose.msra.mxu0 0.0
  %527 = vmatprep.subr.mxu0 0.0
  %528 = vmatpush1.xpose.msra.mxu0 0.0
  %529 = vmatprep.subr.mxu0 0.0
  %530 = vmatpush1.xpose.msra.mxu0 0.0
  %531 = vmatprep.subr.mxu0 0.0
  %532 = vmatpush1.xpose.msra.mxu0 0.0
  %533 = vmatprep.subr.mxu0 0.0
  %534 = vmatpush1.xpose.msra.mxu0 0.0
  %535 = vmatprep.subr.mxu0 0.0
  %536 = vmatpush1.xpose.msra.mxu0 0.0
  %537 = vmatprep.subr.mxu0 0.0
  %538 = vmatpush1.xpose.msra.mxu0 0.0
  %539 = vmatprep.subr.mxu0 0.0
  %540 = vmatpush1.xpose.msra.mxu0 0.0
  %541 = vmatprep.subr.mxu0 0.0
  %542 = vmatpush1.xpose.msra.mxu0 0.0
  %543 = vmatprep.subr.mxu0 0.0
  %544 = vmatpush1.xpose.msra.mxu0 0.0
  %545 = vmatprep.subr.mxu0 0.0
  %546 = vmatpush1.xpose.msra.mxu0 0.0
  %547 = vmatprep.subr.mxu0 0.0
  %548 = vmatpush1.xpose.msra.mxu0 0.0
  %549 = vmatprep.subr.mxu0 0.0
  %550 = vmatpush1.xpose.msra.mxu0 0.0
  %551 = vmatprep.subr.mxu0 0.0
  %552 = vmatpush1.xpose.msra.mxu0 0.0
  %553 = vmatprep.subr.mxu0 0.0
  %554 = vmatpush1.xpose.msra.mxu0 0.0
  %555 = vmatprep.mubr.f32.mxu0 0.0
  %556 = vmatmul.mubr.f32.gmra.mrb[0].mxu0 %v487
  %v557 = vpop.f32.mrb[0].mxu0
  %v558 = vadd.f32 0.0, %v557
  %v559 = vpop.f32.mrb[0].mxu0
  %560 = vdwg.mxu0
  %561 = vrot.lane.b32.xlu0 %v385, 96
  %v562 = vpop.permute.xlu0 %561
  %v563 = vsel %vm486, %v373, 0
  %v565 = vsel %vm486, %v562, 0
  %567 = vmatprep.subr.mxu0 0.0
  %568 = vmatpush1.xpose.msra.mxu0 %v565
  %569 = vmatprep.subr.mxu0 0.0
  %570 = vmatpush1.xpose.msra.mxu0 0.0
  %571 = vmatprep.subr.mxu0 0.0
  %572 = vmatpush1.xpose.msra.mxu0 0.0
  %573 = vmatprep.subr.mxu0 0.0
  %574 = vmatpush1.xpose.msra.mxu0 0.0
  %575 = vmatprep.subr.mxu0 0.0
  %576 = vmatpush1.xpose.msra.mxu0 0.0
  %577 = vmatprep.subr.mxu0 0.0
  %578 = vmatpush1.xpose.msra.mxu0 0.0
  %579 = vmatprep.subr.mxu0 0.0
  %580 = vmatpush1.xpose.msra.mxu0 0.0
  %581 = vmatprep.subr.mxu0 0.0
  %582 = vmatpush1.xpose.msra.mxu0 0.0
  %583 = vmatprep.subr.mxu0 0.0
  %584 = vmatpush1.xpose.msra.mxu0 0.0
  %585 = vmatprep.subr.mxu0 0.0
  %586 = vmatpush1.xpose.msra.mxu0 0.0
  %587 = vmatprep.subr.mxu0 0.0
  %588 = vmatpush1.xpose.msra.mxu0 0.0
  %589 = vmatprep.subr.mxu0 0.0
  %590 = vmatpush1.xpose.msra.mxu0 0.0
  %591 = vmatprep.subr.mxu0 0.0
  %592 = vmatpush1.xpose.msra.mxu0 0.0
  %593 = vmatprep.subr.mxu0 0.0
  %594 = vmatpush1.xpose.msra.mxu0 0.0
  %595 = vmatprep.subr.mxu0 0.0
  %596 = vmatpush1.xpose.msra.mxu0 0.0
  %597 = vmatprep.subr.mxu0 0.0
  %598 = vmatpush1.xpose.msra.mxu0 0.0
  %599 = vmatprep.subr.mxu0 0.0
  %600 = vmatpush1.xpose.msra.mxu0 0.0
  %601 = vmatprep.subr.mxu0 0.0
  %602 = vmatpush1.xpose.msra.mxu0 0.0
  %603 = vmatprep.subr.mxu0 0.0
  %604 = vmatpush1.xpose.msra.mxu0 0.0
  %605 = vmatprep.subr.mxu0 0.0
  %606 = vmatpush1.xpose.msra.mxu0 0.0
  %607 = vmatprep.subr.mxu0 0.0
  %608 = vmatpush1.xpose.msra.mxu0 0.0
  %609 = vmatprep.subr.mxu0 0.0
  %610 = vmatpush1.xpose.msra.mxu0 0.0
  %611 = vmatprep.subr.mxu0 0.0
  %612 = vmatpush1.xpose.msra.mxu0 0.0
  %613 = vmatprep.subr.mxu0 0.0
  %614 = vmatpush1.xpose.msra.mxu0 0.0
  %615 = vmatprep.subr.mxu0 0.0
  %616 = vmatpush1.xpose.msra.mxu0 0.0
  %617 = vmatprep.subr.mxu0 0.0
  %618 = vmatpush1.xpose.msra.mxu0 0.0
  %619 = vmatprep.subr.mxu0 0.0
  %620 = vmatpush1.xpose.msra.mxu0 0.0
  %621 = vmatprep.subr.mxu0 0.0
  %622 = vmatpush1.xpose.msra.mxu0 0.0
  %623 = vmatprep.subr.mxu0 0.0
  %624 = vmatpush1.xpose.msra.mxu0 0.0
  %625 = vmatprep.subr.mxu0 0.0
  %626 = vmatpush1.xpose.msra.mxu0 0.0
  %627 = vmatprep.subr.mxu0 0.0
  %628 = vmatpush1.xpose.msra.mxu0 0.0
  %629 = vmatprep.subr.mxu0 0.0
  %630 = vmatpush1.xpose.msra.mxu0 0.0
  %631 = vmatprep.mubr.f32.mxu0 0.0
  %632 = vmatmul.mubr.f32.gmra.mrb[0].mxu0 %v563
  %v633 = vpop.f32.mrb[0].mxu0
  %v634 = vadd.f32 0.0, %v633
  %v635 = vpop.f32.mrb[0].mxu0
  %636 = vdwg.mxu0
  %637 = vrot.lane.b32.xlu0 %v386, 96
  %v638 = vpop.permute.xlu0 %637
  %v639 = vsel %vm486, %v374, 0
  %v641 = vsel %vm486, %v638, 0
  %643 = vmatprep.subr.mxu0 0.0
  %644 = vmatpush1.xpose.msra.mxu0 %v641
  %645 = vmatprep.subr.mxu0 0.0
  %646 = vmatpush1.xpose.msra.mxu0 0.0
  %647 = vmatprep.subr.mxu0 0.0
  %648 = vmatpush1.xpose.msra.mxu0 0.0
  %649 = vmatprep.subr.mxu0 0.0
  %650 = vmatpush1.xpose.msra.mxu0 0.0
  %651 = vmatprep.subr.mxu0 0.0
  %652 = vmatpush1.xpose.msra.mxu0 0.0
  %653 = vmatprep.subr.mxu0 0.0
  %654 = vmatpush1.xpose.msra.mxu0 0.0
  %655 = vmatprep.subr.mxu0 0.0
  %656 = vmatpush1.xpose.msra.mxu0 0.0
  %657 = vmatprep.subr.mxu0 0.0
  %658 = vmatpush1.xpose.msra.mxu0 0.0
  %659 = vmatprep.subr.mxu0 0.0
  %660 = vmatpush1.xpose.msra.mxu0 0.0
  %661 = vmatprep.subr.mxu0 0.0
  %662 = vmatpush1.xpose.msra.mxu0 0.0
  %663 = vmatprep.subr.mxu0 0.0
  %664 = vmatpush1.xpose.msra.mxu0 0.0
  %665 = vmatprep.subr.mxu0 0.0
  %666 = vmatpush1.xpose.msra.mxu0 0.0
  %667 = vmatprep.subr.mxu0 0.0
  %668 = vmatpush1.xpose.msra.mxu0 0.0
  %669 = vmatprep.subr.mxu0 0.0
  %670 = vmatpush1.xpose.msra.mxu0 0.0
  %671 = vmatprep.subr.mxu0 0.0
  %672 = vmatpush1.xpose.msra.mxu0 0.0
  %673 = vmatprep.subr.mxu0 0.0
  %674 = vmatpush1.xpose.msra.mxu0 0.0
  %675 = vmatprep.subr.mxu0 0.0
  %676 = vmatpush1.xpose.msra.mxu0 0.0
  %677 = vmatprep.subr.mxu0 0.0
  %678 = vmatpush1.xpose.msra.mxu0 0.0
  %679 = vmatprep.subr.mxu0 0.0
  %680 = vmatpush1.xpose.msra.mxu0 0.0
  %681 = vmatprep.subr.mxu0 0.0
  %682 = vmatpush1.xpose.msra.mxu0 0.0
  %683 = vmatprep.subr.mxu0 0.0
  %684 = vmatpush1.xpose.msra.mxu0 0.0
  %685 = vmatprep.subr.mxu0 0.0
  %686 = vmatpush1.xpose.msra.mxu0 0.0
  %687 = vmatprep.subr.mxu0 0.0
  %688 = vmatpush1.xpose.msra.mxu0 0.0
  %689 = vmatprep.subr.mxu0 0.0
  %690 = vmatpush1.xpose.msra.mxu0 0.0
  %691 = vmatprep.subr.mxu0 0.0
  %692 = vmatpush1.xpose.msra.mxu0 0.0
  %693 = vmatprep.subr.mxu0 0.0
  %694 = vmatpush1.xpose.msra.mxu0 0.0
  %695 = vmatprep.subr.mxu0 0.0
  %696 = vmatpush1.xpose.msra.mxu0 0.0
  %697 = vmatprep.subr.mxu0 0.0
  %698 = vmatpush1.xpose.msra.mxu0 0.0
  %699 = vmatprep.subr.mxu0 0.0
  %700 = vmatpush1.xpose.msra.mxu0 0.0
  %701 = vmatprep.subr.mxu0 0.0
  %702 = vmatpush1.xpose.msra.mxu0 0.0
  %703 = vmatprep.subr.mxu0 0.0
  %704 = vmatpush1.xpose.msra.mxu0 0.0
  %705 = vmatprep.subr.mxu0 0.0
  %706 = vmatpush1.xpose.msra.mxu0 0.0
  %707 = vmatprep.mubr.f32.mxu0 0.0
  %708 = vmatmul.mubr.f32.gmra.mrb[0].mxu0 %v639
  %v709 = vpop.f32.mrb[0].mxu0
  %v710 = vadd.f32 0.0, %v709
  %v711 = vpop.f32.mrb[0].mxu0
  %712 = vdwg.mxu0
  %713 = vrot.lane.b32.xlu0 %v387, 96
  %v714 = vpop.permute.xlu0 %713
  %v715 = vsel %vm486, %v375, 0
  %v717 = vsel %vm486, %v714, 0
  %719 = vmatprep.subr.mxu0 0.0
  %720 = vmatpush1.xpose.msra.mxu0 %v717
  %721 = vmatprep.subr.mxu0 0.0
  %722 = vmatpush1.xpose.msra.mxu0 0.0
  %723 = vmatprep.subr.mxu0 0.0
  %724 = vmatpush1.xpose.msra.mxu0 0.0
  %725 = vmatprep.subr.mxu0 0.0
  %726 = vmatpush1.xpose.msra.mxu0 0.0
  %727 = vmatprep.subr.mxu0 0.0
  %728 = vmatpush1.xpose.msra.mxu0 0.0
  %729 = vmatprep.subr.mxu0 0.0
  %730 = vmatpush1.xpose.msra.mxu0 0.0
  %731 = vmatprep.subr.mxu0 0.0
  %732 = vmatpush1.xpose.msra.mxu0 0.0
  %733 = vmatprep.subr.mxu0 0.0
  %734 = vmatpush1.xpose.msra.mxu0 0.0
  %735 = vmatprep.subr.mxu0 0.0
  %736 = vmatpush1.xpose.msra.mxu0 0.0
  %737 = vmatprep.subr.mxu0 0.0
  %738 = vmatpush1.xpose.msra.mxu0 0.0
  %739 = vmatprep.subr.mxu0 0.0
  %740 = vmatpush1.xpose.msra.mxu0 0.0
  %741 = vmatprep.subr.mxu0 0.0
  %742 = vmatpush1.xpose.msra.mxu0 0.0
  %743 = vmatprep.subr.mxu0 0.0
  %744 = vmatpush1.xpose.msra.mxu0 0.0
  %745 = vmatprep.subr.mxu0 0.0
  %746 = vmatpush1.xpose.msra.mxu0 0.0
  %747 = vmatprep.subr.mxu0 0.0
  %748 = vmatpush1.xpose.msra.mxu0 0.0
  %749 = vmatprep.subr.mxu0 0.0
  %750 = vmatpush1.xpose.msra.mxu0 0.0
  %751 = vmatprep.subr.mxu0 0.0
  %752 = vmatpush1.xpose.msra.mxu0 0.0
  %753 = vmatprep.subr.mxu0 0.0
  %754 = vmatpush1.xpose.msra.mxu0 0.0
  %755 = vmatprep.subr.mxu0 0.0
  %756 = vmatpush1.xpose.msra.mxu0 0.0
  %757 = vmatprep.subr.mxu0 0.0
  %758 = vmatpush1.xpose.msra.mxu0 0.0
  %759 = vmatprep.subr.mxu0 0.0
  %760 = vmatpush1.xpose.msra.mxu0 0.0
  %761 = vmatprep.subr.mxu0 0.0
  %762 = vmatpush1.xpose.msra.mxu0 0.0
  %763 = vmatprep.subr.mxu0 0.0
  %764 = vmatpush1.xpose.msra.mxu0 0.0
  %765 = vmatprep.subr.mxu0 0.0
  %766 = vmatpush1.xpose.msra.mxu0 0.0
  %767 = vmatprep.subr.mxu0 0.0
  %768 = vmatpush1.xpose.msra.mxu0 0.0
  %769 = vmatprep.subr.mxu0 0.0
  %770 = vmatpush1.xpose.msra.mxu0 0.0
  %771 = vmatprep.subr.mxu0 0.0
  %772 = vmatpush1.xpose.msra.mxu0 0.0
  %773 = vmatprep.subr.mxu0 0.0
  %774 = vmatpush1.xpose.msra.mxu0 0.0
  %775 = vmatprep.subr.mxu0 0.0
  %776 = vmatpush1.xpose.msra.mxu0 0.0
  %777 = vmatprep.subr.mxu0 0.0
  %778 = vmatpush1.xpose.msra.mxu0 0.0
  %779 = vmatprep.subr.mxu0 0.0
  %780 = vmatpush1.xpose.msra.mxu0 0.0
  %781 = vmatprep.subr.mxu0 0.0
  %782 = vmatpush1.xpose.msra.mxu0 0.0
  %783 = vmatprep.mubr.f32.mxu0 0.0
  %784 = vmatmul.mubr.f32.gmra.mrb[0].mxu0 %v715
  %v785 = vpop.f32.mrb[0].mxu0
  %v786 = vadd.f32 0.0, %v785
  %v787 = vpop.f32.mrb[0].mxu0
  %788 = vdwg.mxu0
  %789 = vrot.lane.b32.xlu0 %v433, 96
  %v790 = vpop.permute.xlu0 %789
  %v791 = vsel %vm486, %v405, 0
  %v793 = vsel %vm486, %v790, 0
  %795 = vmatprep.subr.mxu0 0.0
  %796 = vmatpush1.xpose.msra.mxu0 %v793
  %797 = vmatprep.subr.mxu0 0.0
  %798 = vmatpush1.xpose.msra.mxu0 0.0
  %799 = vmatprep.subr.mxu0 0.0
  %800 = vmatpush1.xpose.msra.mxu0 0.0
  %801 = vmatprep.subr.mxu0 0.0
  %802 = vmatpush1.xpose.msra.mxu0 0.0
  %803 = vmatprep.subr.mxu0 0.0
  %804 = vmatpush1.xpose.msra.mxu0 0.0
  %805 = vmatprep.subr.mxu0 0.0
  %806 = vmatpush1.xpose.msra.mxu0 0.0
  %807 = vmatprep.subr.mxu0 0.0
  %808 = vmatpush1.xpose.msra.mxu0 0.0
  %809 = vmatprep.subr.mxu0 0.0
  %810 = vmatpush1.xpose.msra.mxu0 0.0
  %811 = vmatprep.subr.mxu0 0.0
  %812 = vmatpush1.xpose.msra.mxu0 0.0
  %813 = vmatprep.subr.mxu0 0.0
  %814 = vmatpush1.xpose.msra.mxu0 0.0
  %815 = vmatprep.subr.mxu0 0.0
  %816 = vmatpush1.xpose.msra.mxu0 0.0
  %817 = vmatprep.subr.mxu0 0.0
  %818 = vmatpush1.xpose.msra.mxu0 0.0
  %819 = vmatprep.subr.mxu0 0.0
  %820 = vmatpush1.xpose.msra.mxu0 0.0
  %821 = vmatprep.subr.mxu0 0.0
  %822 = vmatpush1.xpose.msra.mxu0 0.0
  %823 = vmatprep.subr.mxu0 0.0
  %824 = vmatpush1.xpose.msra.mxu0 0.0
  %825 = vmatprep.subr.mxu0 0.0
  %826 = vmatpush1.xpose.msra.mxu0 0.0
  %827 = vmatprep.subr.mxu0 0.0
  %828 = vmatpush1.xpose.msra.mxu0 0.0
  %829 = vmatprep.subr.mxu0 0.0
  %830 = vmatpush1.xpose.msra.mxu0 0.0
  %831 = vmatprep.subr.mxu0 0.0
  %832 = vmatpush1.xpose.msra.mxu0 0.0
  %833 = vmatprep.subr.mxu0 0.0
  %834 = vmatpush1.xpose.msra.mxu0 0.0
  %835 = vmatprep.subr.mxu0 0.0
  %836 = vmatpush1.xpose.msra.mxu0 0.0
  %837 = vmatprep.subr.mxu0 0.0
  %838 = vmatpush1.xpose.msra.mxu0 0.0
  %839 = vmatprep.subr.mxu0 0.0
  %840 = vmatpush1.xpose.msra.mxu0 0.0
  %841 = vmatprep.subr.mxu0 0.0
  %842 = vmatpush1.xpose.msra.mxu0 0.0
  %843 = vmatprep.subr.mxu0 0.0
  %844 = vmatpush1.xpose.msra.mxu0 0.0
  %845 = vmatprep.subr.mxu0 0.0
  %846 = vmatpush1.xpose.msra.mxu0 0.0
  %847 = vmatprep.subr.mxu0 0.0
  %848 = vmatpush1.xpose.msra.mxu0 0.0
  %849 = vmatprep.subr.mxu0 0.0
  %850 = vmatpush1.xpose.msra.mxu0 0.0
  %851 = vmatprep.subr.mxu0 0.0
  %852 = vmatpush1.xpose.msra.mxu0 0.0
  %853 = vmatprep.subr.mxu0 0.0
  %854 = vmatpush1.xpose.msra.mxu0 0.0
  %855 = vmatprep.subr.mxu0 0.0
  %856 = vmatpush1.xpose.msra.mxu0 0.0
  %857 = vmatprep.subr.mxu0 0.0
  %858 = vmatpush1.xpose.msra.mxu0 0.0
  %859 = vmatprep.mubr.f32.mxu0 0.0
  %860 = vmatmul.mubr.f32.gmra.mrb[0].mxu0 %v791
  %v861 = vpop.f32.mrb[0].mxu0
  %v862 = vadd.f32 0.0, %v861
  %v863 = vpop.f32.mrb[0].mxu0
  %864 = vdwg.mxu0
  %865 = vrot.lane.b32.xlu0 %v435, 96
  %v866 = vpop.permute.xlu0 %865
  %v867 = vsel %vm486, %v407, 0
  %v869 = vsel %vm486, %v866, 0
  %871 = vmatprep.subr.mxu0 0.0
  %872 = vmatpush1.xpose.msra.mxu0 %v869
  %873 = vmatprep.subr.mxu0 0.0
  %874 = vmatpush1.xpose.msra.mxu0 0.0
  %875 = vmatprep.subr.mxu0 0.0
  %876 = vmatpush1.xpose.msra.mxu0 0.0
  %877 = vmatprep.subr.mxu0 0.0
  %878 = vmatpush1.xpose.msra.mxu0 0.0
  %879 = vmatprep.subr.mxu0 0.0
  %880 = vmatpush1.xpose.msra.mxu0 0.0
  %881 = vmatprep.subr.mxu0 0.0
  %882 = vmatpush1.xpose.msra.mxu0 0.0
  %883 = vmatprep.subr.mxu0 0.0
  %884 = vmatpush1.xpose.msra.mxu0 0.0
  %885 = vmatprep.subr.mxu0 0.0
  %886 = vmatpush1.xpose.msra.mxu0 0.0
  %887 = vmatprep.subr.mxu0 0.0
  %888 = vmatpush1.xpose.msra.mxu0 0.0
  %889 = vmatprep.subr.mxu0 0.0
  %890 = vmatpush1.xpose.msra.mxu0 0.0
  %891 = vmatprep.subr.mxu0 0.0
  %892 = vmatpush1.xpose.msra.mxu0 0.0
  %893 = vmatprep.subr.mxu0 0.0
  %894 = vmatpush1.xpose.msra.mxu0 0.0
  %895 = vmatprep.subr.mxu0 0.0
  %896 = vmatpush1.xpose.msra.mxu0 0.0
  %897 = vmatprep.subr.mxu0 0.0
  %898 = vmatpush1.xpose.msra.mxu0 0.0
  %899 = vmatprep.subr.mxu0 0.0
  %900 = vmatpush1.xpose.msra.mxu0 0.0
  %901 = vmatprep.subr.mxu0 0.0
  %902 = vmatpush1.xpose.msra.mxu0 0.0
  %903 = vmatprep.subr.mxu0 0.0
  %904 = vmatpush1.xpose.msra.mxu0 0.0
  %905 = vmatprep.subr.mxu0 0.0
  %906 = vmatpush1.xpose.msra.mxu0 0.0
  %907 = vmatprep.subr.mxu0 0.0
  %908 = vmatpush1.xpose.msra.mxu0 0.0
  %909 = vmatprep.subr.mxu0 0.0
  %910 = vmatpush1.xpose.msra.mxu0 0.0
  %911 = vmatprep.subr.mxu0 0.0
  %912 = vmatpush1.xpose.msra.mxu0 0.0
  %913 = vmatprep.subr.mxu0 0.0
  %914 = vmatpush1.xpose.msra.mxu0 0.0
  %915 = vmatprep.subr.mxu0 0.0
  %916 = vmatpush1.xpose.msra.mxu0 0.0
  %917 = vmatprep.subr.mxu0 0.0
  %918 = vmatpush1.xpose.msra.mxu0 0.0
  %919 = vmatprep.subr.mxu0 0.0
  %920 = vmatpush1.xpose.msra.mxu0 0.0
  %921 = vmatprep.subr.mxu0 0.0
  %922 = vmatpush1.xpose.msra.mxu0 0.0
  %923 = vmatprep.subr.mxu0 0.0
  %924 = vmatpush1.xpose.msra.mxu0 0.0
  %925 = vmatprep.subr.mxu0 0.0
  %926 = vmatpush1.xpose.msra.mxu0 0.0
  %927 = vmatprep.subr.mxu0 0.0
  %928 = vmatpush1.xpose.msra.mxu0 0.0
  %929 = vmatprep.subr.mxu0 0.0
  %930 = vmatpush1.xpose.msra.mxu0 0.0
  %931 = vmatprep.subr.mxu0 0.0
  %932 = vmatpush1.xpose.msra.mxu0 0.0
  %933 = vmatprep.subr.mxu0 0.0
  %934 = vmatpush1.xpose.msra.mxu0 0.0
  %935 = vmatprep.mubr.f32.mxu0 0.0
  %936 = vmatmul.mubr.f32.gmra.mrb[0].mxu0 %v867
  %v937 = vpop.f32.mrb[0].mxu0
  %v938 = vadd.f32 0.0, %v937
  %v939 = vpop.f32.mrb[0].mxu0
  %940 = vdwg.mxu0
  %941 = vrot.lane.b32.xlu0 %v437, 96
  %v942 = vpop.permute.xlu0 %941
  %v943 = vsel %vm486, %v409, 0
  %v945 = vsel %vm486, %v942, 0
  %947 = vmatprep.subr.mxu0 0.0
  %948 = vmatpush1.xpose.msra.mxu0 %v945
  %949 = vmatprep.subr.mxu0 0.0
  %950 = vmatpush1.xpose.msra.mxu0 0.0
  %951 = vmatprep.subr.mxu0 0.0
  %952 = vmatpush1.xpose.msra.mxu0 0.0
  %953 = vmatprep.subr.mxu0 0.0
  %954 = vmatpush1.xpose.msra.mxu0 0.0
  %955 = vmatprep.subr.mxu0 0.0
  %956 = vmatpush1.xpose.msra.mxu0 0.0
  %957 = vmatprep.subr.mxu0 0.0
  %958 = vmatpush1.xpose.msra.mxu0 0.0
  %959 = vmatprep.subr.mxu0 0.0
  %960 = vmatpush1.xpose.msra.mxu0 0.0
  %961 = vmatprep.subr.mxu0 0.0
  %962 = vmatpush1.xpose.msra.mxu0 0.0
  %963 = vmatprep.subr.mxu0 0.0
  %964 = vmatpush1.xpose.msra.mxu0 0.0
  %965 = vmatprep.subr.mxu0 0.0
  %966 = vmatpush1.xpose.msra.mxu0 0.0
  %967 = vmatprep.subr.mxu0 0.0
  %968 = vmatpush1.xpose.msra.mxu0 0.0
  %969 = vmatprep.subr.mxu0 0.0
  %970 = vmatpush1.xpose.msra.mxu0 0.0
  %971 = vmatprep.subr.mxu0 0.0
  %972 = vmatpush1.xpose.msra.mxu0 0.0
  %973 = vmatprep.subr.mxu0 0.0
  %974 = vmatpush1.xpose.msra.mxu0 0.0
  %975 = vmatprep.subr.mxu0 0.0
  %976 = vmatpush1.xpose.msra.mxu0 0.0
  %977 = vmatprep.subr.mxu0 0.0
  %978 = vmatpush1.xpose.msra.mxu0 0.0
  %979 = vmatprep.subr.mxu0 0.0
  %980 = vmatpush1.xpose.msra.mxu0 0.0
  %981 = vmatprep.subr.mxu0 0.0
  %982 = vmatpush1.xpose.msra.mxu0 0.0
  %983 = vmatprep.subr.mxu0 0.0
  %984 = vmatpush1.xpose.msra.mxu0 0.0
  %985 = vmatprep.subr.mxu0 0.0
  %986 = vmatpush1.xpose.msra.mxu0 0.0
  %987 = vmatprep.subr.mxu0 0.0
  %988 = vmatpush1.xpose.msra.mxu0 0.0
  %989 = vmatprep.subr.mxu0 0.0
  %990 = vmatpush1.xpose.msra.mxu0 0.0
  %991 = vmatprep.subr.mxu0 0.0
  %992 = vmatpush1.xpose.msra.mxu0 0.0
  %993 = vmatprep.subr.mxu0 0.0
  %994 = vmatpush1.xpose.msra.mxu0 0.0
  %995 = vmatprep.subr.mxu0 0.0
  %996 = vmatpush1.xpose.msra.mxu0 0.0
  %997 = vmatprep.subr.mxu0 0.0
  %998 = vmatpush1.xpose.msra.mxu0 0.0
  %999 = vmatprep.subr.mxu0 0.0
  %1000 = vmatpush1.xpose.msra.mxu0 0.0
  %1001 = vmatprep.subr.mxu0 0.0
  %1002 = vmatpush1.xpose.msra.mxu0 0.0
  %1003 = vmatprep.subr.mxu0 0.0
  %1004 = vmatpush1.xpose.msra.mxu0 0.0
  %1005 = vmatprep.subr.mxu0 0.0
  %1006 = vmatpush1.xpose.msra.mxu0 0.0
  %1007 = vmatprep.subr.mxu0 0.0
  %1008 = vmatpush1.xpose.msra.mxu0 0.0
  %1009 = vmatprep.subr.mxu0 0.0
  %1010 = vmatpush1.xpose.msra.mxu0 0.0
  %1011 = vmatprep.mubr.f32.mxu0 0.0
  %1012 = vmatmul.mubr.f32.gmra.mrb[0].mxu0 %v943
  %v1013 = vpop.f32.mrb[0].mxu0
  %v1014 = vadd.f32 0.0, %v1013
  %v1015 = vpop.f32.mrb[0].mxu0
  %1016 = vdwg.mxu0
  %1017 = vrot.lane.b32.xlu0 %v439, 96
  %v1018 = vpop.permute.xlu0 %1017
  %v1019 = vsel %vm486, %v411, 0
  %v1021 = vsel %vm486, %v1018, 0
  %1023 = vmatprep.subr.mxu0 0.0
  %1024 = vmatpush1.xpose.msra.mxu0 %v1021
  %1025 = vmatprep.subr.mxu0 0.0
  %1026 = vmatpush1.xpose.msra.mxu0 0.0
  %1027 = vmatprep.subr.mxu0 0.0
  %1028 = vmatpush1.xpose.msra.mxu0 0.0
  %1029 = vmatprep.subr.mxu0 0.0
  %1030 = vmatpush1.xpose.msra.mxu0 0.0
  %1031 = vmatprep.subr.mxu0 0.0
  %1032 = vmatpush1.xpose.msra.mxu0 0.0
  %1033 = vmatprep.subr.mxu0 0.0
  %1034 = vmatpush1.xpose.msra.mxu0 0.0
  %1035 = vmatprep.subr.mxu0 0.0
  %1036 = vmatpush1.xpose.msra.mxu0 0.0
  %1037 = vmatprep.subr.mxu0 0.0
  %1038 = vmatpush1.xpose.msra.mxu0 0.0
  %1039 = vmatprep.subr.mxu0 0.0
  %1040 = vmatpush1.xpose.msra.mxu0 0.0
  %1041 = vmatprep.subr.mxu0 0.0
  %1042 = vmatpush1.xpose.msra.mxu0 0.0
  %1043 = vmatprep.subr.mxu0 0.0
  %1044 = vmatpush1.xpose.msra.mxu0 0.0
  %1045 = vmatprep.subr.mxu0 0.0
  %1046 = vmatpush1.xpose.msra.mxu0 0.0
  %1047 = vmatprep.subr.mxu0 0.0
  %1048 = vmatpush1.xpose.msra.mxu0 0.0
  %1049 = vmatprep.subr.mxu0 0.0
  %1050 = vmatpush1.xpose.msra.mxu0 0.0
  %1051 = vmatprep.subr.mxu0 0.0
  %1052 = vmatpush1.xpose.msra.mxu0 0.0
  %1053 = vmatprep.subr.mxu0 0.0
  %1054 = vmatpush1.xpose.msra.mxu0 0.0
  %1055 = vmatprep.subr.mxu0 0.0
  %1056 = vmatpush1.xpose.msra.mxu0 0.0
  %1057 = vmatprep.subr.mxu0 0.0
  %1058 = vmatpush1.xpose.msra.mxu0 0.0
  %1059 = vmatprep.subr.mxu0 0.0
  %1060 = vmatpush1.xpose.msra.mxu0 0.0
  %1061 = vmatprep.subr.mxu0 0.0
  %1062 = vmatpush1.xpose.msra.mxu0 0.0
  %1063 = vmatprep.subr.mxu0 0.0
  %1064 = vmatpush1.xpose.msra.mxu0 0.0
  %1065 = vmatprep.subr.mxu0 0.0
  %1066 = vmatpush1.xpose.msra.mxu0 0.0
  %1067 = vmatprep.subr.mxu0 0.0
  %1068 = vmatpush1.xpose.msra.mxu0 0.0
  %1069 = vmatprep.subr.mxu0 0.0
  %1070 = vmatpush1.xpose.msra.mxu0 0.0
  %1071 = vmatprep.subr.mxu0 0.0
  %1072 = vmatpush1.xpose.msra.mxu0 0.0
  %1073 = vmatprep.subr.mxu0 0.0
  %1074 = vmatpush1.xpose.msra.mxu0 0.0
  %1075 = vmatprep.subr.mxu0 0.0
  %1076 = vmatpush1.xpose.msra.mxu0 0.0
  %1077 = vmatprep.subr.mxu0 0.0
  %1078 = vmatpush1.xpose.msra.mxu0 0.0
  %1079 = vmatprep.subr.mxu0 0.0
  %1080 = vmatpush1.xpose.msra.mxu0 0.0
  %1081 = vmatprep.subr.mxu0 0.0
  %1082 = vmatpush1.xpose.msra.mxu0 0.0
  %1083 = vmatprep.subr.mxu0 0.0
  %1084 = vmatpush1.xpose.msra.mxu0 0.0
  %1085 = vmatprep.subr.mxu0 0.0
  %1086 = vmatpush1.xpose.msra.mxu0 0.0
  %1087 = vmatprep.mubr.f32.mxu0 0.0
  %1088 = vmatmul.mubr.f32.gmra.mrb[0].mxu0 %v1019
  %v1089 = vpop.f32.mrb[0].mxu0
  %v1090 = vadd.f32 0.0, %v1089
  %v1091 = vpop.f32.mrb[0].mxu0
  %1092 = vdwg.mxu0
  %1093 = vrot.lane.b32.xlu0 %v441, 96
  %v1094 = vpop.permute.xlu0 %1093
  %v1095 = vsel %vm486, %v413, 0
  %v1097 = vsel %vm486, %v1094, 0
  %1099 = vmatprep.subr.mxu0 0.0
  %1100 = vmatpush1.xpose.msra.mxu0 %v1097
  %1101 = vmatprep.subr.mxu0 0.0
  %1102 = vmatpush1.xpose.msra.mxu0 0.0
  %1103 = vmatprep.subr.mxu0 0.0
  %1104 = vmatpush1.xpose.msra.mxu0 0.0
  %1105 = vmatprep.subr.mxu0 0.0
  %1106 = vmatpush1.xpose.msra.mxu0 0.0
  %1107 = vmatprep.subr.mxu0 0.0
  %1108 = vmatpush1.xpose.msra.mxu0 0.0
  %1109 = vmatprep.subr.mxu0 0.0
  %1110 = vmatpush1.xpose.msra.mxu0 0.0
  %1111 = vmatprep.subr.mxu0 0.0
  %1112 = vmatpush1.xpose.msra.mxu0 0.0
  %1113 = vmatprep.subr.mxu0 0.0
  %1114 = vmatpush1.xpose.msra.mxu0 0.0
  %1115 = vmatprep.subr.mxu0 0.0
  %1116 = vmatpush1.xpose.msra.mxu0 0.0
  %1117 = vmatprep.subr.mxu0 0.0
  %1118 = vmatpush1.xpose.msra.mxu0 0.0
  %1119 = vmatprep.subr.mxu0 0.0
  %1120 = vmatpush1.xpose.msra.mxu0 0.0
  %1121 = vmatprep.subr.mxu0 0.0
  %1122 = vmatpush1.xpose.msra.mxu0 0.0
  %1123 = vmatprep.subr.mxu0 0.0
  %1124 = vmatpush1.xpose.msra.mxu0 0.0
  %1125 = vmatprep.subr.mxu0 0.0
  %1126 = vmatpush1.xpose.msra.mxu0 0.0
  %1127 = vmatprep.subr.mxu0 0.0
  %1128 = vmatpush1.xpose.msra.mxu0 0.0
  %1129 = vmatprep.subr.mxu0 0.0
  %1130 = vmatpush1.xpose.msra.mxu0 0.0
  %1131 = vmatprep.subr.mxu0 0.0
  %1132 = vmatpush1.xpose.msra.mxu0 0.0
  %1133 = vmatprep.subr.mxu0 0.0
  %1134 = vmatpush1.xpose.msra.mxu0 0.0
  %1135 = vmatprep.subr.mxu0 0.0
  %1136 = vmatpush1.xpose.msra.mxu0 0.0
  %1137 = vmatprep.subr.mxu0 0.0
  %1138 = vmatpush1.xpose.msra.mxu0 0.0
  %1139 = vmatprep.subr.mxu0 0.0
  %1140 = vmatpush1.xpose.msra.mxu0 0.0
  %1141 = vmatprep.subr.mxu0 0.0
  %1142 = vmatpush1.xpose.msra.mxu0 0.0
  %1143 = vmatprep.subr.mxu0 0.0
  %1144 = vmatpush1.xpose.msra.mxu0 0.0
  %1145 = vmatprep.subr.mxu0 0.0
  %1146 = vmatpush1.xpose.msra.mxu0 0.0
  %1147 = vmatprep.subr.mxu0 0.0
  %1148 = vmatpush1.xpose.msra.mxu0 0.0
  %1149 = vmatprep.subr.mxu0 0.0
  %1150 = vmatpush1.xpose.msra.mxu0 0.0
  %1151 = vmatprep.subr.mxu0 0.0
  %1152 = vmatpush1.xpose.msra.mxu0 0.0
  %1153 = vmatprep.subr.mxu0 0.0
  %1154 = vmatpush1.xpose.msra.mxu0 0.0
  %1155 = vmatprep.subr.mxu0 0.0
  %1156 = vmatpush1.xpose.msra.mxu0 0.0
  %1157 = vmatprep.subr.mxu0 0.0
  %1158 = vmatpush1.xpose.msra.mxu0 0.0
  %1159 = vmatprep.subr.mxu0 0.0
  %1160 = vmatpush1.xpose.msra.mxu0 0.0
  %1161 = vmatprep.subr.mxu0 0.0
  %1162 = vmatpush1.xpose.msra.mxu0 0.0
  %1163 = vmatprep.mubr.f32.mxu0 0.0
  %1164 = vmatmul.mubr.f32.gmra.mrb[0].mxu0 %v1095
  %v1165 = vpop.f32.mrb[0].mxu0
  %v1166 = vadd.f32 0.0, %v1165
  %v1167 = vpop.f32.mrb[0].mxu0
  %1168 = vdwg.mxu0
  %1169 = vrot.lane.b32.xlu0 %v443, 96
  %v1170 = vpop.permute.xlu0 %1169
  %v1171 = vsel %vm486, %v415, 0
  %v1173 = vsel %vm486, %v1170, 0
  %1175 = vmatprep.subr.mxu0 0.0
  %1176 = vmatpush1.xpose.msra.mxu0 %v1173
  %1177 = vmatprep.subr.mxu0 0.0
  %1178 = vmatpush1.xpose.msra.mxu0 0.0
  %1179 = vmatprep.subr.mxu0 0.0
  %1180 = vmatpush1.xpose.msra.mxu0 0.0
  %1181 = vmatprep.subr.mxu0 0.0
  %1182 = vmatpush1.xpose.msra.mxu0 0.0
  %1183 = vmatprep.subr.mxu0 0.0
  %1184 = vmatpush1.xpose.msra.mxu0 0.0
  %1185 = vmatprep.subr.mxu0 0.0
  %1186 = vmatpush1.xpose.msra.mxu0 0.0
  %1187 = vmatprep.subr.mxu0 0.0
  %1188 = vmatpush1.xpose.msra.mxu0 0.0
  %1189 = vmatprep.subr.mxu0 0.0
  %1190 = vmatpush1.xpose.msra.mxu0 0.0
  %1191 = vmatprep.subr.mxu0 0.0
  %1192 = vmatpush1.xpose.msra.mxu0 0.0
  %1193 = vmatprep.subr.mxu0 0.0
  %1194 = vmatpush1.xpose.msra.mxu0 0.0
  %1195 = vmatprep.subr.mxu0 0.0
  %1196 = vmatpush1.xpose.msra.mxu0 0.0
  %1197 = vmatprep.subr.mxu0 0.0
  %1198 = vmatpush1.xpose.msra.mxu0 0.0
  %1199 = vmatprep.subr.mxu0 0.0
  %1200 = vmatpush1.xpose.msra.mxu0 0.0
  %1201 = vmatprep.subr.mxu0 0.0
  %1202 = vmatpush1.xpose.msra.mxu0 0.0
  %1203 = vmatprep.subr.mxu0 0.0
  %1204 = vmatpush1.xpose.msra.mxu0 0.0
  %1205 = vmatprep.subr.mxu0 0.0
  %1206 = vmatpush1.xpose.msra.mxu0 0.0
  %1207 = vmatprep.subr.mxu0 0.0
  %1208 = vmatpush1.xpose.msra.mxu0 0.0
  %1209 = vmatprep.subr.mxu0 0.0
  %1210 = vmatpush1.xpose.msra.mxu0 0.0
  %1211 = vmatprep.subr.mxu0 0.0
  %1212 = vmatpush1.xpose.msra.mxu0 0.0
  %1213 = vmatprep.subr.mxu0 0.0
  %1214 = vmatpush1.xpose.msra.mxu0 0.0
  %1215 = vmatprep.subr.mxu0 0.0
  %1216 = vmatpush1.xpose.msra.mxu0 0.0
  %1217 = vmatprep.subr.mxu0 0.0
  %1218 = vmatpush1.xpose.msra.mxu0 0.0
  %1219 = vmatprep.subr.mxu0 0.0
  %1220 = vmatpush1.xpose.msra.mxu0 0.0
  %1221 = vmatprep.subr.mxu0 0.0
  %1222 = vmatpush1.xpose.msra.mxu0 0.0
  %1223 = vmatprep.subr.mxu0 0.0
  %1224 = vmatpush1.xpose.msra.mxu0 0.0
  %1225 = vmatprep.subr.mxu0 0.0
  %1226 = vmatpush1.xpose.msra.mxu0 0.0
  %1227 = vmatprep.subr.mxu0 0.0
  %1228 = vmatpush1.xpose.msra.mxu0 0.0
  %1229 = vmatprep.subr.mxu0 0.0
  %1230 = vmatpush1.xpose.msra.mxu0 0.0
  %1231 = vmatprep.subr.mxu0 0.0
  %1232 = vmatpush1.xpose.msra.mxu0 0.0
  %1233 = vmatprep.subr.mxu0 0.0
  %1234 = vmatpush1.xpose.msra.mxu0 0.0
  %1235 = vmatprep.subr.mxu0 0.0
  %1236 = vmatpush1.xpose.msra.mxu0 0.0
  %1237 = vmatprep.subr.mxu0 0.0
  %1238 = vmatpush1.xpose.msra.mxu0 0.0
  %1239 = vmatprep.mubr.f32.mxu0 0.0
  %1240 = vmatmul.mubr.f32.gmra.mrb[0].mxu0 %v1171
  %v1241 = vpop.f32.mrb[0].mxu0
  %v1242 = vadd.f32 0.0, %v1241
  %v1243 = vpop.f32.mrb[0].mxu0
  %1244 = vdwg.mxu0
  %1245 = vrot.lane.b32.xlu0 %v445, 96
  %v1246 = vpop.permute.xlu0 %1245
  %v1247 = vsel %vm486, %v417, 0
  %v1249 = vsel %vm486, %v1246, 0
  %1251 = vmatprep.subr.mxu0 0.0
  %1252 = vmatpush1.xpose.msra.mxu0 %v1249
  %1253 = vmatprep.subr.mxu0 0.0
  %1254 = vmatpush1.xpose.msra.mxu0 0.0
  %1255 = vmatprep.subr.mxu0 0.0
  %1256 = vmatpush1.xpose.msra.mxu0 0.0
  %1257 = vmatprep.subr.mxu0 0.0
  %1258 = vmatpush1.xpose.msra.mxu0 0.0
  %1259 = vmatprep.subr.mxu0 0.0
  %1260 = vmatpush1.xpose.msra.mxu0 0.0
  %1261 = vmatprep.subr.mxu0 0.0
  %1262 = vmatpush1.xpose.msra.mxu0 0.0
  %1263 = vmatprep.subr.mxu0 0.0
  %1264 = vmatpush1.xpose.msra.mxu0 0.0
  %1265 = vmatprep.subr.mxu0 0.0
  %1266 = vmatpush1.xpose.msra.mxu0 0.0
  %1267 = vmatprep.subr.mxu0 0.0
  %1268 = vmatpush1.xpose.msra.mxu0 0.0
  %1269 = vmatprep.subr.mxu0 0.0
  %1270 = vmatpush1.xpose.msra.mxu0 0.0
  %1271 = vmatprep.subr.mxu0 0.0
  %1272 = vmatpush1.xpose.msra.mxu0 0.0
  %1273 = vmatprep.subr.mxu0 0.0
  %1274 = vmatpush1.xpose.msra.mxu0 0.0
  %1275 = vmatprep.subr.mxu0 0.0
  %1276 = vmatpush1.xpose.msra.mxu0 0.0
  %1277 = vmatprep.subr.mxu0 0.0
  %1278 = vmatpush1.xpose.msra.mxu0 0.0
  %1279 = vmatprep.subr.mxu0 0.0
  %1280 = vmatpush1.xpose.msra.mxu0 0.0
  %1281 = vmatprep.subr.mxu0 0.0
  %1282 = vmatpush1.xpose.msra.mxu0 0.0
  %1283 = vmatprep.subr.mxu0 0.0
  %1284 = vmatpush1.xpose.msra.mxu0 0.0
  %1285 = vmatprep.subr.mxu0 0.0
  %1286 = vmatpush1.xpose.msra.mxu0 0.0
  %1287 = vmatprep.subr.mxu0 0.0
  %1288 = vmatpush1.xpose.msra.mxu0 0.0
  %1289 = vmatprep.subr.mxu0 0.0
  %1290 = vmatpush1.xpose.msra.mxu0 0.0
  %1291 = vmatprep.subr.mxu0 0.0
  %1292 = vmatpush1.xpose.msra.mxu0 0.0
  %1293 = vmatprep.subr.mxu0 0.0
  %1294 = vmatpush1.xpose.msra.mxu0 0.0
  %1295 = vmatprep.subr.mxu0 0.0
  %1296 = vmatpush1.xpose.msra.mxu0 0.0
  %1297 = vmatprep.subr.mxu0 0.0
  %1298 = vmatpush1.xpose.msra.mxu0 0.0
  %1299 = vmatprep.subr.mxu0 0.0
  %1300 = vmatpush1.xpose.msra.mxu0 0.0
  %1301 = vmatprep.subr.mxu0 0.0
  %1302 = vmatpush1.xpose.msra.mxu0 0.0
  %1303 = vmatprep.subr.mxu0 0.0
  %1304 = vmatpush1.xpose.msra.mxu0 0.0
  %1305 = vmatprep.subr.mxu0 0.0
  %1306 = vmatpush1.xpose.msra.mxu0 0.0
  %1307 = vmatprep.subr.mxu0 0.0
  %1308 = vmatpush1.xpose.msra.mxu0 0.0
  %1309 = vmatprep.subr.mxu0 0.0
  %1310 = vmatpush1.xpose.msra.mxu0 0.0
  %1311 = vmatprep.subr.mxu0 0.0
  %1312 = vmatpush1.xpose.msra.mxu0 0.0
  %1313 = vmatprep.subr.mxu0 0.0
  %1314 = vmatpush1.xpose.msra.mxu0 0.0
  %1315 = vmatprep.mubr.f32.mxu0 0.0
  %1316 = vmatmul.mubr.f32.gmra.mrb[0].mxu0 %v1247
  %v1317 = vpop.f32.mrb[0].mxu0
  %v1318 = vadd.f32 0.0, %v1317
  %v1319 = vpop.f32.mrb[0].mxu0
  %1320 = vdwg.mxu0
  %1321 = vrot.lane.b32.xlu0 %v447, 96
  %v1322 = vpop.permute.xlu0 %1321
  %v1323 = vsel %vm486, %v419, 0
  %v1325 = vsel %vm486, %v1322, 0
  %1327 = vmatprep.subr.mxu0 0.0
  %1328 = vmatpush1.xpose.msra.mxu0 %v1325
  %1329 = vmatprep.subr.mxu0 0.0
  %1330 = vmatpush1.xpose.msra.mxu0 0.0
  %1331 = vmatprep.subr.mxu0 0.0
  %1332 = vmatpush1.xpose.msra.mxu0 0.0
  %1333 = vmatprep.subr.mxu0 0.0
  %1334 = vmatpush1.xpose.msra.mxu0 0.0
  %1335 = vmatprep.subr.mxu0 0.0
  %1336 = vmatpush1.xpose.msra.mxu0 0.0
  %1337 = vmatprep.subr.mxu0 0.0
  %1338 = vmatpush1.xpose.msra.mxu0 0.0
  %1339 = vmatprep.subr.mxu0 0.0
  %1340 = vmatpush1.xpose.msra.mxu0 0.0
  %1341 = vmatprep.subr.mxu0 0.0
  %1342 = vmatpush1.xpose.msra.mxu0 0.0
  %1343 = vmatprep.subr.mxu0 0.0
  %1344 = vmatpush1.xpose.msra.mxu0 0.0
  %1345 = vmatprep.subr.mxu0 0.0
  %1346 = vmatpush1.xpose.msra.mxu0 0.0
  %1347 = vmatprep.subr.mxu0 0.0
  %1348 = vmatpush1.xpose.msra.mxu0 0.0
  %1349 = vmatprep.subr.mxu0 0.0
  %1350 = vmatpush1.xpose.msra.mxu0 0.0
  %1351 = vmatprep.subr.mxu0 0.0
  %1352 = vmatpush1.xpose.msra.mxu0 0.0
  %1353 = vmatprep.subr.mxu0 0.0
  %1354 = vmatpush1.xpose.msra.mxu0 0.0
  %1355 = vmatprep.subr.mxu0 0.0
  %1356 = vmatpush1.xpose.msra.mxu0 0.0
  %1357 = vmatprep.subr.mxu0 0.0
  %1358 = vmatpush1.xpose.msra.mxu0 0.0
  %1359 = vmatprep.subr.mxu0 0.0
  %1360 = vmatpush1.xpose.msra.mxu0 0.0
  %1361 = vmatprep.subr.mxu0 0.0
  %1362 = vmatpush1.xpose.msra.mxu0 0.0
  %1363 = vmatprep.subr.mxu0 0.0
  %1364 = vmatpush1.xpose.msra.mxu0 0.0
  %1365 = vmatprep.subr.mxu0 0.0
  %1366 = vmatpush1.xpose.msra.mxu0 0.0
  %1367 = vmatprep.subr.mxu0 0.0
  %1368 = vmatpush1.xpose.msra.mxu0 0.0
  %1369 = vmatprep.subr.mxu0 0.0
  %1370 = vmatpush1.xpose.msra.mxu0 0.0
  %1371 = vmatprep.subr.mxu0 0.0
  %1372 = vmatpush1.xpose.msra.mxu0 0.0
  %1373 = vmatprep.subr.mxu0 0.0
  %1374 = vmatpush1.xpose.msra.mxu0 0.0
  %1375 = vmatprep.subr.mxu0 0.0
  %1376 = vmatpush1.xpose.msra.mxu0 0.0
  %1377 = vmatprep.subr.mxu0 0.0
  %1378 = vmatpush1.xpose.msra.mxu0 0.0
  %1379 = vmatprep.subr.mxu0 0.0
  %1380 = vmatpush1.xpose.msra.mxu0 0.0
  %1381 = vmatprep.subr.mxu0 0.0
  %1382 = vmatpush1.xpose.msra.mxu0 0.0
  %1383 = vmatprep.subr.mxu0 0.0
  %1384 = vmatpush1.xpose.msra.mxu0 0.0
  %1385 = vmatprep.subr.mxu0 0.0
  %1386 = vmatpush1.xpose.msra.mxu0 0.0
  %1387 = vmatprep.subr.mxu0 0.0
  %1388 = vmatpush1.xpose.msra.mxu0 0.0
  %1389 = vmatprep.subr.mxu0 0.0
  %1390 = vmatpush1.xpose.msra.mxu0 0.0
  %1391 = vmatprep.mubr.f32.mxu0 0.0
  %1392 = vmatmul.mubr.f32.gmra.mrb[0].mxu0 %v1323
  %v1393 = vpop.f32.mrb[0].mxu0
  %v1394 = vadd.f32 0.0, %v1393
  %v1395 = vpop.f32.mrb[0].mxu0
  %1396 = vdwg.mxu0
  %1397 = vrot.lane.b32.xlu0 %v449, 96
  %v1398 = vpop.permute.xlu0 %1397
  %v1399 = vsel %vm486, %v421, 0
  %v1401 = vsel %vm486, %v1398, 0
  %1403 = vmatprep.subr.mxu0 0.0
  %1404 = vmatpush1.xpose.msra.mxu0 %v1401
  %1405 = vmatprep.subr.mxu0 0.0
  %1406 = vmatpush1.xpose.msra.mxu0 0.0
  %1407 = vmatprep.subr.mxu0 0.0
  %1408 = vmatpush1.xpose.msra.mxu0 0.0
  %1409 = vmatprep.subr.mxu0 0.0
  %1410 = vmatpush1.xpose.msra.mxu0 0.0
  %1411 = vmatprep.subr.mxu0 0.0
  %1412 = vmatpush1.xpose.msra.mxu0 0.0
  %1413 = vmatprep.subr.mxu0 0.0
  %1414 = vmatpush1.xpose.msra.mxu0 0.0
  %1415 = vmatprep.subr.mxu0 0.0
  %1416 = vmatpush1.xpose.msra.mxu0 0.0
  %1417 = vmatprep.subr.mxu0 0.0
  %1418 = vmatpush1.xpose.msra.mxu0 0.0
  %1419 = vmatprep.subr.mxu0 0.0
  %1420 = vmatpush1.xpose.msra.mxu0 0.0
  %1421 = vmatprep.subr.mxu0 0.0
  %1422 = vmatpush1.xpose.msra.mxu0 0.0
  %1423 = vmatprep.subr.mxu0 0.0
  %1424 = vmatpush1.xpose.msra.mxu0 0.0
  %1425 = vmatprep.subr.mxu0 0.0
  %1426 = vmatpush1.xpose.msra.mxu0 0.0
  %1427 = vmatprep.subr.mxu0 0.0
  %1428 = vmatpush1.xpose.msra.mxu0 0.0
  %1429 = vmatprep.subr.mxu0 0.0
  %1430 = vmatpush1.xpose.msra.mxu0 0.0
  %1431 = vmatprep.subr.mxu0 0.0
  %1432 = vmatpush1.xpose.msra.mxu0 0.0
  %1433 = vmatprep.subr.mxu0 0.0
  %1434 = vmatpush1.xpose.msra.mxu0 0.0
  %1435 = vmatprep.subr.mxu0 0.0
  %1436 = vmatpush1.xpose.msra.mxu0 0.0
  %1437 = vmatprep.subr.mxu0 0.0
  %1438 = vmatpush1.xpose.msra.mxu0 0.0
  %1439 = vmatprep.subr.mxu0 0.0
  %1440 = vmatpush1.xpose.msra.mxu0 0.0
  %1441 = vmatprep.subr.mxu0 0.0
  %1442 = vmatpush1.xpose.msra.mxu0 0.0
  %1443 = vmatprep.subr.mxu0 0.0
  %1444 = vmatpush1.xpose.msra.mxu0 0.0
  %1445 = vmatprep.subr.mxu0 0.0
  %1446 = vmatpush1.xpose.msra.mxu0 0.0
  %1447 = vmatprep.subr.mxu0 0.0
  %1448 = vmatpush1.xpose.msra.mxu0 0.0
  %1449 = vmatprep.subr.mxu0 0.0
  %1450 = vmatpush1.xpose.msra.mxu0 0.0
  %1451 = vmatprep.subr.mxu0 0.0
  %1452 = vmatpush1.xpose.msra.mxu0 0.0
  %1453 = vmatprep.subr.mxu0 0.0
  %1454 = vmatpush1.xpose.msra.mxu0 0.0
  %1455 = vmatprep.subr.mxu0 0.0
  %1456 = vmatpush1.xpose.msra.mxu0 0.0
  %1457 = vmatprep.subr.mxu0 0.0
  %1458 = vmatpush1.xpose.msra.mxu0 0.0
  %1459 = vmatprep.subr.mxu0 0.0
  %1460 = vmatpush1.xpose.msra.mxu0 0.0
  %1461 = vmatprep.subr.mxu0 0.0
  %1462 = vmatpush1.xpose.msra.mxu0 0.0
  %1463 = vmatprep.subr.mxu0 0.0
  %1464 = vmatpush1.xpose.msra.mxu0 0.0
  %1465 = vmatprep.subr.mxu0 0.0
  %1466 = vmatpush1.xpose.msra.mxu0 0.0
  %1467 = vmatprep.mubr.f32.mxu0 0.0
  %1468 = vmatmul.mubr.f32.gmra.mrb[0].mxu0 %v1399
  %v1469 = vpop.f32.mrb[0].mxu0
  %v1470 = vadd.f32 0.0, %v1469
  %v1471 = vpop.f32.mrb[0].mxu0
  %1472 = vdwg.mxu0
  %1473 = vrot.lane.b32.xlu0 %v451, 96
  %v1474 = vpop.permute.xlu0 %1473
  %v1475 = vsel %vm486, %v423, 0
  %v1477 = vsel %vm486, %v1474, 0
  %1479 = vmatprep.subr.mxu0 0.0
  %1480 = vmatpush1.xpose.msra.mxu0 %v1477
  %1481 = vmatprep.subr.mxu0 0.0
  %1482 = vmatpush1.xpose.msra.mxu0 0.0
  %1483 = vmatprep.subr.mxu0 0.0
  %1484 = vmatpush1.xpose.msra.mxu0 0.0
  %1485 = vmatprep.subr.mxu0 0.0
  %1486 = vmatpush1.xpose.msra.mxu0 0.0
  %1487 = vmatprep.subr.mxu0 0.0
  %1488 = vmatpush1.xpose.msra.mxu0 0.0
  %1489 = vmatprep.subr.mxu0 0.0
  %1490 = vmatpush1.xpose.msra.mxu0 0.0
  %1491 = vmatprep.subr.mxu0 0.0
  %1492 = vmatpush1.xpose.msra.mxu0 0.0
  %1493 = vmatprep.subr.mxu0 0.0
  %1494 = vmatpush1.xpose.msra.mxu0 0.0
  %1495 = vmatprep.subr.mxu0 0.0
  %1496 = vmatpush1.xpose.msra.mxu0 0.0
  %1497 = vmatprep.subr.mxu0 0.0
  %1498 = vmatpush1.xpose.msra.mxu0 0.0
  %1499 = vmatprep.subr.mxu0 0.0
  %1500 = vmatpush1.xpose.msra.mxu0 0.0
  %1501 = vmatprep.subr.mxu0 0.0
  %1502 = vmatpush1.xpose.msra.mxu0 0.0
  %1503 = vmatprep.subr.mxu0 0.0
  %1504 = vmatpush1.xpose.msra.mxu0 0.0
  %1505 = vmatprep.subr.mxu0 0.0
  %1506 = vmatpush1.xpose.msra.mxu0 0.0
  %1507 = vmatprep.subr.mxu0 0.0
  %1508 = vmatpush1.xpose.msra.mxu0 0.0
  %1509 = vmatprep.subr.mxu0 0.0
  %1510 = vmatpush1.xpose.msra.mxu0 0.0
  %1511 = vmatprep.subr.mxu0 0.0
  %1512 = vmatpush1.xpose.msra.mxu0 0.0
  %1513 = vmatprep.subr.mxu0 0.0
  %1514 = vmatpush1.xpose.msra.mxu0 0.0
  %1515 = vmatprep.subr.mxu0 0.0
  %1516 = vmatpush1.xpose.msra.mxu0 0.0
  %1517 = vmatprep.subr.mxu0 0.0
  %1518 = vmatpush1.xpose.msra.mxu0 0.0
  %1519 = vmatprep.subr.mxu0 0.0
  %1520 = vmatpush1.xpose.msra.mxu0 0.0
  %1521 = vmatprep.subr.mxu0 0.0
  %1522 = vmatpush1.xpose.msra.mxu0 0.0
  %1523 = vmatprep.subr.mxu0 0.0
  %1524 = vmatpush1.xpose.msra.mxu0 0.0
  %1525 = vmatprep.subr.mxu0 0.0
  %1526 = vmatpush1.xpose.msra.mxu0 0.0
  %1527 = vmatprep.subr.mxu0 0.0
  %1528 = vmatpush1.xpose.msra.mxu0 0.0
  %1529 = vmatprep.subr.mxu0 0.0
  %1530 = vmatpush1.xpose.msra.mxu0 0.0
  %1531 = vmatprep.subr.mxu0 0.0
  %1532 = vmatpush1.xpose.msra.mxu0 0.0
  %1533 = vmatprep.subr.mxu0 0.0
  %1534 = vmatpush1.xpose.msra.mxu0 0.0
  %1535 = vmatprep.subr.mxu0 0.0
  %1536 = vmatpush1.xpose.msra.mxu0 0.0
  %1537 = vmatprep.subr.mxu0 0.0
  %1538 = vmatpush1.xpose.msra.mxu0 0.0
  %1539 = vmatprep.subr.mxu0 0.0
  %1540 = vmatpush1.xpose.msra.mxu0 0.0
  %1541 = vmatprep.subr.mxu0 0.0
  %1542 = vmatpush1.xpose.msra.mxu0 0.0
  %1543 = vmatprep.mubr.f32.mxu0 0.0
  %1544 = vmatmul.mubr.f32.gmra.mrb[0].mxu0 %v1475
  %v1545 = vpop.f32.mrb[0].mxu0
  %v1546 = vadd.f32 0.0, %v1545
  %v1547 = vpop.f32.mrb[0].mxu0
  %1548 = vdwg.mxu0
  %1549 = vrot.lane.b32.xlu0 %v453, 96
  %v1550 = vpop.permute.xlu0 %1549
  %v1551 = vsel %vm486, %v425, 0
  %v1553 = vsel %vm486, %v1550, 0
  %1555 = vmatprep.subr.mxu0 0.0
  %1556 = vmatpush1.xpose.msra.mxu0 %v1553
  %1557 = vmatprep.subr.mxu0 0.0
  %1558 = vmatpush1.xpose.msra.mxu0 0.0
  %1559 = vmatprep.subr.mxu0 0.0
  %1560 = vmatpush1.xpose.msra.mxu0 0.0
  %1561 = vmatprep.subr.mxu0 0.0
  %1562 = vmatpush1.xpose.msra.mxu0 0.0
  %1563 = vmatprep.subr.mxu0 0.0
  %1564 = vmatpush1.xpose.msra.mxu0 0.0
  %1565 = vmatprep.subr.mxu0 0.0
  %1566 = vmatpush1.xpose.msra.mxu0 0.0
  %1567 = vmatprep.subr.mxu0 0.0
  %1568 = vmatpush1.xpose.msra.mxu0 0.0
  %1569 = vmatprep.subr.mxu0 0.0
  %1570 = vmatpush1.xpose.msra.mxu0 0.0
  %1571 = vmatprep.subr.mxu0 0.0
  %1572 = vmatpush1.xpose.msra.mxu0 0.0
  %1573 = vmatprep.subr.mxu0 0.0
  %1574 = vmatpush1.xpose.msra.mxu0 0.0
  %1575 = vmatprep.subr.mxu0 0.0
  %1576 = vmatpush1.xpose.msra.mxu0 0.0
  %1577 = vmatprep.subr.mxu0 0.0
  %1578 = vmatpush1.xpose.msra.mxu0 0.0
  %1579 = vmatprep.subr.mxu0 0.0
  %1580 = vmatpush1.xpose.msra.mxu0 0.0
  %1581 = vmatprep.subr.mxu0 0.0
  %1582 = vmatpush1.xpose.msra.mxu0 0.0
  %1583 = vmatprep.subr.mxu0 0.0
  %1584 = vmatpush1.xpose.msra.mxu0 0.0
  %1585 = vmatprep.subr.mxu0 0.0
  %1586 = vmatpush1.xpose.msra.mxu0 0.0
  %1587 = vmatprep.subr.mxu0 0.0
  %1588 = vmatpush1.xpose.msra.mxu0 0.0
  %1589 = vmatprep.subr.mxu0 0.0
  %1590 = vmatpush1.xpose.msra.mxu0 0.0
  %1591 = vmatprep.subr.mxu0 0.0
  %1592 = vmatpush1.xpose.msra.mxu0 0.0
  %1593 = vmatprep.subr.mxu0 0.0
  %1594 = vmatpush1.xpose.msra.mxu0 0.0
  %1595 = vmatprep.subr.mxu0 0.0
  %1596 = vmatpush1.xpose.msra.mxu0 0.0
  %1597 = vmatprep.subr.mxu0 0.0
  %1598 = vmatpush1.xpose.msra.mxu0 0.0
  %1599 = vmatprep.subr.mxu0 0.0
  %1600 = vmatpush1.xpose.msra.mxu0 0.0
  %1601 = vmatprep.subr.mxu0 0.0
  %1602 = vmatpush1.xpose.msra.mxu0 0.0
  %1603 = vmatprep.subr.mxu0 0.0
  %1604 = vmatpush1.xpose.msra.mxu0 0.0
  %1605 = vmatprep.subr.mxu0 0.0
  %1606 = vmatpush1.xpose.msra.mxu0 0.0
  %1607 = vmatprep.subr.mxu0 0.0
  %1608 = vmatpush1.xpose.msra.mxu0 0.0
  %1609 = vmatprep.subr.mxu0 0.0
  %1610 = vmatpush1.xpose.msra.mxu0 0.0
  %1611 = vmatprep.subr.mxu0 0.0
  %1612 = vmatpush1.xpose.msra.mxu0 0.0
  %1613 = vmatprep.subr.mxu0 0.0
  %1614 = vmatpush1.xpose.msra.mxu0 0.0
  %1615 = vmatprep.subr.mxu0 0.0
  %1616 = vmatpush1.xpose.msra.mxu0 0.0
  %1617 = vmatprep.subr.mxu0 0.0
  %1618 = vmatpush1.xpose.msra.mxu0 0.0
  %1619 = vmatprep.mubr.f32.mxu0 0.0
  %1620 = vmatmul.mubr.f32.gmra.mrb[0].mxu0 %v1551
  %v1621 = vpop.f32.mrb[0].mxu0
  %v1622 = vadd.f32 0.0, %v1621
  %v1623 = vpop.f32.mrb[0].mxu0
  %1624 = vdwg.mxu0
  %1625 = vrot.lane.b32.xlu0 %v455, 96
  %v1626 = vpop.permute.xlu0 %1625
  %v1627 = vsel %vm486, %v427, 0
  %v1629 = vsel %vm486, %v1626, 0
  %1631 = vmatprep.subr.mxu0 0.0
  %1632 = vmatpush1.xpose.msra.mxu0 %v1629
  %1633 = vmatprep.subr.mxu0 0.0
  %1634 = vmatpush1.xpose.msra.mxu0 0.0
  %1635 = vmatprep.subr.mxu0 0.0
  %1636 = vmatpush1.xpose.msra.mxu0 0.0
  %1637 = vmatprep.subr.mxu0 0.0
  %1638 = vmatpush1.xpose.msra.mxu0 0.0
  %1639 = vmatprep.subr.mxu0 0.0
  %1640 = vmatpush1.xpose.msra.mxu0 0.0
  %1641 = vmatprep.subr.mxu0 0.0
  %1642 = vmatpush1.xpose.msra.mxu0 0.0
  %1643 = vmatprep.subr.mxu0 0.0
  %1644 = vmatpush1.xpose.msra.mxu0 0.0
  %1645 = vmatprep.subr.mxu0 0.0
  %1646 = vmatpush1.xpose.msra.mxu0 0.0
  %1647 = vmatprep.subr.mxu0 0.0
  %1648 = vmatpush1.xpose.msra.mxu0 0.0
  %1649 = vmatprep.subr.mxu0 0.0
  %1650 = vmatpush1.xpose.msra.mxu0 0.0
  %1651 = vmatprep.subr.mxu0 0.0
  %1652 = vmatpush1.xpose.msra.mxu0 0.0
  %1653 = vmatprep.subr.mxu0 0.0
  %1654 = vmatpush1.xpose.msra.mxu0 0.0
  %1655 = vmatprep.subr.mxu0 0.0
  %1656 = vmatpush1.xpose.msra.mxu0 0.0
  %1657 = vmatprep.subr.mxu0 0.0
  %1658 = vmatpush1.xpose.msra.mxu0 0.0
  %1659 = vmatprep.subr.mxu0 0.0
  %1660 = vmatpush1.xpose.msra.mxu0 0.0
  %1661 = vmatprep.subr.mxu0 0.0
  %1662 = vmatpush1.xpose.msra.mxu0 0.0
  %1663 = vmatprep.subr.mxu0 0.0
  %1664 = vmatpush1.xpose.msra.mxu0 0.0
  %1665 = vmatprep.subr.mxu0 0.0
  %1666 = vmatpush1.xpose.msra.mxu0 0.0
  %1667 = vmatprep.subr.mxu0 0.0
  %1668 = vmatpush1.xpose.msra.mxu0 0.0
  %1669 = vmatprep.subr.mxu0 0.0
  %1670 = vmatpush1.xpose.msra.mxu0 0.0
  %1671 = vmatprep.subr.mxu0 0.0
  %1672 = vmatpush1.xpose.msra.mxu0 0.0
  %1673 = vmatprep.subr.mxu0 0.0
  %1674 = vmatpush1.xpose.msra.mxu0 0.0
  %1675 = vmatprep.subr.mxu0 0.0
  %1676 = vmatpush1.xpose.msra.mxu0 0.0
  %1677 = vmatprep.subr.mxu0 0.0
  %1678 = vmatpush1.xpose.msra.mxu0 0.0
  %1679 = vmatprep.subr.mxu0 0.0
  %1680 = vmatpush1.xpose.msra.mxu0 0.0
  %1681 = vmatprep.subr.mxu0 0.0
  %1682 = vmatpush1.xpose.msra.mxu0 0.0
  %1683 = vmatprep.subr.mxu0 0.0
  %1684 = vmatpush1.xpose.msra.mxu0 0.0
  %1685 = vmatprep.subr.mxu0 0.0
  %1686 = vmatpush1.xpose.msra.mxu0 0.0
  %1687 = vmatprep.subr.mxu0 0.0
  %1688 = vmatpush1.xpose.msra.mxu0 0.0
  %1689 = vmatprep.subr.mxu0 0.0
  %1690 = vmatpush1.xpose.msra.mxu0 0.0
  %1691 = vmatprep.subr.mxu0 0.0
  %1692 = vmatpush1.xpose.msra.mxu0 0.0
  %1693 = vmatprep.subr.mxu0 0.0
  %1694 = vmatpush1.xpose.msra.mxu0 0.0
  %1695 = vmatprep.mubr.f32.mxu0 0.0
  %1696 = vmatmul.mubr.f32.gmra.mrb[0].mxu0 %v1627
  %v1697 = vpop.f32.mrb[0].mxu0
  %v1698 = vadd.f32 0.0, %v1697
  %v1699 = vpop.f32.mrb[0].mxu0
  %1700 = vdwg.mxu0
  %v1701 = vsel %vm486, %v558, -inf
  %1702 = vmax.xlane.f32.xlu0 %v1701
  %v1703 = vpop.xlane.xlu0 %1702
  %v1704 = vsel %vm486, %v634, -inf
  %1705 = vmax.xlane.f32.xlu0 %v1704
  %v1706 = vpop.xlane.xlu0 %1705
  %v1707 = vsel %vm486, %v710, -inf
  %1708 = vmax.xlane.f32.xlu0 %v1707
  %v1709 = vpop.xlane.xlu0 %1708
  %v1710 = vsel %vm486, %v786, -inf
  %1711 = vmax.xlane.f32.xlu0 %v1710
  %v1712 = vpop.xlane.xlu0 %1711
  %v1713 = vsel %vm486, %v862, -inf
  %1714 = vmax.xlane.f32.xlu0 %v1713
  %v1715 = vpop.xlane.xlu0 %1714
  %v1716 = vsel %vm486, %v938, -inf
  %1717 = vmax.xlane.f32.xlu0 %v1716
  %v1718 = vpop.xlane.xlu0 %1717
  %v1719 = vsel %vm486, %v1014, -inf
  %1720 = vmax.xlane.f32.xlu0 %v1719
  %v1721 = vpop.xlane.xlu0 %1720
  %v1722 = vsel %vm486, %v1090, -inf
  %1723 = vmax.xlane.f32.xlu0 %v1722
  %v1724 = vpop.xlane.xlu0 %1723
  %v1725 = vsel %vm486, %v1166, -inf
  %1726 = vmax.xlane.f32.xlu0 %v1725
  %v1727 = vpop.xlane.xlu0 %1726
  %v1728 = vsel %vm486, %v1242, -inf
  %1729 = vmax.xlane.f32.xlu0 %v1728
  %v1730 = vpop.xlane.xlu0 %1729
  %v1731 = vsel %vm486, %v1318, -inf
  %1732 = vmax.xlane.f32.xlu0 %v1731
  %v1733 = vpop.xlane.xlu0 %1732
  %v1734 = vsel %vm486, %v1394, -inf
  %1735 = vmax.xlane.f32.xlu0 %v1734
  %v1736 = vpop.xlane.xlu0 %1735
  %v1737 = vsel %vm486, %v1470, -inf
  %1738 = vmax.xlane.f32.xlu0 %v1737
  %v1739 = vpop.xlane.xlu0 %1738
  %v1740 = vsel %vm486, %v1546, -inf
  %1741 = vmax.xlane.f32.xlu0 %v1740
  %v1742 = vpop.xlane.xlu0 %1741
  %v1743 = vsel %vm486, %v1622, -inf
  %1744 = vmax.xlane.f32.xlu0 %v1743
  %v1745 = vpop.xlane.xlu0 %1744
  %v1746 = vsel %vm486, %v1698, -inf
  %1747 = vmax.xlane.f32.xlu0 %v1746
  %v1748 = vpop.xlane.xlu0 %1747
  %v1749 = vsub.f32 %v558, %v1703
  %v1750 = vsub.f32 %v634, %v1706
  %v1751 = vsub.f32 %v710, %v1709
  %v1752 = vsub.f32 %v786, %v1712
  %v1753 = vsub.f32 %v862, %v1715
  %v1754 = vsub.f32 %v938, %v1718
  %v1755 = vsub.f32 %v1014, %v1721
  %v1756 = vsub.f32 %v1090, %v1724
  %v1757 = vsub.f32 %v1166, %v1727
  %v1758 = vsub.f32 %v1242, %v1730
  %v1759 = vsub.f32 %v1318, %v1733
  %v1760 = vsub.f32 %v1394, %v1736
  %v1761 = vsub.f32 %v1470, %v1739
  %v1762 = vsub.f32 %v1546, %v1742
  %v1763 = vsub.f32 %v1622, %v1745
  %v1764 = vsub.f32 %v1698, %v1748
  %v1765 = vmul.f32 %v1749, 1.442695
  %v1766 = vpow.pop %v1765
  %v1767 = vmul.f32 %v1750, 1.442695
  %v1768 = vpow.pop %v1767
  %v1769 = vmul.f32 %v1751, 1.442695
  %v1770 = vpow.pop %v1769
  %v1771 = vmul.f32 %v1752, 1.442695
  %v1772 = vpow.pop %v1771
  %v1773 = vmul.f32 %v1753, 1.442695
  %v1774 = vpow.pop %v1773
  %v1775 = vmul.f32 %v1754, 1.442695
  %v1776 = vpow.pop %v1775
  %v1777 = vmul.f32 %v1755, 1.442695
  %v1778 = vpow.pop %v1777
  %v1779 = vmul.f32 %v1756, 1.442695
  %v1780 = vpow.pop %v1779
  %v1781 = vmul.f32 %v1757, 1.442695
  %v1782 = vpow.pop %v1781
  %v1783 = vmul.f32 %v1758, 1.442695
  %v1784 = vpow.pop %v1783
  %v1785 = vmul.f32 %v1759, 1.442695
  %v1786 = vpow.pop %v1785
  %v1787 = vmul.f32 %v1760, 1.442695
  %v1788 = vpow.pop %v1787
  %v1789 = vmul.f32 %v1761, 1.442695
  %v1790 = vpow.pop %v1789
  %v1791 = vmul.f32 %v1762, 1.442695
  %v1792 = vpow.pop %v1791
  %v1793 = vmul.f32 %v1763, 1.442695
  %v1794 = vpow.pop %v1793
  %v1795 = vmul.f32 %v1764, 1.442695
  %v1796 = vpow.pop %v1795
  %v1797 = vsel %vm486, %v1766, 0.0
  %1798 = vadd.xlane.f32.xlu0 %v1797
  %v1799 = vpop.xlane.xlu0 %1798
  %v1800 = vsel %vm486, %v1768, 0.0
  %1801 = vadd.xlane.f32.xlu0 %v1800
  %v1802 = vpop.xlane.xlu0 %1801
  %v1803 = vsel %vm486, %v1770, 0.0
  %1804 = vadd.xlane.f32.xlu0 %v1803
  %v1805 = vpop.xlane.xlu0 %1804
  %v1806 = vsel %vm486, %v1772, 0.0
  %1807 = vadd.xlane.f32.xlu0 %v1806
  %v1808 = vpop.xlane.xlu0 %1807
  %v1809 = vsel %vm486, %v1774, 0.0
  %1810 = vadd.xlane.f32.xlu0 %v1809
  %v1811 = vpop.xlane.xlu0 %1810
  %v1812 = vsel %vm486, %v1776, 0.0
  %1813 = vadd.xlane.f32.xlu0 %v1812
  %v1814 = vpop.xlane.xlu0 %1813
  %v1815 = vsel %vm486, %v1778, 0.0
  %1816 = vadd.xlane.f32.xlu0 %v1815
  %v1817 = vpop.xlane.xlu0 %1816
  %v1818 = vsel %vm486, %v1780, 0.0
  %1819 = vadd.xlane.f32.xlu0 %v1818
  %v1820 = vpop.xlane.xlu0 %1819
  %v1821 = vsel %vm486, %v1782, 0.0
  %1822 = vadd.xlane.f32.xlu0 %v1821
  %v1823 = vpop.xlane.xlu0 %1822
  %v1824 = vsel %vm486, %v1784, 0.0
  %1825 = vadd.xlane.f32.xlu0 %v1824
  %v1826 = vpop.xlane.xlu0 %1825
  %v1827 = vsel %vm486, %v1786, 0.0
  %1828 = vadd.xlane.f32.xlu0 %v1827
  %v1829 = vpop.xlane.xlu0 %1828
  %v1830 = vsel %vm486, %v1788, 0.0
  %1831 = vadd.xlane.f32.xlu0 %v1830
  %v1832 = vpop.xlane.xlu0 %1831
  %v1833 = vsel %vm486, %v1790, 0.0
  %1834 = vadd.xlane.f32.xlu0 %v1833
  %v1835 = vpop.xlane.xlu0 %1834
  %v1836 = vsel %vm486, %v1792, 0.0
  %1837 = vadd.xlane.f32.xlu0 %v1836
  %v1838 = vpop.xlane.xlu0 %1837
  %v1839 = vsel %vm486, %v1794, 0.0
  %1840 = vadd.xlane.f32.xlu0 %v1839
  %v1841 = vpop.xlane.xlu0 %1840
  %v1842 = vsel %vm486, %v1796, 0.0
  %1843 = vadd.xlane.f32.xlu0 %v1842
  %v1844 = vpop.xlane.xlu0 %1843
  %v1845 = vrcp.pop %v1799
  %v1846 = vmul.f32 %v1766, %v1845
  %v1847 = vrcp.pop %v1802
  %v1848 = vmul.f32 %v1768, %v1847
  %v1849 = vrcp.pop %v1805
  %v1850 = vmul.f32 %v1770, %v1849
  %v1851 = vrcp.pop %v1808
  %v1852 = vmul.f32 %v1772, %v1851
  %v1853 = vrcp.pop %v1811
  %v1854 = vmul.f32 %v1774, %v1853
  %v1855 = vrcp.pop %v1814
  %v1856 = vmul.f32 %v1776, %v1855
  %v1857 = vrcp.pop %v1817
  %v1858 = vmul.f32 %v1778, %v1857
  %v1859 = vrcp.pop %v1820
  %v1860 = vmul.f32 %v1780, %v1859
  %v1861 = vrcp.pop %v1823
  %v1862 = vmul.f32 %v1782, %v1861
  %v1863 = vrcp.pop %v1826
  %v1864 = vmul.f32 %v1784, %v1863
  %v1865 = vrcp.pop %v1829
  %v1866 = vmul.f32 %v1786, %v1865
  %v1867 = vrcp.pop %v1832
  %v1868 = vmul.f32 %v1788, %v1867
  %v1869 = vrcp.pop %v1835
  %v1870 = vmul.f32 %v1790, %v1869
  %v1871 = vrcp.pop %v1838
  %v1872 = vmul.f32 %v1792, %v1871
  %v1873 = vrcp.pop %v1841
  %v1874 = vmul.f32 %v1794, %v1873
  %v1875 = vrcp.pop %v1844
  %v1876 = vmul.f32 %v1796, %v1875
  %1877 = vrot.lane.b32.xlu0 %v396, 64
  %v1878 = vpop.permute.xlu0 %1877
  %v1881 = vsel %vm486, %v1846, 0
  %1883 = vmatprep.subr.mxu0 0.0
  %1884 = vmatpush1.msra.mxu0 %v1878
  %1885 = vmatprep.subr.mxu0 0.0
  %1886 = vmatpush1.msra.mxu0 0.0
  %1887 = vmatprep.subr.mxu0 0.0
  %1888 = vmatpush1.msra.mxu0 0.0
  %1889 = vmatprep.subr.mxu0 0.0
  %1890 = vmatpush1.msra.mxu0 0.0
  %1891 = vmatprep.subr.mxu0 0.0
  %1892 = vmatpush1.msra.mxu0 0.0
  %1893 = vmatprep.subr.mxu0 0.0
  %1894 = vmatpush1.msra.mxu0 0.0
  %1895 = vmatprep.subr.mxu0 0.0
  %1896 = vmatpush1.msra.mxu0 0.0
  %1897 = vmatprep.subr.mxu0 0.0
  %1898 = vmatpush1.msra.mxu0 0.0
  %1899 = vmatprep.subr.mxu0 0.0
  %1900 = vmatpush1.msra.mxu0 0.0
  %1901 = vmatprep.subr.mxu0 0.0
  %1902 = vmatpush1.msra.mxu0 0.0
  %1903 = vmatprep.subr.mxu0 0.0
  %1904 = vmatpush1.msra.mxu0 0.0
  %1905 = vmatprep.subr.mxu0 0.0
  %1906 = vmatpush1.msra.mxu0 0.0
  %1907 = vmatprep.subr.mxu0 0.0
  %1908 = vmatpush1.msra.mxu0 0.0
  %1909 = vmatprep.subr.mxu0 0.0
  %1910 = vmatpush1.msra.mxu0 0.0
  %1911 = vmatprep.subr.mxu0 0.0
  %1912 = vmatpush1.msra.mxu0 0.0
  %1913 = vmatprep.subr.mxu0 0.0
  %1914 = vmatpush1.msra.mxu0 0.0
  %1915 = vmatprep.subr.mxu0 0.0
  %1916 = vmatpush1.msra.mxu0 0.0
  %1917 = vmatprep.subr.mxu0 0.0
  %1918 = vmatpush1.msra.mxu0 0.0
  %1919 = vmatprep.subr.mxu0 0.0
  %1920 = vmatpush1.msra.mxu0 0.0
  %1921 = vmatprep.subr.mxu0 0.0
  %1922 = vmatpush1.msra.mxu0 0.0
  %1923 = vmatprep.subr.mxu0 0.0
  %1924 = vmatpush1.msra.mxu0 0.0
  %1925 = vmatprep.subr.mxu0 0.0
  %1926 = vmatpush1.msra.mxu0 0.0
  %1927 = vmatprep.subr.mxu0 0.0
  %1928 = vmatpush1.msra.mxu0 0.0
  %1929 = vmatprep.subr.mxu0 0.0
  %1930 = vmatpush1.msra.mxu0 0.0
  %1931 = vmatprep.subr.mxu0 0.0
  %1932 = vmatpush1.msra.mxu0 0.0
  %1933 = vmatprep.subr.mxu0 0.0
  %1934 = vmatpush1.msra.mxu0 0.0
  %1935 = vmatprep.subr.mxu0 0.0
  %1936 = vmatpush1.msra.mxu0 0.0
  %1937 = vmatprep.subr.mxu0 0.0
  %1938 = vmatpush1.msra.mxu0 0.0
  %1939 = vmatprep.subr.mxu0 0.0
  %1940 = vmatpush1.msra.mxu0 0.0
  %1941 = vmatprep.subr.mxu0 0.0
  %1942 = vmatpush1.msra.mxu0 0.0
  %1943 = vmatprep.subr.mxu0 0.0
  %1944 = vmatpush1.msra.mxu0 0.0
  %1945 = vmatprep.subr.mxu0 0.0
  %1946 = vmatpush1.msra.mxu0 0.0
  %1947 = vmatprep.mubr.f32.mxu0 0.0
  %1948 = vmatmul.mubr.f32.gmra.mrb[0].mxu0 %v1881
  %v1949 = vpop.f32.mrb[0].mxu0
  %v1950 = vadd.f32 0.0, %v1949
  %v1951 = vpop.f32.mrb[0].mxu0
  %1952 = vdwg.mxu0
  %1953 = vrot.lane.b32.xlu0 %v397, 64
  %v1954 = vpop.permute.xlu0 %1953
  %v1957 = vsel %vm486, %v1848, 0
  %1959 = vmatprep.subr.mxu0 0.0
  %1960 = vmatpush1.msra.mxu0 %v1954
  %1961 = vmatprep.subr.mxu0 0.0
  %1962 = vmatpush1.msra.mxu0 0.0
  %1963 = vmatprep.subr.mxu0 0.0
  %1964 = vmatpush1.msra.mxu0 0.0
  %1965 = vmatprep.subr.mxu0 0.0
  %1966 = vmatpush1.msra.mxu0 0.0
  %1967 = vmatprep.subr.mxu0 0.0
  %1968 = vmatpush1.msra.mxu0 0.0
  %1969 = vmatprep.subr.mxu0 0.0
  %1970 = vmatpush1.msra.mxu0 0.0
  %1971 = vmatprep.subr.mxu0 0.0
  %1972 = vmatpush1.msra.mxu0 0.0
  %1973 = vmatprep.subr.mxu0 0.0
  %1974 = vmatpush1.msra.mxu0 0.0
  %1975 = vmatprep.subr.mxu0 0.0
  %1976 = vmatpush1.msra.mxu0 0.0
  %1977 = vmatprep.subr.mxu0 0.0
  %1978 = vmatpush1.msra.mxu0 0.0
  %1979 = vmatprep.subr.mxu0 0.0
  %1980 = vmatpush1.msra.mxu0 0.0
  %1981 = vmatprep.subr.mxu0 0.0
  %1982 = vmatpush1.msra.mxu0 0.0
  %1983 = vmatprep.subr.mxu0 0.0
  %1984 = vmatpush1.msra.mxu0 0.0
  %1985 = vmatprep.subr.mxu0 0.0
  %1986 = vmatpush1.msra.mxu0 0.0
  %1987 = vmatprep.subr.mxu0 0.0
  %1988 = vmatpush1.msra.mxu0 0.0
  %1989 = vmatprep.subr.mxu0 0.0
  %1990 = vmatpush1.msra.mxu0 0.0
  %1991 = vmatprep.subr.mxu0 0.0
  %1992 = vmatpush1.msra.mxu0 0.0
  %1993 = vmatprep.subr.mxu0 0.0
  %1994 = vmatpush1.msra.mxu0 0.0
  %1995 = vmatprep.subr.mxu0 0.0
  %1996 = vmatpush1.msra.mxu0 0.0
  %1997 = vmatprep.subr.mxu0 0.0
  %1998 = vmatpush1.msra.mxu0 0.0
  %1999 = vmatprep.subr.mxu0 0.0
  %2000 = vmatpush1.msra.mxu0 0.0
  %2001 = vmatprep.subr.mxu0 0.0
  %2002 = vmatpush1.msra.mxu0 0.0
  %2003 = vmatprep.subr.mxu0 0.0
  %2004 = vmatpush1.msra.mxu0 0.0
  %2005 = vmatprep.subr.mxu0 0.0
  %2006 = vmatpush1.msra.mxu0 0.0
  %2007 = vmatprep.subr.mxu0 0.0
  %2008 = vmatpush1.msra.mxu0 0.0
  %2009 = vmatprep.subr.mxu0 0.0
  %2010 = vmatpush1.msra.mxu0 0.0
  %2011 = vmatprep.subr.mxu0 0.0
  %2012 = vmatpush1.msra.mxu0 0.0
  %2013 = vmatprep.subr.mxu0 0.0
  %2014 = vmatpush1.msra.mxu0 0.0
  %2015 = vmatprep.subr.mxu0 0.0
  %2016 = vmatpush1.msra.mxu0 0.0
  %2017 = vmatprep.subr.mxu0 0.0
  %2018 = vmatpush1.msra.mxu0 0.0
  %2019 = vmatprep.subr.mxu0 0.0
  %2020 = vmatpush1.msra.mxu0 0.0
  %2021 = vmatprep.subr.mxu0 0.0
  %2022 = vmatpush1.msra.mxu0 0.0
  %2023 = vmatprep.mubr.f32.mxu0 0.0
  %2024 = vmatmul.mubr.f32.gmra.mrb[0].mxu0 %v1957
  %v2025 = vpop.f32.mrb[0].mxu0
  %v2026 = vadd.f32 0.0, %v2025
  %v2027 = vpop.f32.mrb[0].mxu0
  %2028 = vdwg.mxu0
  %2029 = vrot.lane.b32.xlu0 %v398, 64
  %v2030 = vpop.permute.xlu0 %2029
  %v2033 = vsel %vm486, %v1850, 0
  %2035 = vmatprep.subr.mxu0 0.0
  %2036 = vmatpush1.msra.mxu0 %v2030
  %2037 = vmatprep.subr.mxu0 0.0
  %2038 = vmatpush1.msra.mxu0 0.0
  %2039 = vmatprep.subr.mxu0 0.0
  %2040 = vmatpush1.msra.mxu0 0.0
  %2041 = vmatprep.subr.mxu0 0.0
  %2042 = vmatpush1.msra.mxu0 0.0
  %2043 = vmatprep.subr.mxu0 0.0
  %2044 = vmatpush1.msra.mxu0 0.0
  %2045 = vmatprep.subr.mxu0 0.0
  %2046 = vmatpush1.msra.mxu0 0.0
  %2047 = vmatprep.subr.mxu0 0.0
  %2048 = vmatpush1.msra.mxu0 0.0
  %2049 = vmatprep.subr.mxu0 0.0
  %2050 = vmatpush1.msra.mxu0 0.0
  %2051 = vmatprep.subr.mxu0 0.0
  %2052 = vmatpush1.msra.mxu0 0.0
  %2053 = vmatprep.subr.mxu0 0.0
  %2054 = vmatpush1.msra.mxu0 0.0
  %2055 = vmatprep.subr.mxu0 0.0
  %2056 = vmatpush1.msra.mxu0 0.0
  %2057 = vmatprep.subr.mxu0 0.0
  %2058 = vmatpush1.msra.mxu0 0.0
  %2059 = vmatprep.subr.mxu0 0.0
  %2060 = vmatpush1.msra.mxu0 0.0
  %2061 = vmatprep.subr.mxu0 0.0
  %2062 = vmatpush1.msra.mxu0 0.0
  %2063 = vmatprep.subr.mxu0 0.0
  %2064 = vmatpush1.msra.mxu0 0.0
  %2065 = vmatprep.subr.mxu0 0.0
  %2066 = vmatpush1.msra.mxu0 0.0
  %2067 = vmatprep.subr.mxu0 0.0
  %2068 = vmatpush1.msra.mxu0 0.0
  %2069 = vmatprep.subr.mxu0 0.0
  %2070 = vmatpush1.msra.mxu0 0.0
  %2071 = vmatprep.subr.mxu0 0.0
  %2072 = vmatpush1.msra.mxu0 0.0
  %2073 = vmatprep.subr.mxu0 0.0
  %2074 = vmatpush1.msra.mxu0 0.0
  %2075 = vmatprep.subr.mxu0 0.0
  %2076 = vmatpush1.msra.mxu0 0.0
  %2077 = vmatprep.subr.mxu0 0.0
  %2078 = vmatpush1.msra.mxu0 0.0
  %2079 = vmatprep.subr.mxu0 0.0
  %2080 = vmatpush1.msra.mxu0 0.0
  %2081 = vmatprep.subr.mxu0 0.0
  %2082 = vmatpush1.msra.mxu0 0.0
  %2083 = vmatprep.subr.mxu0 0.0
  %2084 = vmatpush1.msra.mxu0 0.0
  %2085 = vmatprep.subr.mxu0 0.0
  %2086 = vmatpush1.msra.mxu0 0.0
  %2087 = vmatprep.subr.mxu0 0.0
  %2088 = vmatpush1.msra.mxu0 0.0
  %2089 = vmatprep.subr.mxu0 0.0
  %2090 = vmatpush1.msra.mxu0 0.0
  %2091 = vmatprep.subr.mxu0 0.0
  %2092 = vmatpush1.msra.mxu0 0.0
  %2093 = vmatprep.subr.mxu0 0.0
  %2094 = vmatpush1.msra.mxu0 0.0
  %2095 = vmatprep.subr.mxu0 0.0
  %2096 = vmatpush1.msra.mxu0 0.0
  %2097 = vmatprep.subr.mxu0 0.0
  %2098 = vmatpush1.msra.mxu0 0.0
  %2099 = vmatprep.mubr.f32.mxu0 0.0
  %2100 = vmatmul.mubr.f32.gmra.mrb[0].mxu0 %v2033
  %v2101 = vpop.f32.mrb[0].mxu0
  %v2102 = vadd.f32 0.0, %v2101
  %v2103 = vpop.f32.mrb[0].mxu0
  %2104 = vdwg.mxu0
  %2105 = vrot.lane.b32.xlu0 %v399, 64
  %v2106 = vpop.permute.xlu0 %2105
  %v2109 = vsel %vm486, %v1852, 0
  %2111 = vmatprep.subr.mxu0 0.0
  %2112 = vmatpush1.msra.mxu0 %v2106
  %2113 = vmatprep.subr.mxu0 0.0
  %2114 = vmatpush1.msra.mxu0 0.0
  %2115 = vmatprep.subr.mxu0 0.0
  %2116 = vmatpush1.msra.mxu0 0.0
  %2117 = vmatprep.subr.mxu0 0.0
  %2118 = vmatpush1.msra.mxu0 0.0
  %2119 = vmatprep.subr.mxu0 0.0
  %2120 = vmatpush1.msra.mxu0 0.0
  %2121 = vmatprep.subr.mxu0 0.0
  %2122 = vmatpush1.msra.mxu0 0.0
  %2123 = vmatprep.subr.mxu0 0.0
  %2124 = vmatpush1.msra.mxu0 0.0
  %2125 = vmatprep.subr.mxu0 0.0
  %2126 = vmatpush1.msra.mxu0 0.0
  %2127 = vmatprep.subr.mxu0 0.0
  %2128 = vmatpush1.msra.mxu0 0.0
  %2129 = vmatprep.subr.mxu0 0.0
  %2130 = vmatpush1.msra.mxu0 0.0
  %2131 = vmatprep.subr.mxu0 0.0
  %2132 = vmatpush1.msra.mxu0 0.0
  %2133 = vmatprep.subr.mxu0 0.0
  %2134 = vmatpush1.msra.mxu0 0.0
  %2135 = vmatprep.subr.mxu0 0.0
  %2136 = vmatpush1.msra.mxu0 0.0
  %2137 = vmatprep.subr.mxu0 0.0
  %2138 = vmatpush1.msra.mxu0 0.0
  %2139 = vmatprep.subr.mxu0 0.0
  %2140 = vmatpush1.msra.mxu0 0.0
  %2141 = vmatprep.subr.mxu0 0.0
  %2142 = vmatpush1.msra.mxu0 0.0
  %2143 = vmatprep.subr.mxu0 0.0
  %2144 = vmatpush1.msra.mxu0 0.0
  %2145 = vmatprep.subr.mxu0 0.0
  %2146 = vmatpush1.msra.mxu0 0.0
  %2147 = vmatprep.subr.mxu0 0.0
  %2148 = vmatpush1.msra.mxu0 0.0
  %2149 = vmatprep.subr.mxu0 0.0
  %2150 = vmatpush1.msra.mxu0 0.0
  %2151 = vmatprep.subr.mxu0 0.0
  %2152 = vmatpush1.msra.mxu0 0.0
  %2153 = vmatprep.subr.mxu0 0.0
  %2154 = vmatpush1.msra.mxu0 0.0
  %2155 = vmatprep.subr.mxu0 0.0
  %2156 = vmatpush1.msra.mxu0 0.0
  %2157 = vmatprep.subr.mxu0 0.0
  %2158 = vmatpush1.msra.mxu0 0.0
  %2159 = vmatprep.subr.mxu0 0.0
  %2160 = vmatpush1.msra.mxu0 0.0
  %2161 = vmatprep.subr.mxu0 0.0
  %2162 = vmatpush1.msra.mxu0 0.0
  %2163 = vmatprep.subr.mxu0 0.0
  %2164 = vmatpush1.msra.mxu0 0.0
  %2165 = vmatprep.subr.mxu0 0.0
  %2166 = vmatpush1.msra.mxu0 0.0
  %2167 = vmatprep.subr.mxu0 0.0
  %2168 = vmatpush1.msra.mxu0 0.0
  %2169 = vmatprep.subr.mxu0 0.0
  %2170 = vmatpush1.msra.mxu0 0.0
  %2171 = vmatprep.subr.mxu0 0.0
  %2172 = vmatpush1.msra.mxu0 0.0
  %2173 = vmatprep.subr.mxu0 0.0
  %2174 = vmatpush1.msra.mxu0 0.0
  %2175 = vmatprep.mubr.f32.mxu0 0.0
  %2176 = vmatmul.mubr.f32.gmra.mrb[0].mxu0 %v2109
  %v2177 = vpop.f32.mrb[0].mxu0
  %v2178 = vadd.f32 0.0, %v2177
  %v2179 = vpop.f32.mrb[0].mxu0
  %2180 = vdwg.mxu0
  %2181 = vrot.lane.b32.xlu0 %v461, 64
  %v2182 = vpop.permute.xlu0 %2181
  %v2185 = vsel %vm486, %v1854, 0
  %2187 = vmatprep.subr.mxu0 0.0
  %2188 = vmatpush1.msra.mxu0 %v2182
  %2189 = vmatprep.subr.mxu0 0.0
  %2190 = vmatpush1.msra.mxu0 0.0
  %2191 = vmatprep.subr.mxu0 0.0
  %2192 = vmatpush1.msra.mxu0 0.0
  %2193 = vmatprep.subr.mxu0 0.0
  %2194 = vmatpush1.msra.mxu0 0.0
  %2195 = vmatprep.subr.mxu0 0.0
  %2196 = vmatpush1.msra.mxu0 0.0
  %2197 = vmatprep.subr.mxu0 0.0
  %2198 = vmatpush1.msra.mxu0 0.0
  %2199 = vmatprep.subr.mxu0 0.0
  %2200 = vmatpush1.msra.mxu0 0.0
  %2201 = vmatprep.subr.mxu0 0.0
  %2202 = vmatpush1.msra.mxu0 0.0
  %2203 = vmatprep.subr.mxu0 0.0
  %2204 = vmatpush1.msra.mxu0 0.0
  %2205 = vmatprep.subr.mxu0 0.0
  %2206 = vmatpush1.msra.mxu0 0.0
  %2207 = vmatprep.subr.mxu0 0.0
  %2208 = vmatpush1.msra.mxu0 0.0
  %2209 = vmatprep.subr.mxu0 0.0
  %2210 = vmatpush1.msra.mxu0 0.0
  %2211 = vmatprep.subr.mxu0 0.0
  %2212 = vmatpush1.msra.mxu0 0.0
  %2213 = vmatprep.subr.mxu0 0.0
  %2214 = vmatpush1.msra.mxu0 0.0
  %2215 = vmatprep.subr.mxu0 0.0
  %2216 = vmatpush1.msra.mxu0 0.0
  %2217 = vmatprep.subr.mxu0 0.0
  %2218 = vmatpush1.msra.mxu0 0.0
  %2219 = vmatprep.subr.mxu0 0.0
  %2220 = vmatpush1.msra.mxu0 0.0
  %2221 = vmatprep.subr.mxu0 0.0
  %2222 = vmatpush1.msra.mxu0 0.0
  %2223 = vmatprep.subr.mxu0 0.0
  %2224 = vmatpush1.msra.mxu0 0.0
  %2225 = vmatprep.subr.mxu0 0.0
  %2226 = vmatpush1.msra.mxu0 0.0
  %2227 = vmatprep.subr.mxu0 0.0
  %2228 = vmatpush1.msra.mxu0 0.0
  %2229 = vmatprep.subr.mxu0 0.0
  %2230 = vmatpush1.msra.mxu0 0.0
  %2231 = vmatprep.subr.mxu0 0.0
  %2232 = vmatpush1.msra.mxu0 0.0
  %2233 = vmatprep.subr.mxu0 0.0
  %2234 = vmatpush1.msra.mxu0 0.0
  %2235 = vmatprep.subr.mxu0 0.0
  %2236 = vmatpush1.msra.mxu0 0.0
  %2237 = vmatprep.subr.mxu0 0.0
  %2238 = vmatpush1.msra.mxu0 0.0
  %2239 = vmatprep.subr.mxu0 0.0
  %2240 = vmatpush1.msra.mxu0 0.0
  %2241 = vmatprep.subr.mxu0 0.0
  %2242 = vmatpush1.msra.mxu0 0.0
  %2243 = vmatprep.subr.mxu0 0.0
  %2244 = vmatpush1.msra.mxu0 0.0
  %2245 = vmatprep.subr.mxu0 0.0
  %2246 = vmatpush1.msra.mxu0 0.0
  %2247 = vmatprep.subr.mxu0 0.0
  %2248 = vmatpush1.msra.mxu0 0.0
  %2249 = vmatprep.subr.mxu0 0.0
  %2250 = vmatpush1.msra.mxu0 0.0
  %2251 = vmatprep.mubr.f32.mxu0 0.0
  %2252 = vmatmul.mubr.f32.gmra.mrb[0].mxu0 %v2185
  %v2253 = vpop.f32.mrb[0].mxu0
  %v2254 = vadd.f32 0.0, %v2253
  %v2255 = vpop.f32.mrb[0].mxu0
  %2256 = vdwg.mxu0
  %2257 = vrot.lane.b32.xlu0 %v463, 64
  %v2258 = vpop.permute.xlu0 %2257
  %v2261 = vsel %vm486, %v1856, 0
  %2263 = vmatprep.subr.mxu0 0.0
  %2264 = vmatpush1.msra.mxu0 %v2258
  %2265 = vmatprep.subr.mxu0 0.0
  %2266 = vmatpush1.msra.mxu0 0.0
  %2267 = vmatprep.subr.mxu0 0.0
  %2268 = vmatpush1.msra.mxu0 0.0
  %2269 = vmatprep.subr.mxu0 0.0
  %2270 = vmatpush1.msra.mxu0 0.0
  %2271 = vmatprep.subr.mxu0 0.0
  %2272 = vmatpush1.msra.mxu0 0.0
  %2273 = vmatprep.subr.mxu0 0.0
  %2274 = vmatpush1.msra.mxu0 0.0
  %2275 = vmatprep.subr.mxu0 0.0
  %2276 = vmatpush1.msra.mxu0 0.0
  %2277 = vmatprep.subr.mxu0 0.0
  %2278 = vmatpush1.msra.mxu0 0.0
  %2279 = vmatprep.subr.mxu0 0.0
  %2280 = vmatpush1.msra.mxu0 0.0
  %2281 = vmatprep.subr.mxu0 0.0
  %2282 = vmatpush1.msra.mxu0 0.0
  %2283 = vmatprep.subr.mxu0 0.0
  %2284 = vmatpush1.msra.mxu0 0.0
  %2285 = vmatprep.subr.mxu0 0.0
  %2286 = vmatpush1.msra.mxu0 0.0
  %2287 = vmatprep.subr.mxu0 0.0
  %2288 = vmatpush1.msra.mxu0 0.0
  %2289 = vmatprep.subr.mxu0 0.0
  %2290 = vmatpush1.msra.mxu0 0.0
  %2291 = vmatprep.subr.mxu0 0.0
  %2292 = vmatpush1.msra.mxu0 0.0
  %2293 = vmatprep.subr.mxu0 0.0
  %2294 = vmatpush1.msra.mxu0 0.0
  %2295 = vmatprep.subr.mxu0 0.0
  %2296 = vmatpush1.msra.mxu0 0.0
  %2297 = vmatprep.subr.mxu0 0.0
  %2298 = vmatpush1.msra.mxu0 0.0
  %2299 = vmatprep.subr.mxu0 0.0
  %2300 = vmatpush1.msra.mxu0 0.0
  %2301 = vmatprep.subr.mxu0 0.0
  %2302 = vmatpush1.msra.mxu0 0.0
  %2303 = vmatprep.subr.mxu0 0.0
  %2304 = vmatpush1.msra.mxu0 0.0
  %2305 = vmatprep.subr.mxu0 0.0
  %2306 = vmatpush1.msra.mxu0 0.0
  %2307 = vmatprep.subr.mxu0 0.0
  %2308 = vmatpush1.msra.mxu0 0.0
  %2309 = vmatprep.subr.mxu0 0.0
  %2310 = vmatpush1.msra.mxu0 0.0
  %2311 = vmatprep.subr.mxu0 0.0
  %2312 = vmatpush1.msra.mxu0 0.0
  %2313 = vmatprep.subr.mxu0 0.0
  %2314 = vmatpush1.msra.mxu0 0.0
  %2315 = vmatprep.subr.mxu0 0.0
  %2316 = vmatpush1.msra.mxu0 0.0
  %2317 = vmatprep.subr.mxu0 0.0
  %2318 = vmatpush1.msra.mxu0 0.0
  %2319 = vmatprep.subr.mxu0 0.0
  %2320 = vmatpush1.msra.mxu0 0.0
  %2321 = vmatprep.subr.mxu0 0.0
  %2322 = vmatpush1.msra.mxu0 0.0
  %2323 = vmatprep.subr.mxu0 0.0
  %2324 = vmatpush1.msra.mxu0 0.0
  %2325 = vmatprep.subr.mxu0 0.0
  %2326 = vmatpush1.msra.mxu0 0.0
  %2327 = vmatprep.mubr.f32.mxu0 0.0
  %2328 = vmatmul.mubr.f32.gmra.mrb[0].mxu0 %v2261
  %v2329 = vpop.f32.mrb[0].mxu0
  %v2330 = vadd.f32 0.0, %v2329
  %v2331 = vpop.f32.mrb[0].mxu0
  %2332 = vdwg.mxu0
  %2333 = vrot.lane.b32.xlu0 %v465, 64
  %v2334 = vpop.permute.xlu0 %2333
  %v2337 = vsel %vm486, %v1858, 0
  %2339 = vmatprep.subr.mxu0 0.0
  %2340 = vmatpush1.msra.mxu0 %v2334
  %2341 = vmatprep.subr.mxu0 0.0
  %2342 = vmatpush1.msra.mxu0 0.0
  %2343 = vmatprep.subr.mxu0 0.0
  %2344 = vmatpush1.msra.mxu0 0.0
  %2345 = vmatprep.subr.mxu0 0.0
  %2346 = vmatpush1.msra.mxu0 0.0
  %2347 = vmatprep.subr.mxu0 0.0
  %2348 = vmatpush1.msra.mxu0 0.0
  %2349 = vmatprep.subr.mxu0 0.0
  %2350 = vmatpush1.msra.mxu0 0.0
  %2351 = vmatprep.subr.mxu0 0.0
  %2352 = vmatpush1.msra.mxu0 0.0
  %2353 = vmatprep.subr.mxu0 0.0
  %2354 = vmatpush1.msra.mxu0 0.0
  %2355 = vmatprep.subr.mxu0 0.0
  %2356 = vmatpush1.msra.mxu0 0.0
  %2357 = vmatprep.subr.mxu0 0.0
  %2358 = vmatpush1.msra.mxu0 0.0
  %2359 = vmatprep.subr.mxu0 0.0
  %2360 = vmatpush1.msra.mxu0 0.0
  %2361 = vmatprep.subr.mxu0 0.0
  %2362 = vmatpush1.msra.mxu0 0.0
  %2363 = vmatprep.subr.mxu0 0.0
  %2364 = vmatpush1.msra.mxu0 0.0
  %2365 = vmatprep.subr.mxu0 0.0
  %2366 = vmatpush1.msra.mxu0 0.0
  %2367 = vmatprep.subr.mxu0 0.0
  %2368 = vmatpush1.msra.mxu0 0.0
  %2369 = vmatprep.subr.mxu0 0.0
  %2370 = vmatpush1.msra.mxu0 0.0
  %2371 = vmatprep.subr.mxu0 0.0
  %2372 = vmatpush1.msra.mxu0 0.0
  %2373 = vmatprep.subr.mxu0 0.0
  %2374 = vmatpush1.msra.mxu0 0.0
  %2375 = vmatprep.subr.mxu0 0.0
  %2376 = vmatpush1.msra.mxu0 0.0
  %2377 = vmatprep.subr.mxu0 0.0
  %2378 = vmatpush1.msra.mxu0 0.0
  %2379 = vmatprep.subr.mxu0 0.0
  %2380 = vmatpush1.msra.mxu0 0.0
  %2381 = vmatprep.subr.mxu0 0.0
  %2382 = vmatpush1.msra.mxu0 0.0
  %2383 = vmatprep.subr.mxu0 0.0
  %2384 = vmatpush1.msra.mxu0 0.0
  %2385 = vmatprep.subr.mxu0 0.0
  %2386 = vmatpush1.msra.mxu0 0.0
  %2387 = vmatprep.subr.mxu0 0.0
  %2388 = vmatpush1.msra.mxu0 0.0
  %2389 = vmatprep.subr.mxu0 0.0
  %2390 = vmatpush1.msra.mxu0 0.0
  %2391 = vmatprep.subr.mxu0 0.0
  %2392 = vmatpush1.msra.mxu0 0.0
  %2393 = vmatprep.subr.mxu0 0.0
  %2394 = vmatpush1.msra.mxu0 0.0
  %2395 = vmatprep.subr.mxu0 0.0
  %2396 = vmatpush1.msra.mxu0 0.0
  %2397 = vmatprep.subr.mxu0 0.0
  %2398 = vmatpush1.msra.mxu0 0.0
  %2399 = vmatprep.subr.mxu0 0.0
  %2400 = vmatpush1.msra.mxu0 0.0
  %2401 = vmatprep.subr.mxu0 0.0
  %2402 = vmatpush1.msra.mxu0 0.0
  %2403 = vmatprep.mubr.f32.mxu0 0.0
  %2404 = vmatmul.mubr.f32.gmra.mrb[0].mxu0 %v2337
  %v2405 = vpop.f32.mrb[0].mxu0
  %v2406 = vadd.f32 0.0, %v2405
  %v2407 = vpop.f32.mrb[0].mxu0
  %2408 = vdwg.mxu0
  %2409 = vrot.lane.b32.xlu0 %v467, 64
  %v2410 = vpop.permute.xlu0 %2409
  %v2413 = vsel %vm486, %v1860, 0
  %2415 = vmatprep.subr.mxu0 0.0
  %2416 = vmatpush1.msra.mxu0 %v2410
  %2417 = vmatprep.subr.mxu0 0.0
  %2418 = vmatpush1.msra.mxu0 0.0
  %2419 = vmatprep.subr.mxu0 0.0
  %2420 = vmatpush1.msra.mxu0 0.0
  %2421 = vmatprep.subr.mxu0 0.0
  %2422 = vmatpush1.msra.mxu0 0.0
  %2423 = vmatprep.subr.mxu0 0.0
  %2424 = vmatpush1.msra.mxu0 0.0
  %2425 = vmatprep.subr.mxu0 0.0
  %2426 = vmatpush1.msra.mxu0 0.0
  %2427 = vmatprep.subr.mxu0 0.0
  %2428 = vmatpush1.msra.mxu0 0.0
  %2429 = vmatprep.subr.mxu0 0.0
  %2430 = vmatpush1.msra.mxu0 0.0
  %2431 = vmatprep.subr.mxu0 0.0
  %2432 = vmatpush1.msra.mxu0 0.0
  %2433 = vmatprep.subr.mxu0 0.0
  %2434 = vmatpush1.msra.mxu0 0.0
  %2435 = vmatprep.subr.mxu0 0.0
  %2436 = vmatpush1.msra.mxu0 0.0
  %2437 = vmatprep.subr.mxu0 0.0
  %2438 = vmatpush1.msra.mxu0 0.0
  %2439 = vmatprep.subr.mxu0 0.0
  %2440 = vmatpush1.msra.mxu0 0.0
  %2441 = vmatprep.subr.mxu0 0.0
  %2442 = vmatpush1.msra.mxu0 0.0
  %2443 = vmatprep.subr.mxu0 0.0
  %2444 = vmatpush1.msra.mxu0 0.0
  %2445 = vmatprep.subr.mxu0 0.0
  %2446 = vmatpush1.msra.mxu0 0.0
  %2447 = vmatprep.subr.mxu0 0.0
  %2448 = vmatpush1.msra.mxu0 0.0
  %2449 = vmatprep.subr.mxu0 0.0
  %2450 = vmatpush1.msra.mxu0 0.0
  %2451 = vmatprep.subr.mxu0 0.0
  %2452 = vmatpush1.msra.mxu0 0.0
  %2453 = vmatprep.subr.mxu0 0.0
  %2454 = vmatpush1.msra.mxu0 0.0
  %2455 = vmatprep.subr.mxu0 0.0
  %2456 = vmatpush1.msra.mxu0 0.0
  %2457 = vmatprep.subr.mxu0 0.0
  %2458 = vmatpush1.msra.mxu0 0.0
  %2459 = vmatprep.subr.mxu0 0.0
  %2460 = vmatpush1.msra.mxu0 0.0
  %2461 = vmatprep.subr.mxu0 0.0
  %2462 = vmatpush1.msra.mxu0 0.0
  %2463 = vmatprep.subr.mxu0 0.0
  %2464 = vmatpush1.msra.mxu0 0.0
  %2465 = vmatprep.subr.mxu0 0.0
  %2466 = vmatpush1.msra.mxu0 0.0
  %2467 = vmatprep.subr.mxu0 0.0
  %2468 = vmatpush1.msra.mxu0 0.0
  %2469 = vmatprep.subr.mxu0 0.0
  %2470 = vmatpush1.msra.mxu0 0.0
  %2471 = vmatprep.subr.mxu0 0.0
  %2472 = vmatpush1.msra.mxu0 0.0
  %2473 = vmatprep.subr.mxu0 0.0
  %2474 = vmatpush1.msra.mxu0 0.0
  %2475 = vmatprep.subr.mxu0 0.0
  %2476 = vmatpush1.msra.mxu0 0.0
  %2477 = vmatprep.subr.mxu0 0.0
  %2478 = vmatpush1.msra.mxu0 0.0
  %2479 = vmatprep.mubr.f32.mxu0 0.0
  %2480 = vmatmul.mubr.f32.gmra.mrb[0].mxu0 %v2413
  %v2481 = vpop.f32.mrb[0].mxu0
  %v2482 = vadd.f32 0.0, %v2481
  %v2483 = vpop.f32.mrb[0].mxu0
  %2484 = vdwg.mxu0
  %2485 = vrot.lane.b32.xlu0 %v469, 64
  %v2486 = vpop.permute.xlu0 %2485
  %v2489 = vsel %vm486, %v1862, 0
  %2491 = vmatprep.subr.mxu0 0.0
  %2492 = vmatpush1.msra.mxu0 %v2486
  %2493 = vmatprep.subr.mxu0 0.0
  %2494 = vmatpush1.msra.mxu0 0.0
  %2495 = vmatprep.subr.mxu0 0.0
  %2496 = vmatpush1.msra.mxu0 0.0
  %2497 = vmatprep.subr.mxu0 0.0
  %2498 = vmatpush1.msra.mxu0 0.0
  %2499 = vmatprep.subr.mxu0 0.0
  %2500 = vmatpush1.msra.mxu0 0.0
  %2501 = vmatprep.subr.mxu0 0.0
  %2502 = vmatpush1.msra.mxu0 0.0
  %2503 = vmatprep.subr.mxu0 0.0
  %2504 = vmatpush1.msra.mxu0 0.0
  %2505 = vmatprep.subr.mxu0 0.0
  %2506 = vmatpush1.msra.mxu0 0.0
  %2507 = vmatprep.subr.mxu0 0.0
  %2508 = vmatpush1.msra.mxu0 0.0
  %2509 = vmatprep.subr.mxu0 0.0
  %2510 = vmatpush1.msra.mxu0 0.0
  %2511 = vmatprep.subr.mxu0 0.0
  %2512 = vmatpush1.msra.mxu0 0.0
  %2513 = vmatprep.subr.mxu0 0.0
  %2514 = vmatpush1.msra.mxu0 0.0
  %2515 = vmatprep.subr.mxu0 0.0
  %2516 = vmatpush1.msra.mxu0 0.0
  %2517 = vmatprep.subr.mxu0 0.0
  %2518 = vmatpush1.msra.mxu0 0.0
  %2519 = vmatprep.subr.mxu0 0.0
  %2520 = vmatpush1.msra.mxu0 0.0
  %2521 = vmatprep.subr.mxu0 0.0
  %2522 = vmatpush1.msra.mxu0 0.0
  %2523 = vmatprep.subr.mxu0 0.0
  %2524 = vmatpush1.msra.mxu0 0.0
  %2525 = vmatprep.subr.mxu0 0.0
  %2526 = vmatpush1.msra.mxu0 0.0
  %2527 = vmatprep.subr.mxu0 0.0
  %2528 = vmatpush1.msra.mxu0 0.0
  %2529 = vmatprep.subr.mxu0 0.0
  %2530 = vmatpush1.msra.mxu0 0.0
  %2531 = vmatprep.subr.mxu0 0.0
  %2532 = vmatpush1.msra.mxu0 0.0
  %2533 = vmatprep.subr.mxu0 0.0
  %2534 = vmatpush1.msra.mxu0 0.0
  %2535 = vmatprep.subr.mxu0 0.0
  %2536 = vmatpush1.msra.mxu0 0.0
  %2537 = vmatprep.subr.mxu0 0.0
  %2538 = vmatpush1.msra.mxu0 0.0
  %2539 = vmatprep.subr.mxu0 0.0
  %2540 = vmatpush1.msra.mxu0 0.0
  %2541 = vmatprep.subr.mxu0 0.0
  %2542 = vmatpush1.msra.mxu0 0.0
  %2543 = vmatprep.subr.mxu0 0.0
  %2544 = vmatpush1.msra.mxu0 0.0
  %2545 = vmatprep.subr.mxu0 0.0
  %2546 = vmatpush1.msra.mxu0 0.0
  %2547 = vmatprep.subr.mxu0 0.0
  %2548 = vmatpush1.msra.mxu0 0.0
  %2549 = vmatprep.subr.mxu0 0.0
  %2550 = vmatpush1.msra.mxu0 0.0
  %2551 = vmatprep.subr.mxu0 0.0
  %2552 = vmatpush1.msra.mxu0 0.0
  %2553 = vmatprep.subr.mxu0 0.0
  %2554 = vmatpush1.msra.mxu0 0.0
  %2555 = vmatprep.mubr.f32.mxu0 0.0
  %2556 = vmatmul.mubr.f32.gmra.mrb[0].mxu0 %v2489
  %v2557 = vpop.f32.mrb[0].mxu0
  %v2558 = vadd.f32 0.0, %v2557
  %v2559 = vpop.f32.mrb[0].mxu0
  %2560 = vdwg.mxu0
  %2561 = vrot.lane.b32.xlu0 %v471, 64
  %v2562 = vpop.permute.xlu0 %2561
  %v2565 = vsel %vm486, %v1864, 0
  %2567 = vmatprep.subr.mxu0 0.0
  %2568 = vmatpush1.msra.mxu0 %v2562
  %2569 = vmatprep.subr.mxu0 0.0
  %2570 = vmatpush1.msra.mxu0 0.0
  %2571 = vmatprep.subr.mxu0 0.0
  %2572 = vmatpush1.msra.mxu0 0.0
  %2573 = vmatprep.subr.mxu0 0.0
  %2574 = vmatpush1.msra.mxu0 0.0
  %2575 = vmatprep.subr.mxu0 0.0
  %2576 = vmatpush1.msra.mxu0 0.0
  %2577 = vmatprep.subr.mxu0 0.0
  %2578 = vmatpush1.msra.mxu0 0.0
  %2579 = vmatprep.subr.mxu0 0.0
  %2580 = vmatpush1.msra.mxu0 0.0
  %2581 = vmatprep.subr.mxu0 0.0
  %2582 = vmatpush1.msra.mxu0 0.0
  %2583 = vmatprep.subr.mxu0 0.0
  %2584 = vmatpush1.msra.mxu0 0.0
  %2585 = vmatprep.subr.mxu0 0.0
  %2586 = vmatpush1.msra.mxu0 0.0
  %2587 = vmatprep.subr.mxu0 0.0
  %2588 = vmatpush1.msra.mxu0 0.0
  %2589 = vmatprep.subr.mxu0 0.0
  %2590 = vmatpush1.msra.mxu0 0.0
  %2591 = vmatprep.subr.mxu0 0.0
  %2592 = vmatpush1.msra.mxu0 0.0
  %2593 = vmatprep.subr.mxu0 0.0
  %2594 = vmatpush1.msra.mxu0 0.0
  %2595 = vmatprep.subr.mxu0 0.0
  %2596 = vmatpush1.msra.mxu0 0.0
  %2597 = vmatprep.subr.mxu0 0.0
  %2598 = vmatpush1.msra.mxu0 0.0
  %2599 = vmatprep.subr.mxu0 0.0
  %2600 = vmatpush1.msra.mxu0 0.0
  %2601 = vmatprep.subr.mxu0 0.0
  %2602 = vmatpush1.msra.mxu0 0.0
  %2603 = vmatprep.subr.mxu0 0.0
  %2604 = vmatpush1.msra.mxu0 0.0
  %2605 = vmatprep.subr.mxu0 0.0
  %2606 = vmatpush1.msra.mxu0 0.0
  %2607 = vmatprep.subr.mxu0 0.0
  %2608 = vmatpush1.msra.mxu0 0.0
  %2609 = vmatprep.subr.mxu0 0.0
  %2610 = vmatpush1.msra.mxu0 0.0
  %2611 = vmatprep.subr.mxu0 0.0
  %2612 = vmatpush1.msra.mxu0 0.0
  %2613 = vmatprep.subr.mxu0 0.0
  %2614 = vmatpush1.msra.mxu0 0.0
  %2615 = vmatprep.subr.mxu0 0.0
  %2616 = vmatpush1.msra.mxu0 0.0
  %2617 = vmatprep.subr.mxu0 0.0
  %2618 = vmatpush1.msra.mxu0 0.0
  %2619 = vmatprep.subr.mxu0 0.0
  %2620 = vmatpush1.msra.mxu0 0.0
  %2621 = vmatprep.subr.mxu0 0.0
  %2622 = vmatpush1.msra.mxu0 0.0
  %2623 = vmatprep.subr.mxu0 0.0
  %2624 = vmatpush1.msra.mxu0 0.0
  %2625 = vmatprep.subr.mxu0 0.0
  %2626 = vmatpush1.msra.mxu0 0.0
  %2627 = vmatprep.subr.mxu0 0.0
  %2628 = vmatpush1.msra.mxu0 0.0
  %2629 = vmatprep.subr.mxu0 0.0
  %2630 = vmatpush1.msra.mxu0 0.0
  %2631 = vmatprep.mubr.f32.mxu0 0.0
  %2632 = vmatmul.mubr.f32.gmra.mrb[0].mxu0 %v2565
  %v2633 = vpop.f32.mrb[0].mxu0
  %v2634 = vadd.f32 0.0, %v2633
  %v2635 = vpop.f32.mrb[0].mxu0
  %2636 = vdwg.mxu0
  %2637 = vrot.lane.b32.xlu0 %v473, 64
  %v2638 = vpop.permute.xlu0 %2637
  %v2641 = vsel %vm486, %v1866, 0
  %2643 = vmatprep.subr.mxu0 0.0
  %2644 = vmatpush1.msra.mxu0 %v2638
  %2645 = vmatprep.subr.mxu0 0.0
  %2646 = vmatpush1.msra.mxu0 0.0
  %2647 = vmatprep.subr.mxu0 0.0
  %2648 = vmatpush1.msra.mxu0 0.0
  %2649 = vmatprep.subr.mxu0 0.0
  %2650 = vmatpush1.msra.mxu0 0.0
  %2651 = vmatprep.subr.mxu0 0.0
  %2652 = vmatpush1.msra.mxu0 0.0
  %2653 = vmatprep.subr.mxu0 0.0
  %2654 = vmatpush1.msra.mxu0 0.0
  %2655 = vmatprep.subr.mxu0 0.0
  %2656 = vmatpush1.msra.mxu0 0.0
  %2657 = vmatprep.subr.mxu0 0.0
  %2658 = vmatpush1.msra.mxu0 0.0
  %2659 = vmatprep.subr.mxu0 0.0
  %2660 = vmatpush1.msra.mxu0 0.0
  %2661 = vmatprep.subr.mxu0 0.0
  %2662 = vmatpush1.msra.mxu0 0.0
  %2663 = vmatprep.subr.mxu0 0.0
  %2664 = vmatpush1.msra.mxu0 0.0
  %2665 = vmatprep.subr.mxu0 0.0
  %2666 = vmatpush1.msra.mxu0 0.0
  %2667 = vmatprep.subr.mxu0 0.0
  %2668 = vmatpush1.msra.mxu0 0.0
  %2669 = vmatprep.subr.mxu0 0.0
  %2670 = vmatpush1.msra.mxu0 0.0
  %2671 = vmatprep.subr.mxu0 0.0
  %2672 = vmatpush1.msra.mxu0 0.0
  %2673 = vmatprep.subr.mxu0 0.0
  %2674 = vmatpush1.msra.mxu0 0.0
  %2675 = vmatprep.subr.mxu0 0.0
  %2676 = vmatpush1.msra.mxu0 0.0
  %2677 = vmatprep.subr.mxu0 0.0
  %2678 = vmatpush1.msra.mxu0 0.0
  %2679 = vmatprep.subr.mxu0 0.0
  %2680 = vmatpush1.msra.mxu0 0.0
  %2681 = vmatprep.subr.mxu0 0.0
  %2682 = vmatpush1.msra.mxu0 0.0
  %2683 = vmatprep.subr.mxu0 0.0
  %2684 = vmatpush1.msra.mxu0 0.0
  %2685 = vmatprep.subr.mxu0 0.0
  %2686 = vmatpush1.msra.mxu0 0.0
  %2687 = vmatprep.subr.mxu0 0.0
  %2688 = vmatpush1.msra.mxu0 0.0
  %2689 = vmatprep.subr.mxu0 0.0
  %2690 = vmatpush1.msra.mxu0 0.0
  %2691 = vmatprep.subr.mxu0 0.0
  %2692 = vmatpush1.msra.mxu0 0.0
  %2693 = vmatprep.subr.mxu0 0.0
  %2694 = vmatpush1.msra.mxu0 0.0
  %2695 = vmatprep.subr.mxu0 0.0
  %2696 = vmatpush1.msra.mxu0 0.0
  %2697 = vmatprep.subr.mxu0 0.0
  %2698 = vmatpush1.msra.mxu0 0.0
  %2699 = vmatprep.subr.mxu0 0.0
  %2700 = vmatpush1.msra.mxu0 0.0
  %2701 = vmatprep.subr.mxu0 0.0
  %2702 = vmatpush1.msra.mxu0 0.0
  %2703 = vmatprep.subr.mxu0 0.0
  %2704 = vmatpush1.msra.mxu0 0.0
  %2705 = vmatprep.subr.mxu0 0.0
  %2706 = vmatpush1.msra.mxu0 0.0
  %2707 = vmatprep.mubr.f32.mxu0 0.0
  %2708 = vmatmul.mubr.f32.gmra.mrb[0].mxu0 %v2641
  %v2709 = vpop.f32.mrb[0].mxu0
  %v2710 = vadd.f32 0.0, %v2709
  %v2711 = vpop.f32.mrb[0].mxu0
  %2712 = vdwg.mxu0
  %2713 = vrot.lane.b32.xlu0 %v475, 64
  %v2714 = vpop.permute.xlu0 %2713
  %v2717 = vsel %vm486, %v1868, 0
  %2719 = vmatprep.subr.mxu0 0.0
  %2720 = vmatpush1.msra.mxu0 %v2714
  %2721 = vmatprep.subr.mxu0 0.0
  %2722 = vmatpush1.msra.mxu0 0.0
  %2723 = vmatprep.subr.mxu0 0.0
  %2724 = vmatpush1.msra.mxu0 0.0
  %2725 = vmatprep.subr.mxu0 0.0
  %2726 = vmatpush1.msra.mxu0 0.0
  %2727 = vmatprep.subr.mxu0 0.0
  %2728 = vmatpush1.msra.mxu0 0.0
  %2729 = vmatprep.subr.mxu0 0.0
  %2730 = vmatpush1.msra.mxu0 0.0
  %2731 = vmatprep.subr.mxu0 0.0
  %2732 = vmatpush1.msra.mxu0 0.0
  %2733 = vmatprep.subr.mxu0 0.0
  %2734 = vmatpush1.msra.mxu0 0.0
  %2735 = vmatprep.subr.mxu0 0.0
  %2736 = vmatpush1.msra.mxu0 0.0
  %2737 = vmatprep.subr.mxu0 0.0
  %2738 = vmatpush1.msra.mxu0 0.0
  %2739 = vmatprep.subr.mxu0 0.0
  %2740 = vmatpush1.msra.mxu0 0.0
  %2741 = vmatprep.subr.mxu0 0.0
  %2742 = vmatpush1.msra.mxu0 0.0
  %2743 = vmatprep.subr.mxu0 0.0
  %2744 = vmatpush1.msra.mxu0 0.0
  %2745 = vmatprep.subr.mxu0 0.0
  %2746 = vmatpush1.msra.mxu0 0.0
  %2747 = vmatprep.subr.mxu0 0.0
  %2748 = vmatpush1.msra.mxu0 0.0
  %2749 = vmatprep.subr.mxu0 0.0
  %2750 = vmatpush1.msra.mxu0 0.0
  %2751 = vmatprep.subr.mxu0 0.0
  %2752 = vmatpush1.msra.mxu0 0.0
  %2753 = vmatprep.subr.mxu0 0.0
  %2754 = vmatpush1.msra.mxu0 0.0
  %2755 = vmatprep.subr.mxu0 0.0
  %2756 = vmatpush1.msra.mxu0 0.0
  %2757 = vmatprep.subr.mxu0 0.0
  %2758 = vmatpush1.msra.mxu0 0.0
  %2759 = vmatprep.subr.mxu0 0.0
  %2760 = vmatpush1.msra.mxu0 0.0
  %2761 = vmatprep.subr.mxu0 0.0
  %2762 = vmatpush1.msra.mxu0 0.0
  %2763 = vmatprep.subr.mxu0 0.0
  %2764 = vmatpush1.msra.mxu0 0.0
  %2765 = vmatprep.subr.mxu0 0.0
  %2766 = vmatpush1.msra.mxu0 0.0
  %2767 = vmatprep.subr.mxu0 0.0
  %2768 = vmatpush1.msra.mxu0 0.0
  %2769 = vmatprep.subr.mxu0 0.0
  %2770 = vmatpush1.msra.mxu0 0.0
  %2771 = vmatprep.subr.mxu0 0.0
  %2772 = vmatpush1.msra.mxu0 0.0
  %2773 = vmatprep.subr.mxu0 0.0
  %2774 = vmatpush1.msra.mxu0 0.0
  %2775 = vmatprep.subr.mxu0 0.0
  %2776 = vmatpush1.msra.mxu0 0.0
  %2777 = vmatprep.subr.mxu0 0.0
  %2778 = vmatpush1.msra.mxu0 0.0
  %2779 = vmatprep.subr.mxu0 0.0
  %2780 = vmatpush1.msra.mxu0 0.0
  %2781 = vmatprep.subr.mxu0 0.0
  %2782 = vmatpush1.msra.mxu0 0.0
  %2783 = vmatprep.mubr.f32.mxu0 0.0
  %2784 = vmatmul.mubr.f32.gmra.mrb[0].mxu0 %v2717
  %v2785 = vpop.f32.mrb[0].mxu0
  %v2786 = vadd.f32 0.0, %v2785
  %v2787 = vpop.f32.mrb[0].mxu0
  %2788 = vdwg.mxu0
  %2789 = vrot.lane.b32.xlu0 %v477, 64
  %v2790 = vpop.permute.xlu0 %2789
  %v2793 = vsel %vm486, %v1870, 0
  %2795 = vmatprep.subr.mxu0 0.0
  %2796 = vmatpush1.msra.mxu0 %v2790
  %2797 = vmatprep.subr.mxu0 0.0
  %2798 = vmatpush1.msra.mxu0 0.0
  %2799 = vmatprep.subr.mxu0 0.0
  %2800 = vmatpush1.msra.mxu0 0.0
  %2801 = vmatprep.subr.mxu0 0.0
  %2802 = vmatpush1.msra.mxu0 0.0
  %2803 = vmatprep.subr.mxu0 0.0
  %2804 = vmatpush1.msra.mxu0 0.0
  %2805 = vmatprep.subr.mxu0 0.0
  %2806 = vmatpush1.msra.mxu0 0.0
  %2807 = vmatprep.subr.mxu0 0.0
  %2808 = vmatpush1.msra.mxu0 0.0
  %2809 = vmatprep.subr.mxu0 0.0
  %2810 = vmatpush1.msra.mxu0 0.0
  %2811 = vmatprep.subr.mxu0 0.0
  %2812 = vmatpush1.msra.mxu0 0.0
  %2813 = vmatprep.subr.mxu0 0.0
  %2814 = vmatpush1.msra.mxu0 0.0
  %2815 = vmatprep.subr.mxu0 0.0
  %2816 = vmatpush1.msra.mxu0 0.0
  %2817 = vmatprep.subr.mxu0 0.0
  %2818 = vmatpush1.msra.mxu0 0.0
  %2819 = vmatprep.subr.mxu0 0.0
  %2820 = vmatpush1.msra.mxu0 0.0
  %2821 = vmatprep.subr.mxu0 0.0
  %2822 = vmatpush1.msra.mxu0 0.0
  %2823 = vmatprep.subr.mxu0 0.0
  %2824 = vmatpush1.msra.mxu0 0.0
  %2825 = vmatprep.subr.mxu0 0.0
  %2826 = vmatpush1.msra.mxu0 0.0
  %2827 = vmatprep.subr.mxu0 0.0
  %2828 = vmatpush1.msra.mxu0 0.0
  %2829 = vmatprep.subr.mxu0 0.0
  %2830 = vmatpush1.msra.mxu0 0.0
  %2831 = vmatprep.subr.mxu0 0.0
  %2832 = vmatpush1.msra.mxu0 0.0
  %2833 = vmatprep.subr.mxu0 0.0
  %2834 = vmatpush1.msra.mxu0 0.0
  %2835 = vmatprep.subr.mxu0 0.0
  %2836 = vmatpush1.msra.mxu0 0.0
  %2837 = vmatprep.subr.mxu0 0.0
  %2838 = vmatpush1.msra.mxu0 0.0
  %2839 = vmatprep.subr.mxu0 0.0
  %2840 = vmatpush1.msra.mxu0 0.0
  %2841 = vmatprep.subr.mxu0 0.0
  %2842 = vmatpush1.msra.mxu0 0.0
  %2843 = vmatprep.subr.mxu0 0.0
  %2844 = vmatpush1.msra.mxu0 0.0
  %2845 = vmatprep.subr.mxu0 0.0
  %2846 = vmatpush1.msra.mxu0 0.0
  %2847 = vmatprep.subr.mxu0 0.0
  %2848 = vmatpush1.msra.mxu0 0.0
  %2849 = vmatprep.subr.mxu0 0.0
  %2850 = vmatpush1.msra.mxu0 0.0
  %2851 = vmatprep.subr.mxu0 0.0
  %2852 = vmatpush1.msra.mxu0 0.0
  %2853 = vmatprep.subr.mxu0 0.0
  %2854 = vmatpush1.msra.mxu0 0.0
  %2855 = vmatprep.subr.mxu0 0.0
  %2856 = vmatpush1.msra.mxu0 0.0
  %2857 = vmatprep.subr.mxu0 0.0
  %2858 = vmatpush1.msra.mxu0 0.0
  %2859 = vmatprep.mubr.f32.mxu0 0.0
  %2860 = vmatmul.mubr.f32.gmra.mrb[0].mxu0 %v2793
  %v2861 = vpop.f32.mrb[0].mxu0
  %v2862 = vadd.f32 0.0, %v2861
  %v2863 = vpop.f32.mrb[0].mxu0
  %2864 = vdwg.mxu0
  %2865 = vrot.lane.b32.xlu0 %v479, 64
  %v2866 = vpop.permute.xlu0 %2865
  %v2869 = vsel %vm486, %v1872, 0
  %2871 = vmatprep.subr.mxu0 0.0
  %2872 = vmatpush1.msra.mxu0 %v2866
  %2873 = vmatprep.subr.mxu0 0.0
  %2874 = vmatpush1.msra.mxu0 0.0
  %2875 = vmatprep.subr.mxu0 0.0
  %2876 = vmatpush1.msra.mxu0 0.0
  %2877 = vmatprep.subr.mxu0 0.0
  %2878 = vmatpush1.msra.mxu0 0.0
  %2879 = vmatprep.subr.mxu0 0.0
  %2880 = vmatpush1.msra.mxu0 0.0
  %2881 = vmatprep.subr.mxu0 0.0
  %2882 = vmatpush1.msra.mxu0 0.0
  %2883 = vmatprep.subr.mxu0 0.0
  %2884 = vmatpush1.msra.mxu0 0.0
  %2885 = vmatprep.subr.mxu0 0.0
  %2886 = vmatpush1.msra.mxu0 0.0
  %2887 = vmatprep.subr.mxu0 0.0
  %2888 = vmatpush1.msra.mxu0 0.0
  %2889 = vmatprep.subr.mxu0 0.0
  %2890 = vmatpush1.msra.mxu0 0.0
  %2891 = vmatprep.subr.mxu0 0.0
  %2892 = vmatpush1.msra.mxu0 0.0
  %2893 = vmatprep.subr.mxu0 0.0
  %2894 = vmatpush1.msra.mxu0 0.0
  %2895 = vmatprep.subr.mxu0 0.0
  %2896 = vmatpush1.msra.mxu0 0.0
  %2897 = vmatprep.subr.mxu0 0.0
  %2898 = vmatpush1.msra.mxu0 0.0
  %2899 = vmatprep.subr.mxu0 0.0
  %2900 = vmatpush1.msra.mxu0 0.0
  %2901 = vmatprep.subr.mxu0 0.0
  %2902 = vmatpush1.msra.mxu0 0.0
  %2903 = vmatprep.subr.mxu0 0.0
  %2904 = vmatpush1.msra.mxu0 0.0
  %2905 = vmatprep.subr.mxu0 0.0
  %2906 = vmatpush1.msra.mxu0 0.0
  %2907 = vmatprep.subr.mxu0 0.0
  %2908 = vmatpush1.msra.mxu0 0.0
  %2909 = vmatprep.subr.mxu0 0.0
  %2910 = vmatpush1.msra.mxu0 0.0
  %2911 = vmatprep.subr.mxu0 0.0
  %2912 = vmatpush1.msra.mxu0 0.0
  %2913 = vmatprep.subr.mxu0 0.0
  %2914 = vmatpush1.msra.mxu0 0.0
  %2915 = vmatprep.subr.mxu0 0.0
  %2916 = vmatpush1.msra.mxu0 0.0
  %2917 = vmatprep.subr.mxu0 0.0
  %2918 = vmatpush1.msra.mxu0 0.0
  %2919 = vmatprep.subr.mxu0 0.0
  %2920 = vmatpush1.msra.mxu0 0.0
  %2921 = vmatprep.subr.mxu0 0.0
  %2922 = vmatpush1.msra.mxu0 0.0
  %2923 = vmatprep.subr.mxu0 0.0
  %2924 = vmatpush1.msra.mxu0 0.0
  %2925 = vmatprep.subr.mxu0 0.0
  %2926 = vmatpush1.msra.mxu0 0.0
  %2927 = vmatprep.subr.mxu0 0.0
  %2928 = vmatpush1.msra.mxu0 0.0
  %2929 = vmatprep.subr.mxu0 0.0
  %2930 = vmatpush1.msra.mxu0 0.0
  %2931 = vmatprep.subr.mxu0 0.0
  %2932 = vmatpush1.msra.mxu0 0.0
  %2933 = vmatprep.subr.mxu0 0.0
  %2934 = vmatpush1.msra.mxu0 0.0
  %2935 = vmatprep.mubr.f32.mxu0 0.0
  %2936 = vmatmul.mubr.f32.gmra.mrb[0].mxu0 %v2869
  %v2937 = vpop.f32.mrb[0].mxu0
  %v2938 = vadd.f32 0.0, %v2937
  %v2939 = vpop.f32.mrb[0].mxu0
  %2940 = vdwg.mxu0
  %2941 = vrot.lane.b32.xlu0 %v481, 64
  %v2942 = vpop.permute.xlu0 %2941
  %v2945 = vsel %vm486, %v1874, 0
  %2947 = vmatprep.subr.mxu0 0.0
  %2948 = vmatpush1.msra.mxu0 %v2942
  %2949 = vmatprep.subr.mxu0 0.0
  %2950 = vmatpush1.msra.mxu0 0.0
  %2951 = vmatprep.subr.mxu0 0.0
  %2952 = vmatpush1.msra.mxu0 0.0
  %2953 = vmatprep.subr.mxu0 0.0
  %2954 = vmatpush1.msra.mxu0 0.0
  %2955 = vmatprep.subr.mxu0 0.0
  %2956 = vmatpush1.msra.mxu0 0.0
  %2957 = vmatprep.subr.mxu0 0.0
  %2958 = vmatpush1.msra.mxu0 0.0
  %2959 = vmatprep.subr.mxu0 0.0
  %2960 = vmatpush1.msra.mxu0 0.0
  %2961 = vmatprep.subr.mxu0 0.0
  %2962 = vmatpush1.msra.mxu0 0.0
  %2963 = vmatprep.subr.mxu0 0.0
  %2964 = vmatpush1.msra.mxu0 0.0
  %2965 = vmatprep.subr.mxu0 0.0
  %2966 = vmatpush1.msra.mxu0 0.0
  %2967 = vmatprep.subr.mxu0 0.0
  %2968 = vmatpush1.msra.mxu0 0.0
  %2969 = vmatprep.subr.mxu0 0.0
  %2970 = vmatpush1.msra.mxu0 0.0
  %2971 = vmatprep.subr.mxu0 0.0
  %2972 = vmatpush1.msra.mxu0 0.0
  %2973 = vmatprep.subr.mxu0 0.0
  %2974 = vmatpush1.msra.mxu0 0.0
  %2975 = vmatprep.subr.mxu0 0.0
  %2976 = vmatpush1.msra.mxu0 0.0
  %2977 = vmatprep.subr.mxu0 0.0
  %2978 = vmatpush1.msra.mxu0 0.0
  %2979 = vmatprep.subr.mxu0 0.0
  %2980 = vmatpush1.msra.mxu0 0.0
  %2981 = vmatprep.subr.mxu0 0.0
  %2982 = vmatpush1.msra.mxu0 0.0
  %2983 = vmatprep.subr.mxu0 0.0
  %2984 = vmatpush1.msra.mxu0 0.0
  %2985 = vmatprep.subr.mxu0 0.0
  %2986 = vmatpush1.msra.mxu0 0.0
  %2987 = vmatprep.subr.mxu0 0.0
  %2988 = vmatpush1.msra.mxu0 0.0
  %2989 = vmatprep.subr.mxu0 0.0
  %2990 = vmatpush1.msra.mxu0 0.0
  %2991 = vmatprep.subr.mxu0 0.0
  %2992 = vmatpush1.msra.mxu0 0.0
  %2993 = vmatprep.subr.mxu0 0.0
  %2994 = vmatpush1.msra.mxu0 0.0
  %2995 = vmatprep.subr.mxu0 0.0
  %2996 = vmatpush1.msra.mxu0 0.0
  %2997 = vmatprep.subr.mxu0 0.0
  %2998 = vmatpush1.msra.mxu0 0.0
  %2999 = vmatprep.subr.mxu0 0.0
  %3000 = vmatpush1.msra.mxu0 0.0
  %3001 = vmatprep.subr.mxu0 0.0
  %3002 = vmatpush1.msra.mxu0 0.0
  %3003 = vmatprep.subr.mxu0 0.0
  %3004 = vmatpush1.msra.mxu0 0.0
  %3005 = vmatprep.subr.mxu0 0.0
  %3006 = vmatpush1.msra.mxu0 0.0
  %3007 = vmatprep.subr.mxu0 0.0
  %3008 = vmatpush1.msra.mxu0 0.0
  %3009 = vmatprep.subr.mxu0 0.0
  %3010 = vmatpush1.msra.mxu0 0.0
  %3011 = vmatprep.mubr.f32.mxu0 0.0
  %3012 = vmatmul.mubr.f32.gmra.mrb[0].mxu0 %v2945
  %v3013 = vpop.f32.mrb[0].mxu0
  %v3014 = vadd.f32 0.0, %v3013
  %v3015 = vpop.f32.mrb[0].mxu0
  %3016 = vdwg.mxu0
  %3017 = vrot.lane.b32.xlu0 %v483, 64
  %v3018 = vpop.permute.xlu0 %3017
  %v3021 = vsel %vm486, %v1876, 0
  %3023 = vmatprep.subr.mxu0 0.0
  %3024 = vmatpush1.msra.mxu0 %v3018
  %3025 = vmatprep.subr.mxu0 0.0
  %3026 = vmatpush1.msra.mxu0 0.0
  %3027 = vmatprep.subr.mxu0 0.0
  %3028 = vmatpush1.msra.mxu0 0.0
  %3029 = vmatprep.subr.mxu0 0.0
  %3030 = vmatpush1.msra.mxu0 0.0
  %3031 = vmatprep.subr.mxu0 0.0
  %3032 = vmatpush1.msra.mxu0 0.0
  %3033 = vmatprep.subr.mxu0 0.0
  %3034 = vmatpush1.msra.mxu0 0.0
  %3035 = vmatprep.subr.mxu0 0.0
  %3036 = vmatpush1.msra.mxu0 0.0
  %3037 = vmatprep.subr.mxu0 0.0
  %3038 = vmatpush1.msra.mxu0 0.0
  %3039 = vmatprep.subr.mxu0 0.0
  %3040 = vmatpush1.msra.mxu0 0.0
  %3041 = vmatprep.subr.mxu0 0.0
  %3042 = vmatpush1.msra.mxu0 0.0
  %3043 = vmatprep.subr.mxu0 0.0
  %3044 = vmatpush1.msra.mxu0 0.0
  %3045 = vmatprep.subr.mxu0 0.0
  %3046 = vmatpush1.msra.mxu0 0.0
  %3047 = vmatprep.subr.mxu0 0.0
  %3048 = vmatpush1.msra.mxu0 0.0
  %3049 = vmatprep.subr.mxu0 0.0
  %3050 = vmatpush1.msra.mxu0 0.0
  %3051 = vmatprep.subr.mxu0 0.0
  %3052 = vmatpush1.msra.mxu0 0.0
  %3053 = vmatprep.subr.mxu0 0.0
  %3054 = vmatpush1.msra.mxu0 0.0
  %3055 = vmatprep.subr.mxu0 0.0
  %3056 = vmatpush1.msra.mxu0 0.0
  %3057 = vmatprep.subr.mxu0 0.0
  %3058 = vmatpush1.msra.mxu0 0.0
  %3059 = vmatprep.subr.mxu0 0.0
  %3060 = vmatpush1.msra.mxu0 0.0
  %3061 = vmatprep.subr.mxu0 0.0
  %3062 = vmatpush1.msra.mxu0 0.0
  %3063 = vmatprep.subr.mxu0 0.0
  %3064 = vmatpush1.msra.mxu0 0.0
  %3065 = vmatprep.subr.mxu0 0.0
  %3066 = vmatpush1.msra.mxu0 0.0
  %3067 = vmatprep.subr.mxu0 0.0
  %3068 = vmatpush1.msra.mxu0 0.0
  %3069 = vmatprep.subr.mxu0 0.0
  %3070 = vmatpush1.msra.mxu0 0.0
  %3071 = vmatprep.subr.mxu0 0.0
  %3072 = vmatpush1.msra.mxu0 0.0
  %3073 = vmatprep.subr.mxu0 0.0
  %3074 = vmatpush1.msra.mxu0 0.0
  %3075 = vmatprep.subr.mxu0 0.0
  %3076 = vmatpush1.msra.mxu0 0.0
  %3077 = vmatprep.subr.mxu0 0.0
  %3078 = vmatpush1.msra.mxu0 0.0
  %3079 = vmatprep.subr.mxu0 0.0
  %3080 = vmatpush1.msra.mxu0 0.0
  %3081 = vmatprep.subr.mxu0 0.0
  %3082 = vmatpush1.msra.mxu0 0.0
  %3083 = vmatprep.subr.mxu0 0.0
  %3084 = vmatpush1.msra.mxu0 0.0
  %3085 = vmatprep.subr.mxu0 0.0
  %3086 = vmatpush1.msra.mxu0 0.0
  %3087 = vmatprep.mubr.f32.mxu0 0.0
  %3088 = vmatmul.mubr.f32.gmra.mrb[0].mxu0 %v3021
  %v3089 = vpop.f32.mrb[0].mxu0
  %v3090 = vadd.f32 0.0, %v3089
  %v3091 = vpop.f32.mrb[0].mxu0
  %3092 = vdwg.mxu0
  %3097 = vrot.lane.b32.xlu0 %v2254, 8
  %v3098 = vpop.permute.xlu0 %3097
  %3099 = vrot.lane.b32.xlu0 %v2330, 8
  %v3100 = vpop.permute.xlu0 %3099
  %3101 = vrot.lane.b32.xlu0 %v2406, 8
  %v3102 = vpop.permute.xlu0 %3101
  %3103 = vrot.lane.b32.xlu0 %v2482, 8
  %v3104 = vpop.permute.xlu0 %3103
  %3113 = vrot.lane.b32.xlu0 %v2558, 16
  %v3114 = vpop.permute.xlu0 %3113
  %3115 = vrot.lane.b32.xlu0 %v2634, 16
  %v3116 = vpop.permute.xlu0 %3115
  %3117 = vrot.lane.b32.xlu0 %v2710, 16
  %v3118 = vpop.permute.xlu0 %3117
  %3119 = vrot.lane.b32.xlu0 %v2786, 16
  %v3120 = vpop.permute.xlu0 %3119
  %3129 = vrot.lane.b32.xlu0 %v2862, 24
  %v3130 = vpop.permute.xlu0 %3129
  %3131 = vrot.lane.b32.xlu0 %v2938, 24
  %v3132 = vpop.permute.xlu0 %3131
  %3133 = vrot.lane.b32.xlu0 %v3014, 24
  %v3134 = vpop.permute.xlu0 %3133
  %3135 = vrot.lane.b32.xlu0 %v3090, 24
  %v3136 = vpop.permute.xlu0 %3135
  %v3141 = vsel %vm486, %v1950, %v3098
  %v3142 = vsel %vm486, %v2026, %v3100
  %v3143 = vsel %vm486, %v2102, %v3102
  %v3144 = vsel %vm486, %v2178, %v3104
  %vm3145 = vcmask 130048
  %v3146 = vsel %vm3145, %v3141, %v3114
  %v3147 = vsel %vm3145, %v3142, %v3116
  %v3148 = vsel %vm3145, %v3143, %v3118
  %v3149 = vsel %vm3145, %v3144, %v3120
  %vm3150 = vcmask 195584
  %v3151 = vsel %vm3150, %v3146, %v3130
  %v3152 = vsel %vm3150, %v3147, %v3132
  %v3153 = vsel %vm3150, %v3148, %v3134
  %v3154 = vsel %vm3150, %v3149, %v3136
  %v3155 = vlaneseq
  %v3156 = vshrl.u32 %v3155, 7
  %v3157 = vsub.s32 3, %v3156
  %v3158 = vrot.slane %v46, %v3157
  %v3160 = vsel %vm48, %v3151, 0
  %v3163 = vsel %vm48, %v3152, 0
  %v3166 = vsel %vm48, %v3153, 0
  %v3169 = vsel %vm48, %v3154, 0
  %v3172 = vsel %vm48, %v34, 0
  %v3175 = vsel %vm48, %v35, 0
  %v3178 = vsel %vm48, %v36, 0
  %v3181 = vsel %vm48, %v37, 0
  %3183 = vmatprep.subr.mxu0 0.0
  %3184 = vmatpush1.xpose.msra.mxu0 %v3172
  %3185 = vmatprep.subr.mxu0 0.0
  %3186 = vmatpush1.xpose.msra.mxu0 %v3175
  %3187 = vmatprep.subr.mxu0 0.0
  %3188 = vmatpush1.xpose.msra.mxu0 %v3178
  %3189 = vmatprep.subr.mxu0 0.0
  %3190 = vmatpush1.xpose.msra.mxu0 %v3181
  %3191 = vmatprep.subr.mxu0 0.0
  %3192 = vmatpush1.xpose.msra.mxu0 0.0
  %3193 = vmatprep.subr.mxu0 0.0
  %3194 = vmatpush1.xpose.msra.mxu0 0.0
  %3195 = vmatprep.subr.mxu0 0.0
  %3196 = vmatpush1.xpose.msra.mxu0 0.0
  %3197 = vmatprep.subr.mxu0 0.0
  %3198 = vmatpush1.xpose.msra.mxu0 0.0
  %3199 = vmatprep.subr.mxu0 0.0
  %3200 = vmatpush1.xpose.msra.mxu0 0.0
  %3201 = vmatprep.subr.mxu0 0.0
  %3202 = vmatpush1.xpose.msra.mxu0 0.0
  %3203 = vmatprep.subr.mxu0 0.0
  %3204 = vmatpush1.xpose.msra.mxu0 0.0
  %3205 = vmatprep.subr.mxu0 0.0
  %3206 = vmatpush1.xpose.msra.mxu0 0.0
  %3207 = vmatprep.subr.mxu0 0.0
  %3208 = vmatpush1.xpose.msra.mxu0 0.0
  %3209 = vmatprep.subr.mxu0 0.0
  %3210 = vmatpush1.xpose.msra.mxu0 0.0
  %3211 = vmatprep.subr.mxu0 0.0
  %3212 = vmatpush1.xpose.msra.mxu0 0.0
  %3213 = vmatprep.subr.mxu0 0.0
  %3214 = vmatpush1.xpose.msra.mxu0 0.0
  %3215 = vmatprep.subr.mxu0 0.0
  %3216 = vmatpush1.xpose.msra.mxu0 0.0
  %3217 = vmatprep.subr.mxu0 0.0
  %3218 = vmatpush1.xpose.msra.mxu0 0.0
  %3219 = vmatprep.subr.mxu0 0.0
  %3220 = vmatpush1.xpose.msra.mxu0 0.0
  %3221 = vmatprep.subr.mxu0 0.0
  %3222 = vmatpush1.xpose.msra.mxu0 0.0
  %3223 = vmatprep.subr.mxu0 0.0
  %3224 = vmatpush1.xpose.msra.mxu0 0.0
  %3225 = vmatprep.subr.mxu0 0.0
  %3226 = vmatpush1.xpose.msra.mxu0 0.0
  %3227 = vmatprep.subr.mxu0 0.0
  %3228 = vmatpush1.xpose.msra.mxu0 0.0
  %3229 = vmatprep.subr.mxu0 0.0
  %3230 = vmatpush1.xpose.msra.mxu0 0.0
  %3231 = vmatprep.subr.mxu0 0.0
  %3232 = vmatpush1.xpose.msra.mxu0 0.0
  %3233 = vmatprep.subr.mxu0 0.0
  %3234 = vmatpush1.xpose.msra.mxu0 0.0
  %3235 = vmatprep.subr.mxu0 0.0
  %3236 = vmatpush1.xpose.msra.mxu0 0.0
  %3237 = vmatprep.subr.mxu0 0.0
  %3238 = vmatpush1.xpose.msra.mxu0 0.0
  %3239 = vmatprep.subr.mxu0 0.0
  %3240 = vmatpush1.xpose.msra.mxu0 0.0
  %3241 = vmatprep.subr.mxu0 0.0
  %3242 = vmatpush1.xpose.msra.mxu0 0.0
  %3243 = vmatprep.subr.mxu0 0.0
  %3244 = vmatpush1.xpose.msra.mxu0 0.0
  %3245 = vmatprep.subr.mxu0 0.0
  %3246 = vmatpush1.xpose.msra.mxu0 0.0
  %3247 = vmatprep.mubr.f32.mxu0 0.0
  %3248 = vmatmul.mubr.f32.gmra.mrb[0].mxu0 %v3160
  %v3249 = vpop.f32.mrb[0].mxu0
  %v3250 = vadd.f32 %v3158, %v3249
  %v3251 = vpop.f32.mrb[0].mxu0
  %3252 = vmatprep.mubr.f32.mxu0 0.0
  %3253 = vmatmul.mubr.f32.gmra.mrb[0].mxu0 %v3163
  %v3254 = vpop.f32.mrb[0].mxu0
  %v3255 = vadd.f32 %v3158, %v3254
  %v3256 = vpop.f32.mrb[0].mxu0
  %3257 = vmatprep.mubr.f32.mxu0 0.0
  %3258 = vmatmul.mubr.f32.gmra.mrb[0].mxu0 %v3166
  %v3259 = vpop.f32.mrb[0].mxu0
  %v3260 = vadd.f32 %v3158, %v3259
  %v3261 = vpop.f32.mrb[0].mxu0
  %3262 = vmatprep.mubr.f32.mxu0 0.0
  %3263 = vmatmul.mubr.f32.gmra.mrb[0].mxu0 %v3169
  %v3264 = vpop.f32.mrb[0].mxu0
  %v3265 = vadd.f32 %v3158, %v3264
  %v3266 = vpop.f32.mrb[0].mxu0
  %3267 = vdwg.mxu0
  %v3268 = vmul.f32 %v3250, 0.7
  %v3269 = vmul.f32 %v3255, 0.7
  %v3270 = vmul.f32 %v3260, 0.7
  %v3271 = vmul.f32 %v3265, 0.7
  %v3272 = vmul.f32 %v231, 0.3
  %v3273 = vmul.f32 %v232, 0.3
  %v3274 = vmul.f32 %v233, 0.3
  %v3275 = vmul.f32 %v234, 0.3
  %v3276 = vadd.f32 %v3268, %v3272
  %v3277 = vadd.f32 %v3269, %v3273
  %v3278 = vadd.f32 %v3270, %v3274
  %v3279 = vadd.f32 %v3271, %v3275
  %v3280 = vadd.f32 %v14, %v3276
  %v3281 = vadd.f32 %v15, %v3277
  %v3282 = vadd.f32 %v16, %v3278
  %v3283 = vadd.f32 %v17, %v3279
  %v3284 = vsel %vm48, %v3280, 0.0
  %3285 = vadd.xlane.f32.xlu0 %v3284
  %v3286 = vpop.xlane.xlu0 %3285
  %v3287 = vsel %vm48, %v3281, 0.0
  %3288 = vadd.xlane.f32.xlu0 %v3287
  %v3289 = vpop.xlane.xlu0 %3288
  %v3290 = vsel %vm48, %v3282, 0.0
  %3291 = vadd.xlane.f32.xlu0 %v3290
  %v3292 = vpop.xlane.xlu0 %3291
  %v3293 = vsel %vm48, %v3283, 0.0
  %3294 = vadd.xlane.f32.xlu0 %v3293
  %v3295 = vpop.xlane.xlu0 %3294
  %v3296 = vmul.f32 %v3286, %v178
  %v3297 = vmul.f32 %v3289, %v178
  %v3298 = vmul.f32 %v3292, %v178
  %v3299 = vmul.f32 %v3295, %v178
  %v3300 = vsub.f32 %v3280, %v3296
  %v3301 = vsub.f32 %v3281, %v3297
  %v3302 = vsub.f32 %v3282, %v3298
  %v3303 = vsub.f32 %v3283, %v3299
  %v3304 = vmul.f32 %v3300, %v3300
  %v3305 = vmul.f32 %v3301, %v3301
  %v3306 = vmul.f32 %v3302, %v3302
  %v3307 = vmul.f32 %v3303, %v3303
  %v3308 = vsel %vm48, %v3304, 0.0
  %3309 = vadd.xlane.f32.xlu0 %v3308
  %v3310 = vpop.xlane.xlu0 %3309
  %v3311 = vsel %vm48, %v3305, 0.0
  %3312 = vadd.xlane.f32.xlu0 %v3311
  %v3313 = vpop.xlane.xlu0 %3312
  %v3314 = vsel %vm48, %v3306, 0.0
  %3315 = vadd.xlane.f32.xlu0 %v3314
  %v3316 = vpop.xlane.xlu0 %3315
  %v3317 = vsel %vm48, %v3307, 0.0
  %3318 = vadd.xlane.f32.xlu0 %v3317
  %v3319 = vpop.xlane.xlu0 %3318
  %v3320 = vmul.f32 %v3310, %v178
  %v3321 = vmul.f32 %v3313, %v178
  %v3322 = vmul.f32 %v3316, %v178
  %v3323 = vmul.f32 %v3319, %v178
  %v3324 = vadd.f32 %v3320, 1e-05
  %v3325 = vadd.f32 %v3321, 1e-05
  %v3326 = vadd.f32 %v3322, 1e-05
  %v3327 = vadd.f32 %v3323, 1e-05
  %v3328 = vrsqrt.pop %v3324
  %v3329 = vrsqrt.pop %v3325
  %v3330 = vrsqrt.pop %v3326
  %v3331 = vrsqrt.pop %v3327
  %v3332 = vmul.f32 %v3300, %v3328
  %v3333 = vmul.f32 %v3301, %v3329
  %v3334 = vmul.f32 %v3302, %v3330
  %v3335 = vmul.f32 %v3303, %v3331
  %v3336 = vlaneseq
  %v3337 = vshrl.u32 %v3336, 7
  %v3338 = vsub.s32 1, %v3337
  %v3339 = vrot.slane %v47, %v3338
  %v3340 = vmul.f32 %v3332, %v3339
  %v3341 = vmul.f32 %v3333, %v3339
  %v3342 = vmul.f32 %v3334, %v3339
  %v3343 = vmul.f32 %v3335, %v3339
  %v3344 = vlaneseq
  %v3345 = vshrl.u32 %v3344, 7
  %v3346 = vsub.s32 2, %v3345
  %v3347 = vrot.slane %v47, %v3346
  %v3348 = vadd.f32 %v3340, %v3347
  %v3349 = vadd.f32 %v3341, %v3347
  %v3350 = vadd.f32 %v3342, %v3347
  %v3351 = vadd.f32 %v3343, %v3347
  %v3352 = vlaneseq
  %v3353 = vshrl.u32 %v3352, 7
  %v3354 = vsub.s32 7, %v3353
  %v3355 = vrot.slane %v46, %v3354
  %v3357 = vsel %vm48, %v3348, 0
  %v3360 = vsel %vm48, %v3349, 0
  %v3363 = vsel %vm48, %v3350, 0
  %v3366 = vsel %vm48, %v3351, 0
  %v3369 = vsel %vm48, %v38, 0
  %v3372 = vsel %vm48, %v39, 0
  %v3375 = vsel %vm48, %v40, 0
  %v3378 = vsel %vm48, %v41, 0
  %3380 = vmatprep.subr.mxu0 0.0
  %3381 = vmatpush1.xpose.msra.mxu0 %v3369
  %3382 = vmatprep.subr.mxu0 0.0
  %3383 = vmatpush1.xpose.msra.mxu0 %v3372
  %3384 = vmatprep.subr.mxu0 0.0
  %3385 = vmatpush1.xpose.msra.mxu0 %v3375
  %3386 = vmatprep.subr.mxu0 0.0
  %3387 = vmatpush1.xpose.msra.mxu0 %v3378
  %3388 = vmatprep.subr.mxu0 0.0
  %3389 = vmatpush1.xpose.msra.mxu0 0.0
  %3390 = vmatprep.subr.mxu0 0.0
  %3391 = vmatpush1.xpose.msra.mxu0 0.0
  %3392 = vmatprep.subr.mxu0 0.0
  %3393 = vmatpush1.xpose.msra.mxu0 0.0
  %3394 = vmatprep.subr.mxu0 0.0
  %3395 = vmatpush1.xpose.msra.mxu0 0.0
  %3396 = vmatprep.subr.mxu0 0.0
  %3397 = vmatpush1.xpose.msra.mxu0 0.0
  %3398 = vmatprep.subr.mxu0 0.0
  %3399 = vmatpush1.xpose.msra.mxu0 0.0
  %3400 = vmatprep.subr.mxu0 0.0
  %3401 = vmatpush1.xpose.msra.mxu0 0.0
  %3402 = vmatprep.subr.mxu0 0.0
  %3403 = vmatpush1.xpose.msra.mxu0 0.0
  %3404 = vmatprep.subr.mxu0 0.0
  %3405 = vmatpush1.xpose.msra.mxu0 0.0
  %3406 = vmatprep.subr.mxu0 0.0
  %3407 = vmatpush1.xpose.msra.mxu0 0.0
  %3408 = vmatprep.subr.mxu0 0.0
  %3409 = vmatpush1.xpose.msra.mxu0 0.0
  %3410 = vmatprep.subr.mxu0 0.0
  %3411 = vmatpush1.xpose.msra.mxu0 0.0
  %3412 = vmatprep.subr.mxu0 0.0
  %3413 = vmatpush1.xpose.msra.mxu0 0.0
  %3414 = vmatprep.subr.mxu0 0.0
  %3415 = vmatpush1.xpose.msra.mxu0 0.0
  %3416 = vmatprep.subr.mxu0 0.0
  %3417 = vmatpush1.xpose.msra.mxu0 0.0
  %3418 = vmatprep.subr.mxu0 0.0
  %3419 = vmatpush1.xpose.msra.mxu0 0.0
  %3420 = vmatprep.subr.mxu0 0.0
  %3421 = vmatpush1.xpose.msra.mxu0 0.0
  %3422 = vmatprep.subr.mxu0 0.0
  %3423 = vmatpush1.xpose.msra.mxu0 0.0
  %3424 = vmatprep.subr.mxu0 0.0
  %3425 = vmatpush1.xpose.msra.mxu0 0.0
  %3426 = vmatprep.subr.mxu0 0.0
  %3427 = vmatpush1.xpose.msra.mxu0 0.0
  %3428 = vmatprep.subr.mxu0 0.0
  %3429 = vmatpush1.xpose.msra.mxu0 0.0
  %3430 = vmatprep.subr.mxu0 0.0
  %3431 = vmatpush1.xpose.msra.mxu0 0.0
  %3432 = vmatprep.subr.mxu0 0.0
  %3433 = vmatpush1.xpose.msra.mxu0 0.0
  %3434 = vmatprep.subr.mxu0 0.0
  %3435 = vmatpush1.xpose.msra.mxu0 0.0
  %3436 = vmatprep.subr.mxu0 0.0
  %3437 = vmatpush1.xpose.msra.mxu0 0.0
  %3438 = vmatprep.subr.mxu0 0.0
  %3439 = vmatpush1.xpose.msra.mxu0 0.0
  %3440 = vmatprep.subr.mxu0 0.0
  %3441 = vmatpush1.xpose.msra.mxu0 0.0
  %3442 = vmatprep.subr.mxu0 0.0
  %3443 = vmatpush1.xpose.msra.mxu0 0.0
  %3444 = vmatprep.mubr.f32.mxu0 0.0
  %3445 = vmatmul.mubr.f32.gmra.mrb[0].mxu0 %v3357
  %v3446 = vpop.f32.mrb[0].mxu0
  %v3447 = vadd.f32 %v3355, %v3446
  %v3448 = vpop.f32.mrb[0].mxu0
  %3449 = vmatprep.mubr.f32.mxu0 0.0
  %3450 = vmatmul.mubr.f32.gmra.mrb[0].mxu0 %v3360
  %v3451 = vpop.f32.mrb[0].mxu0
  %v3452 = vadd.f32 %v3355, %v3451
  %v3453 = vpop.f32.mrb[0].mxu0
  %3454 = vmatprep.mubr.f32.mxu0 0.0
  %3455 = vmatmul.mubr.f32.gmra.mrb[0].mxu0 %v3363
  %v3456 = vpop.f32.mrb[0].mxu0
  %v3457 = vadd.f32 %v3355, %v3456
  %v3458 = vpop.f32.mrb[0].mxu0
  %3459 = vmatprep.mubr.f32.mxu0 0.0
  %3460 = vmatmul.mubr.f32.gmra.mrb[0].mxu0 %v3366
  %v3461 = vpop.f32.mrb[0].mxu0
  %v3462 = vadd.f32 %v3355, %v3461
  %v3463 = vpop.f32.mrb[0].mxu0
  %3464 = vdwg.mxu0
  %v3465 = vmax.f32 %v3447, 0.0
  %v3466 = vmax.f32 %v3452, 0.0
  %v3467 = vmax.f32 %v3457, 0.0
  %v3468 = vmax.f32 %v3462, 0.0
  %v3469 = vlaneseq
  %v3470 = vshrl.u32 %v3469, 7
  %v3471 = vsub.s32 0, %v3470
  %v3472 = vrot.slane %v47, %v3471
  %v3474 = vsel %vm48, %v3465, 0
  %v3477 = vsel %vm48, %v3466, 0
  %v3480 = vsel %vm48, %v3467, 0
  %v3483 = vsel %vm48, %v3468, 0
  %v3486 = vsel %vm48, %v42, 0
  %v3489 = vsel %vm48, %v43, 0
  %v3492 = vsel %vm48, %v44, 0
  %v3495 = vsel %vm48, %v45, 0
  %3497 = vmatprep.subr.mxu0 0.0
  %3498 = vmatpush1.xpose.msra.mxu0 %v3486
  %3499 = vmatprep.subr.mxu0 0.0
  %3500 = vmatpush1.xpose.msra.mxu0 %v3489
  %3501 = vmatprep.subr.mxu0 0.0
  %3502 = vmatpush1.xpose.msra.mxu0 %v3492
  %3503 = vmatprep.subr.mxu0 0.0
  %3504 = vmatpush1.xpose.msra.mxu0 %v3495
  %3505 = vmatprep.subr.mxu0 0.0
  %3506 = vmatpush1.xpose.msra.mxu0 0.0
  %3507 = vmatprep.subr.mxu0 0.0
  %3508 = vmatpush1.xpose.msra.mxu0 0.0
  %3509 = vmatprep.subr.mxu0 0.0
  %3510 = vmatpush1.xpose.msra.mxu0 0.0
  %3511 = vmatprep.subr.mxu0 0.0
  %3512 = vmatpush1.xpose.msra.mxu0 0.0
  %3513 = vmatprep.subr.mxu0 0.0
  %3514 = vmatpush1.xpose.msra.mxu0 0.0
  %3515 = vmatprep.subr.mxu0 0.0
  %3516 = vmatpush1.xpose.msra.mxu0 0.0
  %3517 = vmatprep.subr.mxu0 0.0
  %3518 = vmatpush1.xpose.msra.mxu0 0.0
  %3519 = vmatprep.subr.mxu0 0.0
  %3520 = vmatpush1.xpose.msra.mxu0 0.0
  %3521 = vmatprep.subr.mxu0 0.0
  %3522 = vmatpush1.xpose.msra.mxu0 0.0
  %3523 = vmatprep.subr.mxu0 0.0
  %3524 = vmatpush1.xpose.msra.mxu0 0.0
  %3525 = vmatprep.subr.mxu0 0.0
  %3526 = vmatpush1.xpose.msra.mxu0 0.0
  %3527 = vmatprep.subr.mxu0 0.0
  %3528 = vmatpush1.xpose.msra.mxu0 0.0
  %3529 = vmatprep.subr.mxu0 0.0
  %3530 = vmatpush1.xpose.msra.mxu0 0.0
  %3531 = vmatprep.subr.mxu0 0.0
  %3532 = vmatpush1.xpose.msra.mxu0 0.0
  %3533 = vmatprep.subr.mxu0 0.0
  %3534 = vmatpush1.xpose.msra.mxu0 0.0
  %3535 = vmatprep.subr.mxu0 0.0
  %3536 = vmatpush1.xpose.msra.mxu0 0.0
  %3537 = vmatprep.subr.mxu0 0.0
  %3538 = vmatpush1.xpose.msra.mxu0 0.0
  %3539 = vmatprep.subr.mxu0 0.0
  %3540 = vmatpush1.xpose.msra.mxu0 0.0
  %3541 = vmatprep.subr.mxu0 0.0
  %3542 = vmatpush1.xpose.msra.mxu0 0.0
  %3543 = vmatprep.subr.mxu0 0.0
  %3544 = vmatpush1.xpose.msra.mxu0 0.0
  %3545 = vmatprep.subr.mxu0 0.0
  %3546 = vmatpush1.xpose.msra.mxu0 0.0
  %3547 = vmatprep.subr.mxu0 0.0
  %3548 = vmatpush1.xpose.msra.mxu0 0.0
  %3549 = vmatprep.subr.mxu0 0.0
  %3550 = vmatpush1.xpose.msra.mxu0 0.0
  %3551 = vmatprep.subr.mxu0 0.0
  %3552 = vmatpush1.xpose.msra.mxu0 0.0
  %3553 = vmatprep.subr.mxu0 0.0
  %3554 = vmatpush1.xpose.msra.mxu0 0.0
  %3555 = vmatprep.subr.mxu0 0.0
  %3556 = vmatpush1.xpose.msra.mxu0 0.0
  %3557 = vmatprep.subr.mxu0 0.0
  %3558 = vmatpush1.xpose.msra.mxu0 0.0
  %3559 = vmatprep.subr.mxu0 0.0
  %3560 = vmatpush1.xpose.msra.mxu0 0.0
  %3561 = vmatprep.mubr.f32.mxu0 0.0
  %3562 = vmatmul.mubr.f32.gmra.mrb[0].mxu0 %v3474
  %v3563 = vpop.f32.mrb[0].mxu0
  %v3564 = vadd.f32 %v3472, %v3563
  %v3565 = vpop.f32.mrb[0].mxu0
  %3566 = vmatprep.mubr.f32.mxu0 0.0
  %3567 = vmatmul.mubr.f32.gmra.mrb[0].mxu0 %v3477
  %v3568 = vpop.f32.mrb[0].mxu0
  %v3569 = vadd.f32 %v3472, %v3568
  %v3570 = vpop.f32.mrb[0].mxu0
  %3571 = vmatprep.mubr.f32.mxu0 0.0
  %3572 = vmatmul.mubr.f32.gmra.mrb[0].mxu0 %v3480
  %v3573 = vpop.f32.mrb[0].mxu0
  %v3574 = vadd.f32 %v3472, %v3573
  %v3575 = vpop.f32.mrb[0].mxu0
  %3576 = vmatprep.mubr.f32.mxu0 0.0
  %3577 = vmatmul.mubr.f32.gmra.mrb[0].mxu0 %v3483
  %v3578 = vpop.f32.mrb[0].mxu0
  %v3579 = vadd.f32 %v3472, %v3578
  %v3580 = vpop.f32.mrb[0].mxu0
  %3581 = vdwg.mxu0
  %v3582 = vadd.f32 %v3348, %v3564
  %v3583 = vadd.f32 %v3349, %v3569
  %v3584 = vadd.f32 %v3350, %v3574
  %v3585 = vadd.f32 %v3351, %v3579
  %v3586 = vsel %vm48, %v3582, 0.0
  %3587 = vadd.xlane.f32.xlu0 %v3586
  %v3588 = vpop.xlane.xlu0 %3587
  %v3589 = vsel %vm48, %v3583, 0.0
  %3590 = vadd.xlane.f32.xlu0 %v3589
  %v3591 = vpop.xlane.xlu0 %3590
  %v3592 = vsel %vm48, %v3584, 0.0
  %3593 = vadd.xlane.f32.xlu0 %v3592
  %v3594 = vpop.xlane.xlu0 %3593
  %v3595 = vsel %vm48, %v3585, 0.0
  %3596 = vadd.xlane.f32.xlu0 %v3595
  %v3597 = vpop.xlane.xlu0 %3596
  %v3598 = vmul.f32 %v3588, %v178
  %v3599 = vmul.f32 %v3591, %v178
  %v3600 = vmul.f32 %v3594, %v178
  %v3601 = vmul.f32 %v3597, %v178
  %v3602 = vsub.f32 %v3582, %v3598
  %v3603 = vsub.f32 %v3583, %v3599
  %v3604 = vsub.f32 %v3584, %v3600
  %v3605 = vsub.f32 %v3585, %v3601
  %v3606 = vmul.f32 %v3602, %v3602
  %v3607 = vmul.f32 %v3603, %v3603
  %v3608 = vmul.f32 %v3604, %v3604
  %v3609 = vmul.f32 %v3605, %v3605
  %v3610 = vsel %vm48, %v3606, 0.0
  %3611 = vadd.xlane.f32.xlu0 %v3610
  %v3612 = vpop.xlane.xlu0 %3611
  %v3613 = vsel %vm48, %v3607, 0.0
  %3614 = vadd.xlane.f32.xlu0 %v3613
  %v3615 = vpop.xlane.xlu0 %3614
  %v3616 = vsel %vm48, %v3608, 0.0
  %3617 = vadd.xlane.f32.xlu0 %v3616
  %v3618 = vpop.xlane.xlu0 %3617
  %v3619 = vsel %vm48, %v3609, 0.0
  %3620 = vadd.xlane.f32.xlu0 %v3619
  %v3621 = vpop.xlane.xlu0 %3620
  %v3622 = vmul.f32 %v3612, %v178
  %v3623 = vmul.f32 %v3615, %v178
  %v3624 = vmul.f32 %v3618, %v178
  %v3625 = vmul.f32 %v3621, %v178
  %v3626 = vadd.f32 %v3622, 1e-05
  %v3627 = vadd.f32 %v3623, 1e-05
  %v3628 = vadd.f32 %v3624, 1e-05
  %v3629 = vadd.f32 %v3625, 1e-05
  %v3630 = vrsqrt.pop %v3626
  %v3631 = vrsqrt.pop %v3627
  %v3632 = vrsqrt.pop %v3628
  %v3633 = vrsqrt.pop %v3629
  %v3634 = vmul.f32 %v3602, %v3630
  %v3635 = vmul.f32 %v3603, %v3631
  %v3636 = vmul.f32 %v3604, %v3632
  %v3637 = vmul.f32 %v3605, %v3633
  %v3638 = vlaneseq
  %v3639 = vshrl.u32 %v3638, 7
  %v3640 = vsub.s32 3, %v3639
  %v3641 = vrot.slane %v47, %v3640
  %v3642 = vmul.f32 %v3634, %v3641
  %v3643 = vmul.f32 %v3635, %v3641
  %v3644 = vmul.f32 %v3636, %v3641
  %v3645 = vmul.f32 %v3637, %v3641
  %v3646 = vlaneseq
  %v3647 = vshrl.u32 %v3646, 7
  %v3648 = vsub.s32 4, %v3647
  %v3649 = vrot.slane %v47, %v3648
  %v3650 = vadd.f32 %v3642, %v3649
  %v3651 = vadd.f32 %v3643, %v3649
  %v3652 = vadd.f32 %v3644, %v3649
  %v3653 = vadd.f32 %v3645, %v3649
  %3654 = vst.msk [vmem:[%s3] sm:$0xff] %vm48, %v3650
  %3655 = vst.msk [vmem:[%s3 + $0x8] sm:$0xff] %vm48, %v3651
  %3656 = vst.msk [vmem:[%s3 + $0x10] sm:$0xff] %vm48, %v3652
  %3657 = vst.msk [vmem:[%s3 + $0x18] sm:$0xff] %vm48, %v3653
  // Predicated region
  $region14: #{transformer_block.1} parent=0 // pred_check
    _
  $region15: #{transformer_block.1} parent=0 // pred_check_branch
    %3659 = sbr.rel (0) target = $region17
  $region16: #{transformer_block.1} parent=0 // pred_region
    _
  $region17: #{transformer_block.1} parent=0 // pred_fallthru
    _
  // Predicated region
  $region18: #{transformer_block.1} parent=0 // pred_check
    _
  $region19: #{transformer_block.1} parent=0 // pred_check_branch
    %3661 = sbr.rel (0) target = $region21
  $region20: #{transformer_block.1} parent=0 // pred_region
    _
  $region21: #{transformer_block.1} parent=0 // pred_fallthru
    _

</llo_original>
